<compile_context>
chip_gen: v5e
topology: v5e:2x2
jax: 0.10.0
libtpu: 0.0.40
codegen_flags: <defaults>
</compile_context>

<pallas_src>
import jax
import jax.numpy as jnp
from jax import lax
from jax.experimental import pallas as pl
from jax.experimental.pallas import tpu as pltpu


# --------------------------------------------------------------------------
# Fused MIL forward kernel: fc1 + ReLU -> fc2 -> softmax -> top-1 select
#                           -> y_prob softmax -> attention softmax over N.
# --------------------------------------------------------------------------
def _mil_kernel(feat_ref, w1_ref, b1_ref, w2_ref, b2_ref,
                top_ref, yprob_ref, attn_ref):
    # fc1: Linear(2048 -> 512) + ReLU   (Dropout = identity at inference)
    h = jnp.dot(feat_ref[...], w1_ref[...],
                preferred_element_type=jnp.float32)              # (N, 512) f32
    h = jnp.maximum(h + b1_ref[...], 0.0)

    # fc2: Linear(512 -> 2)
    logits = jnp.dot(h, w2_ref[...],
                     preferred_element_type=jnp.float32) + b2_ref[...]  # (N, 2)

    # probs = softmax(logits, dim=1)
    m = jnp.max(logits, axis=1, keepdims=True)
    e = jnp.exp(logits - m)
    probs = e / jnp.sum(e, axis=1, keepdims=True)                # (N, 2)

    p1 = probs[:, 1:2]                                           # (N, 1)
    n = p1.shape[0]

    # top-1 instance over dim 0 (first index on ties, i.e. argmax semantics)
    row = lax.broadcasted_iota(jnp.int32, (n, 1), 0)
    pmax = jnp.max(p1, axis=0, keepdims=True)
    idx = jnp.min(jnp.where(p1 >= pmax, row, n), axis=0, keepdims=True)  # (1,1)
    onehot = (row == idx).astype(jnp.float32)                    # (N, 1)
    top = jnp.sum(onehot * logits, axis=0, keepdims=True)        # (1, 2)
    top_ref[...] = top

    # y_prob = softmax(top_instance, dim=1)
    m2 = jnp.max(top, axis=1, keepdims=True)
    e2 = jnp.exp(top - m2)
    yprob_ref[...] = e2 / jnp.sum(e2, axis=1, keepdims=True)

    # attention = softmax(probs[:, 1], dim=0)
    m3 = jnp.max(p1, axis=0, keepdims=True)
    e3 = jnp.exp(p1 - m3)
    attn_ref[...] = e3 / jnp.sum(e3, axis=0, keepdims=True)


def mil_forward(features, params, return_attention=False):
    """features: (N, 2048) f32. Returns (top_instance (1,2), y_prob (1,2), attn (N,))."""
    N = features.shape[0]
    feat = features.astype(jnp.bfloat16)   # bf16 activations for the MXU matmul
    args = (feat, params['fc1_w'], params['fc1_b'],
            params['fc2_w'], params['fc2_b'])
    in_specs = [pl.BlockSpec(a.shape, lambda i: (0, 0)) for a in args]

    top, y_prob, attn = pl.pallas_call(
        _mil_kernel,
        out_shape=(jax.ShapeDtypeStruct((1, 2), jnp.float32),    # top_instance
                   jax.ShapeDtypeStruct((1, 2), jnp.float32),    # y_prob
                   jax.ShapeDtypeStruct((N, 1), jnp.float32)),   # attention
        grid=(1,),
        in_specs=in_specs,
        out_specs=(pl.BlockSpec((1, 2), lambda i: (0, 0)),
                   pl.BlockSpec((1, 2), lambda i: (0, 0)),
                   pl.BlockSpec((N, 1), lambda i: (0, 0))),
        compiler_params=pltpu.CompilerParams(
            dimension_semantics=("arbitrary",),
            vmem_limit_bytes=32 << 20),
    )(*args)

    attn = attn.reshape(N)
    if return_attention:
        return attn
    return top, y_prob, attn


# --------------------------------------------------------------------------
# Parameter construction (deterministic, synthetic)
# --------------------------------------------------------------------------
def make_params(key):
    k1, k2, k3, k4 = jax.random.split(key, 4)
    b1f = 1.0 / (2048 ** 0.5)
    w1 = jax.random.uniform(k1, (2048, 512), jnp.float32, -b1f, b1f)
    b1 = jax.random.uniform(k2, (1, 512), jnp.float32, -b1f, b1f)
    b2f = 1.0 / (512 ** 0.5)
    w2 = jax.random.uniform(k3, (512, 2), jnp.float32, -b2f, b2f)
    b2 = jax.random.uniform(k4, (1, 2), jnp.float32, -b2f, b2f)
    # fc1 weight stored bf16 (dominant DMA); biases and tiny fc2 stay f32.
    return {'fc1_w': w1.astype(jnp.bfloat16), 'fc1_b': b1,
            'fc2_w': w2, 'fc2_b': b2}


if __name__ == "__main__":
    n_instances = 8                         # small bag of instances

    key = jax.random.PRNGKey(0)
    k_feat, k_param = jax.random.split(key)
    features = jax.random.normal(k_feat, (n_instances, 2048), jnp.float32)
    params = make_params(k_param)

    # TODO(synk): Dropout(0.5) is modeled as identity (inference / eval mode).
    top_instance, y_prob, attn = mil_forward(features, params)
    jax.block_until_ready((top_instance, y_prob, attn))

    assert top_instance.shape == (1, 2)
    assert y_prob.shape == (1, 2)
    assert attn.shape == (n_instances,)
    print("KERNEL_OK")
</pallas_src>

<mosaic_0001>
module attributes {stable_mosaic.version = 11 : i64} {
  func.func @_mil_kernel(%arg0: i32, %arg1: memref<8x2048xbf16, #tpu.memory_space<vmem>>, %arg2: memref<2048x512xbf16, #tpu.memory_space<vmem>>, %arg3: memref<1x512xf32, #tpu.memory_space<vmem>>, %arg4: memref<512x2xf32, #tpu.memory_space<vmem>>, %arg5: memref<1x2xf32, #tpu.memory_space<vmem>>, %arg6: memref<1x2xf32, #tpu.memory_space<vmem>>, %arg7: memref<1x2xf32, #tpu.memory_space<vmem>>, %arg8: memref<8x1xf32, #tpu.memory_space<vmem>>) attributes {dimension_semantics = [#tpu.dimension_semantics<arbitrary>], iteration_bounds = array<i64: 1>, scalar_prefetch = 0 : i64, scratch_operands = 0 : i64, tpu.core_type = #tpu.core_type<tc>, window_params = [{pipeline_mode = #tpu.pipeline_mode<synchronous>, transform_indices = @transform_0, window_bounds = array<i64: 8, 2048>}, {pipeline_mode = #tpu.pipeline_mode<synchronous>, transform_indices = @transform_1, window_bounds = array<i64: 2048, 512>}, {pipeline_mode = #tpu.pipeline_mode<synchronous>, transform_indices = @transform_2, window_bounds = array<i64: 1, 512>}, {pipeline_mode = #tpu.pipeline_mode<synchronous>, transform_indices = @transform_3, window_bounds = array<i64: 512, 2>}, {pipeline_mode = #tpu.pipeline_mode<synchronous>, transform_indices = @transform_4, window_bounds = array<i64: 1, 2>}, {pipeline_mode = #tpu.pipeline_mode<synchronous>, transform_indices = @transform_5, window_bounds = array<i64: 1, 2>}, {pipeline_mode = #tpu.pipeline_mode<synchronous>, transform_indices = @transform_6, window_bounds = array<i64: 1, 2>}, {pipeline_mode = #tpu.pipeline_mode<synchronous>, transform_indices = @transform_7, window_bounds = array<i64: 8, 1>}]} {
    %c0 = arith.constant 0 : index
    %c0_0 = arith.constant 0 : index
    %0 = vector.load %arg1[%c0, %c0_0] : memref<8x2048xbf16, #tpu.memory_space<vmem>>, vector<8x2048xbf16>
    %c0_1 = arith.constant 0 : index
    %c0_2 = arith.constant 0 : index
    %1 = vector.load %arg2[%c0_1, %c0_2] : memref<2048x512xbf16, #tpu.memory_space<vmem>>, vector<2048x512xbf16>
    %cst = arith.constant dense<0.000000e+00> : vector<8x512xf32>
    %2 = tpu.matmul %0, %1, %cst {dimension_numbers = #tpu.dot_dimension_numbers<[1], [0], [0], [1], [0, 0, 1, 1], [], []>} : vector<8x2048xbf16>, vector<2048x512xbf16>, vector<8x512xf32> -> vector<8x512xf32>
    %c0_3 = arith.constant 0 : index
    %c0_4 = arith.constant 0 : index
    %3 = vector.load %arg3[%c0_3, %c0_4] : memref<1x512xf32, #tpu.memory_space<vmem>>, vector<1x512xf32>
    %4 = vector.broadcast %3 : vector<1x512xf32> to vector<8x512xf32>
    %5 = arith.addf %2, %4 : vector<8x512xf32>
    %cst_5 = arith.constant 0.000000e+00 : f32
    %6 = vector.broadcast %cst_5 : f32 to vector<8x512xf32>
    %7 = arith.maximumf %5, %6 : vector<8x512xf32>
    %c0_6 = arith.constant 0 : index
    %c0_7 = arith.constant 0 : index
    %8 = vector.load %arg4[%c0_6, %c0_7] : memref<512x2xf32, #tpu.memory_space<vmem>>, vector<512x2xf32>
    %cst_8 = arith.constant dense<0.000000e+00> : vector<8x2xf32>
    %9 = tpu.matmul %7, %8, %cst_8 {dimension_numbers = #tpu.dot_dimension_numbers<[1], [0], [0], [1], [0, 0, 1, 1], [], []>} : vector<8x512xf32>, vector<512x2xf32>, vector<8x2xf32> -> vector<8x2xf32>
    %c0_9 = arith.constant 0 : index
    %c0_10 = arith.constant 0 : index
    %10 = vector.load %arg5[%c0_9, %c0_10] : memref<1x2xf32, #tpu.memory_space<vmem>>, vector<1x2xf32>
    %11 = vector.broadcast %10 : vector<1x2xf32> to vector<8x2xf32>
    %12 = arith.addf %9, %11 : vector<8x2xf32>
    %cst_11 = arith.constant dense<0xFF800000> : vector<8xf32>
    %13 = vector.multi_reduction <maximumf>, %12, %cst_11 [1] : vector<8x2xf32> to vector<8xf32>
    %14 = vector.shape_cast %13 : vector<8xf32> to vector<8x1xf32>
    %15 = vector.broadcast %14 : vector<8x1xf32> to vector<8x2xf32>
    %16 = arith.subf %12, %15 : vector<8x2xf32>
    %17 = math.exp %16 : vector<8x2xf32>
    %cst_12 = arith.constant dense<0.000000e+00> : vector<8xf32>
    %18 = vector.multi_reduction <add>, %17, %cst_12 [1] : vector<8x2xf32> to vector<8xf32>
    %19 = vector.shape_cast %18 : vector<8xf32> to vector<8x1xf32>
    %20 = vector.broadcast %19 : vector<8x1xf32> to vector<8x2xf32>
    %21 = arith.divf %17, %20 : vector<8x2xf32>
    %22 = vector.extract_strided_slice %21 {offsets = [0, 1], sizes = [8, 1], strides = [1, 1]} : vector<8x2xf32> to vector<8x1xf32>
    %23 = tpu.iota {dimensions = array<i32: 0>} : vector<8x1xi32>
    %cst_13 = arith.constant dense<0xFF800000> : vector<1xf32>
    %24 = vector.multi_reduction <maximumf>, %22, %cst_13 [0] : vector<8x1xf32> to vector<1xf32>
    %25 = vector.shape_cast %24 : vector<1xf32> to vector<1x1xf32>
    %26 = vector.broadcast %25 : vector<1x1xf32> to vector<8x1xf32>
    %27 = arith.cmpf oge, %22, %26 : vector<8x1xf32>
    %c8_i32 = arith.constant 8 : i32
    %28 = vector.broadcast %c8_i32 : i32 to vector<8x1xi32>
    %29 = arith.select %27, %23, %28 : vector<8x1xi1>, vector<8x1xi32>
    %cst_14 = arith.constant dense<2147483647> : vector<1xi32>
    %30 = vector.multi_reduction <minsi>, %29, %cst_14 [0] : vector<8x1xi32> to vector<1xi32>
    %31 = vector.shape_cast %30 : vector<1xi32> to vector<1x1xi32>
    %32 = vector.broadcast %31 : vector<1x1xi32> to vector<8x1xi32>
    %33 = arith.cmpi eq, %23, %32 : vector<8x1xi32>
    %34 = arith.extui %33 : vector<8x1xi1> to vector<8x1xi32>
    %35 = arith.sitofp %34 : vector<8x1xi32> to vector<8x1xf32>
    %36 = vector.broadcast %35 : vector<8x1xf32> to vector<8x2xf32>
    %37 = arith.mulf %36, %12 : vector<8x2xf32>
    %cst_15 = arith.constant dense<0.000000e+00> : vector<2xf32>
    %38 = vector.multi_reduction <add>, %37, %cst_15 [0] : vector<8x2xf32> to vector<2xf32>
    %39 = vector.shape_cast %38 : vector<2xf32> to vector<1x2xf32>
    %c0_16 = arith.constant 0 : index
    %c0_17 = arith.constant 0 : index
    %40 = vector.load %arg6[%c0_16, %c0_17] : memref<1x2xf32, #tpu.memory_space<vmem>>, vector<1x2xf32>
    tpu.vector_store %arg6[%c0_16, %c0_17], %39 {strides = array<i32>} : memref<1x2xf32, #tpu.memory_space<vmem>>, vector<1x2xf32>,
    %cst_18 = arith.constant dense<0xFF800000> : vector<1xf32>
    %41 = vector.multi_reduction <maximumf>, %39, %cst_18 [1] : vector<1x2xf32> to vector<1xf32>
    %42 = vector.shape_cast %41 : vector<1xf32> to vector<1x1xf32>
    %43 = vector.broadcast %42 : vector<1x1xf32> to vector<1x2xf32>
    %44 = arith.subf %39, %43 : vector<1x2xf32>
    %45 = math.exp %44 : vector<1x2xf32>
    %cst_19 = arith.constant dense<0.000000e+00> : vector<1xf32>
    %46 = vector.multi_reduction <add>, %45, %cst_19 [1] : vector<1x2xf32> to vector<1xf32>
    %47 = vector.shape_cast %46 : vector<1xf32> to vector<1x1xf32>
    %48 = vector.broadcast %47 : vector<1x1xf32> to vector<1x2xf32>
    %49 = arith.divf %45, %48 : vector<1x2xf32>
    %c0_20 = arith.constant 0 : index
    %c0_21 = arith.constant 0 : index
    %50 = vector.load %arg7[%c0_20, %c0_21] : memref<1x2xf32, #tpu.memory_space<vmem>>, vector<1x2xf32>
    tpu.vector_store %arg7[%c0_20, %c0_21], %49 {strides = array<i32>} : memref<1x2xf32, #tpu.memory_space<vmem>>, vector<1x2xf32>,
    %cst_22 = arith.constant dense<0xFF800000> : vector<1xf32>
    %51 = vector.multi_reduction <maximumf>, %22, %cst_22 [0] : vector<8x1xf32> to vector<1xf32>
    %52 = vector.shape_cast %51 : vector<1xf32> to vector<1x1xf32>
    %53 = vector.broadcast %52 : vector<1x1xf32> to vector<8x1xf32>
    %54 = arith.subf %22, %53 : vector<8x1xf32>
    %55 = math.exp %54 : vector<8x1xf32>
    %cst_23 = arith.constant dense<0.000000e+00> : vector<1xf32>
    %56 = vector.multi_reduction <add>, %55, %cst_23 [0] : vector<8x1xf32> to vector<1xf32>
    %57 = vector.shape_cast %56 : vector<1xf32> to vector<1x1xf32>
    %58 = vector.broadcast %57 : vector<1x1xf32> to vector<8x1xf32>
    %59 = arith.divf %55, %58 : vector<8x1xf32>
    %c0_24 = arith.constant 0 : index
    %c0_25 = arith.constant 0 : index
    %60 = vector.load %arg8[%c0_24, %c0_25] : memref<8x1xf32, #tpu.memory_space<vmem>>, vector<8x1xf32>
    tpu.vector_store %arg8[%c0_24, %c0_25], %59 {strides = array<i32>} : memref<8x1xf32, #tpu.memory_space<vmem>>, vector<8x1xf32>,
    return
  }
  func.func @transform_0(%arg0: i32) -> (i32, i32) {
    %c0_i32 = arith.constant 0 : i32
    %c0_i32_0 = arith.constant 0 : i32
    %c0_i32_1 = arith.constant 0 : i32
    return %c0_i32, %c0_i32_0 : i32, i32
  }
  func.func @transform_1(%arg0: i32) -> (i32, i32) {
    %c0_i32 = arith.constant 0 : i32
    %c0_i32_0 = arith.constant 0 : i32
    %c0_i32_1 = arith.constant 0 : i32
    return %c0_i32, %c0_i32_0 : i32, i32
  }
  func.func @transform_2(%arg0: i32) -> (i32, i32) {
    %c0_i32 = arith.constant 0 : i32
    %c0_i32_0 = arith.constant 0 : i32
    %c0_i32_1 = arith.constant 0 : i32
    return %c0_i32, %c0_i32_0 : i32, i32
  }
  func.func @transform_3(%arg0: i32) -> (i32, i32) {
    %c0_i32 = arith.constant 0 : i32
    %c0_i32_0 = arith.constant 0 : i32
    %c0_i32_1 = arith.constant 0 : i32
    return %c0_i32, %c0_i32_0 : i32, i32
  }
  func.func @transform_4(%arg0: i32) -> (i32, i32) {
    %c0_i32 = arith.constant 0 : i32
    %c0_i32_0 = arith.constant 0 : i32
    %c0_i32_1 = arith.constant 0 : i32
    return %c0_i32, %c0_i32_0 : i32, i32
  }
  func.func @transform_5(%arg0: i32) -> (i32, i32) {
    %c0_i32 = arith.constant 0 : i32
    %c0_i32_0 = arith.constant 0 : i32
    %c0_i32_1 = arith.constant 0 : i32
    return %c0_i32, %c0_i32_0 : i32, i32
  }
  func.func @transform_6(%arg0: i32) -> (i32, i32) {
    %c0_i32 = arith.constant 0 : i32
    %c0_i32_0 = arith.constant 0 : i32
    %c0_i32_1 = arith.constant 0 : i32
    return %c0_i32, %c0_i32_0 : i32, i32
  }
  func.func @transform_7(%arg0: i32) -> (i32, i32) {
    %c0_i32 = arith.constant 0 : i32
    %c0_i32_0 = arith.constant 0 : i32
    %c0_i32_1 = arith.constant 0 : i32
    return %c0_i32, %c0_i32_0 : i32, i32
  }
}

</mosaic_0001>

<llo_original>
// kernel: tpu_custom_call.1
$region0: #{tpu_custom_call.1}
  #allocation0 [shape = 'u32[]', space=smem, size = 0x4, offset = 0x4, fixed_abs, tag = 'smem constant byte address 0x4 - core index']
  #allocation1 [shape = 'u32[72,128]{1,0:T(1,128)}', space=vmem, size = 0x9000, scoped, tag = 'internal scratch']
  %s0 = inlined_call_operand.hbm [shape: bf16[8,2048], index: 0, kind: input, shape index: {}]
  %s1 = inlined_call_operand.hbm [shape: bf16[2048,512], index: 1, kind: input, shape index: {}]
  %s2 = inlined_call_operand.hbm [shape: f32[1,512], index: 2, kind: input, shape index: {}]
  %s3 = inlined_call_operand.vmem [shape: f32[512,2], index: 3, kind: input, shape index: {}]
  %s4 = inlined_call_operand.hbm [shape: f32[1,2], index: 4, kind: input, shape index: {}]
  %s5 = inlined_call_operand.hbm [shape: f32[1,2], index: 5, kind: output, shape index: {0}]
  %s6 = inlined_call_operand.hbm [shape: f32[1,2], index: 6, kind: output, shape index: {1}]
  %s7 = inlined_call_operand.vmem [shape: f32[8,1], index: 7, kind: output, shape index: {2}]
  %8 = xla_tuple %s5, %s6, %s7
  %s9 = sld [smem:[#allocation0]]
  $region62: #{tpu_custom_call.1} parent=0
    _
  %s11 = ssub.s32 1, %s9
  %s12 = scalar_select 0, %s11, %s9
  $region1: #{tpu_custom_call.1} parent=0
    #allocation2 [shape = 'u8[32768]{0}', space=vmem, size = 0x8000, scoped, tag = 'input window, operand 0, single buffered']
    #allocation3 [shape = 's32[1]{0}', space=sflag, size = 0x4, scoped, tag = 'scoped memory for tpu_custom_call.1']
    #allocation4 [shape = 's32[1]{0}', space=sflag, size = 0x4, scoped, tag = 'scoped memory for tpu_custom_call.1']
    #allocation5 [shape = 'u8[2097152]{0}', space=vmem, size = 0x200000, scoped, tag = 'input window, operand 1, single buffered']
    #allocation6 [shape = 's32[1]{0}', space=sflag, size = 0x4, scoped, tag = 'scoped memory for tpu_custom_call.1']
    #allocation7 [shape = 'u8[2048]{0}', space=vmem, size = 0x800, scoped, tag = 'input window, operand 2, single buffered']
    #allocation8 [shape = 'u8[512]{0}', space=vmem, size = 0x400, scoped, tag = 'input window, operand 4, single buffered']
    #allocation9 [shape = 's32[1]{0}', space=sflag, size = 0x4, scoped, tag = 'scoped memory for tpu_custom_call.1']
    #allocation10 [shape = 'u8[512]{0}', space=vmem, size = 0x400, scoped, tag = 'output window, operand 0, single buffered']
    #allocation11 [shape = 'u8[512]{0}', space=vmem, size = 0x400, scoped, tag = 'output window, operand 1, single buffered']
    #allocation12 [shape = 's32[1]{0}', space=sflag, size = 0x4, scoped, tag = 'scoped memory for tpu_custom_call.1']
    %13 = vsyncpa [#allocation3], 0
    %14 = vsyncpa [#allocation6], 0
    %15 = vsyncpa [#allocation9], 0
    %16 = vsyncpa [#allocation4], 0
    %17 = vsyncpa [#allocation12], 0
    // Predicated region
    $region2: #{tpu_custom_call.1} parent=1 // pred_check
      _
    $region3: #{tpu_custom_call.1} parent=1 // pred_check_branch
      %19 = sbr.rel (0) target = $region5
    $region4: #{tpu_custom_call.1} parent=1 // pred_region
      %21 = vsyncadd [#allocation3], 0
      %s23 = sshll.u32 %s0, 4
      %s24 = int_to_ptr.hbm [resolvable:$true] %s23
      %s25 = sshll.u32 [#allocation2], 4
      %s26 = int_to_ptr.vmem [resolvable:$true] %s25
      %28 = dma.hbm_to_vmem [thread:$0]  %s24, 1024, %s26, [#allocation3]
    $region5: #{tpu_custom_call.1} parent=1 // pred_fallthru
      _
    // Predicated region
    $region6: #{tpu_custom_call.1} parent=1 // pred_check
      _
    $region7: #{tpu_custom_call.1} parent=1 // pred_check_branch
      %30 = sbr.rel (0) target = $region9
    $region8: #{tpu_custom_call.1} parent=1 // pred_region
      %32 = vsyncadd [#allocation6], 0
      %s33 = sshll.u32 %s1, 4
      %s34 = int_to_ptr.hbm [resolvable:$true] %s33
      %s35 = sshll.u32 [#allocation5], 4
      %s36 = int_to_ptr.vmem [resolvable:$true] %s35
      %41 = dma.hbm_to_vmem [thread:$0]  %s34, 65536, %s36, [#allocation6], 256, 256, 16
    $region9: #{tpu_custom_call.1} parent=1 // pred_fallthru
      _
    // Predicated region
    $region10: #{tpu_custom_call.1} parent=1 // pred_check
      _
    $region11: #{tpu_custom_call.1} parent=1 // pred_check_branch
      %43 = sbr.rel (0) target = $region13
    $region12: #{tpu_custom_call.1} parent=1 // pred_region
      %45 = vsyncadd [#allocation6], 0
      %s47 = sshll.u32 %s2, 4
      %s48 = int_to_ptr.hbm [resolvable:$true] %s47
      %s49 = sshll.u32 [#allocation7], 4
      %s50 = int_to_ptr.vmem [resolvable:$true] %s49
      %52 = dma.hbm_to_vmem [thread:$0]  %s48, 64, %s50, [#allocation6]
    $region13: #{tpu_custom_call.1} parent=1 // pred_fallthru
      _
    // Predicated region
    $region14: #{tpu_custom_call.1} parent=1 // pred_check
      _
    $region15: #{tpu_custom_call.1} parent=1 // pred_check_branch
      %54 = sbr.rel (0) target = $region17
    $region16: #{tpu_custom_call.1} parent=1 // pred_region
      _
    $region17: #{tpu_custom_call.1} parent=1 // pred_fallthru
      _
    // Predicated region
    $region18: #{tpu_custom_call.1} parent=1 // pred_check
      _
    $region19: #{tpu_custom_call.1} parent=1 // pred_check_branch
      %56 = sbr.rel (0) target = $region21
    $region20: #{tpu_custom_call.1} parent=1 // pred_region
      %58 = vsyncadd [#allocation9], 0
      %s60 = sshll.u32 %s4, 4
      %s61 = int_to_ptr.hbm [resolvable:$true] %s60
      %s62 = sshll.u32 [#allocation8], 4
      %s63 = int_to_ptr.vmem [resolvable:$true] %s62
      %65 = dma.hbm_to_vmem [thread:$0]  %s61, 16, %s63, [#allocation9]
    $region21: #{tpu_custom_call.1} parent=1 // pred_fallthru
      _
    // Predicated region
    $region22: #{tpu_custom_call.1} parent=1 // pred_check
      _
    $region23: #{tpu_custom_call.1} parent=1 // pred_check_branch
      %67 = sbr.rel (0) target = $region25
    $region24: #{tpu_custom_call.1} parent=1 // pred_region
      %69 = dma.done [#allocation3], 1024
    $region25: #{tpu_custom_call.1} parent=1 // pred_fallthru
      _
    // Predicated region
    $region26: #{tpu_custom_call.1} parent=1 // pred_check
      _
    $region27: #{tpu_custom_call.1} parent=1 // pred_check_branch
      %71 = sbr.rel (0) target = $region29
    $region28: #{tpu_custom_call.1} parent=1 // pred_region
      %73 = dma.done [#allocation6], 65536
    $region29: #{tpu_custom_call.1} parent=1 // pred_fallthru
      _
    // Predicated region
    $region30: #{tpu_custom_call.1} parent=1 // pred_check
      _
    $region31: #{tpu_custom_call.1} parent=1 // pred_check_branch
      %75 = sbr.rel (0) target = $region33
    $region32: #{tpu_custom_call.1} parent=1 // pred_region
      %77 = dma.done [#allocation6], 64
    $region33: #{tpu_custom_call.1} parent=1 // pred_fallthru
      _
    // Predicated region
    $region34: #{tpu_custom_call.1} parent=1 // pred_check
      _
    $region35: #{tpu_custom_call.1} parent=1 // pred_check_branch
      %79 = sbr.rel (0) target = $region37
    $region36: #{tpu_custom_call.1} parent=1 // pred_region
      %81 = dma.done [#allocation9], 16
    $region37: #{tpu_custom_call.1} parent=1 // pred_fallthru
      _
    %v82 = vld [vmem:[#allocation2] sm:$0xff]
    %v83 = vld [vmem:[#allocation2 + $0x8] sm:$0xff]
    %v84 = vld [vmem:[#allocation2 + $0x10] sm:$0xff]
    %v85 = vld [vmem:[#allocation2 + $0x18] sm:$0xff]
    %v86 = vld [vmem:[#allocation2 + $0x20] sm:$0xff]
    %v87 = vld [vmem:[#allocation2 + $0x28] sm:$0xff]
    %v88 = vld [vmem:[#allocation2 + $0x30] sm:$0xff]
    %v89 = vld [vmem:[#allocation2 + $0x38] sm:$0xff]
    %v90 = vld [vmem:[#allocation5] sm:$0xff]
    %v91 = vld [vmem:[#allocation5 + $0x8] sm:$0xff]
    %v92 = vld [vmem:[#allocation5 + $0x10] sm:$0xff]
    %v93 = vld [vmem:[#allocation5 + $0x18] sm:$0xff]
    %v94 = vld [vmem:[#allocation5 + $0x20] sm:$0xff]
    %v95 = vld [vmem:[#allocation5 + $0x28] sm:$0xff]
    %v96 = vld [vmem:[#allocation5 + $0x30] sm:$0xff]
    %v97 = vld [vmem:[#allocation5 + $0x38] sm:$0xff]
    %v98 = vld [vmem:[#allocation5 + $0x40] sm:$0xff]
    %v99 = vld [vmem:[#allocation5 + $0x48] sm:$0xff]
    %v100 = vld [vmem:[#allocation5 + $0x50] sm:$0xff]
    %v101 = vld [vmem:[#allocation5 + $0x58] sm:$0xff]
    %v102 = vld [vmem:[#allocation5 + $0x60] sm:$0xff]
    %v103 = vld [vmem:[#allocation5 + $0x68] sm:$0xff]
    %v104 = vld [vmem:[#allocation5 + $0x70] sm:$0xff]
    %v105 = vld [vmem:[#allocation5 + $0x78] sm:$0xff]
    %v106 = vld [vmem:[#allocation5 + $0x80] sm:$0xff]
    %v107 = vld [vmem:[#allocation5 + $0x88] sm:$0xff]
    %v108 = vld [vmem:[#allocation5 + $0x90] sm:$0xff]
    %v109 = vld [vmem:[#allocation5 + $0x98] sm:$0xff]
    %v110 = vld [vmem:[#allocation5 + $0xa0] sm:$0xff]
    %v111 = vld [vmem:[#allocation5 + $0xa8] sm:$0xff]
    %v112 = vld [vmem:[#allocation5 + $0xb0] sm:$0xff]
    %v113 = vld [vmem:[#allocation5 + $0xb8] sm:$0xff]
    %v114 = vld [vmem:[#allocation5 + $0xc0] sm:$0xff]
    %v115 = vld [vmem:[#allocation5 + $0xc8] sm:$0xff]
    %v116 = vld [vmem:[#allocation5 + $0xd0] sm:$0xff]
    %v117 = vld [vmem:[#allocation5 + $0xd8] sm:$0xff]
    %v118 = vld [vmem:[#allocation5 + $0xe0] sm:$0xff]
    %v119 = vld [vmem:[#allocation5 + $0xe8] sm:$0xff]
    %v120 = vld [vmem:[#allocation5 + $0xf0] sm:$0xff]
    %v121 = vld [vmem:[#allocation5 + $0xf8] sm:$0xff]
    %v122 = vld [vmem:[#allocation5 + $0x100] sm:$0xff]
    %v123 = vld [vmem:[#allocation5 + $0x108] sm:$0xff]
    %v124 = vld [vmem:[#allocation5 + $0x110] sm:$0xff]
    %v125 = vld [vmem:[#allocation5 + $0x118] sm:$0xff]
    %v126 = vld [vmem:[#allocation5 + $0x120] sm:$0xff]
    %v127 = vld [vmem:[#allocation5 + $0x128] sm:$0xff]
    %v128 = vld [vmem:[#allocation5 + $0x130] sm:$0xff]
    %v129 = vld [vmem:[#allocation5 + $0x138] sm:$0xff]
    %v130 = vld [vmem:[#allocation5 + $0x140] sm:$0xff]
    %v131 = vld [vmem:[#allocation5 + $0x148] sm:$0xff]
    %v132 = vld [vmem:[#allocation5 + $0x150] sm:$0xff]
    %v133 = vld [vmem:[#allocation5 + $0x158] sm:$0xff]
    %v134 = vld [vmem:[#allocation5 + $0x160] sm:$0xff]
    %v135 = vld [vmem:[#allocation5 + $0x168] sm:$0xff]
    %v136 = vld [vmem:[#allocation5 + $0x170] sm:$0xff]
    %v137 = vld [vmem:[#allocation5 + $0x178] sm:$0xff]
    %v138 = vld [vmem:[#allocation5 + $0x180] sm:$0xff]
    %v139 = vld [vmem:[#allocation5 + $0x188] sm:$0xff]
    %v140 = vld [vmem:[#allocation5 + $0x190] sm:$0xff]
    %v141 = vld [vmem:[#allocation5 + $0x198] sm:$0xff]
    %v142 = vld [vmem:[#allocation5 + $0x1a0] sm:$0xff]
    %v143 = vld [vmem:[#allocation5 + $0x1a8] sm:$0xff]
    %v144 = vld [vmem:[#allocation5 + $0x1b0] sm:$0xff]
    %v145 = vld [vmem:[#allocation5 + $0x1b8] sm:$0xff]
    %v146 = vld [vmem:[#allocation5 + $0x1c0] sm:$0xff]
    %v147 = vld [vmem:[#allocation5 + $0x1c8] sm:$0xff]
    %v148 = vld [vmem:[#allocation5 + $0x1d0] sm:$0xff]
    %v149 = vld [vmem:[#allocation5 + $0x1d8] sm:$0xff]
    %v150 = vld [vmem:[#allocation5 + $0x1e0] sm:$0xff]
    %v151 = vld [vmem:[#allocation5 + $0x1e8] sm:$0xff]
    %v152 = vld [vmem:[#allocation5 + $0x1f0] sm:$0xff]
    %v153 = vld [vmem:[#allocation5 + $0x1f8] sm:$0xff]
    %v154 = vld [vmem:[#allocation5 + $0x200] sm:$0xff]
    %v155 = vld [vmem:[#allocation5 + $0x208] sm:$0xff]
    %v156 = vld [vmem:[#allocation5 + $0x210] sm:$0xff]
    %v157 = vld [vmem:[#allocation5 + $0x218] sm:$0xff]
    %v158 = vld [vmem:[#allocation5 + $0x220] sm:$0xff]
    %v159 = vld [vmem:[#allocation5 + $0x228] sm:$0xff]
    %v160 = vld [vmem:[#allocation5 + $0x230] sm:$0xff]
    %v161 = vld [vmem:[#allocation5 + $0x238] sm:$0xff]
    %v162 = vld [vmem:[#allocation5 + $0x240] sm:$0xff]
    %v163 = vld [vmem:[#allocation5 + $0x248] sm:$0xff]
    %v164 = vld [vmem:[#allocation5 + $0x250] sm:$0xff]
    %v165 = vld [vmem:[#allocation5 + $0x258] sm:$0xff]
    %v166 = vld [vmem:[#allocation5 + $0x260] sm:$0xff]
    %v167 = vld [vmem:[#allocation5 + $0x268] sm:$0xff]
    %v168 = vld [vmem:[#allocation5 + $0x270] sm:$0xff]
    %v169 = vld [vmem:[#allocation5 + $0x278] sm:$0xff]
    %v170 = vld [vmem:[#allocation5 + $0x280] sm:$0xff]
    %v171 = vld [vmem:[#allocation5 + $0x288] sm:$0xff]
    %v172 = vld [vmem:[#allocation5 + $0x290] sm:$0xff]
    %v173 = vld [vmem:[#allocation5 + $0x298] sm:$0xff]
    %v174 = vld [vmem:[#allocation5 + $0x2a0] sm:$0xff]
    %v175 = vld [vmem:[#allocation5 + $0x2a8] sm:$0xff]
    %v176 = vld [vmem:[#allocation5 + $0x2b0] sm:$0xff]
    %v177 = vld [vmem:[#allocation5 + $0x2b8] sm:$0xff]
    %v178 = vld [vmem:[#allocation5 + $0x2c0] sm:$0xff]
    %v179 = vld [vmem:[#allocation5 + $0x2c8] sm:$0xff]
    %v180 = vld [vmem:[#allocation5 + $0x2d0] sm:$0xff]
    %v181 = vld [vmem:[#allocation5 + $0x2d8] sm:$0xff]
    %v182 = vld [vmem:[#allocation5 + $0x2e0] sm:$0xff]
    %v183 = vld [vmem:[#allocation5 + $0x2e8] sm:$0xff]
    %v184 = vld [vmem:[#allocation5 + $0x2f0] sm:$0xff]
    %v185 = vld [vmem:[#allocation5 + $0x2f8] sm:$0xff]
    %v186 = vld [vmem:[#allocation5 + $0x300] sm:$0xff]
    %v187 = vld [vmem:[#allocation5 + $0x308] sm:$0xff]
    %v188 = vld [vmem:[#allocation5 + $0x310] sm:$0xff]
    %v189 = vld [vmem:[#allocation5 + $0x318] sm:$0xff]
    %v190 = vld [vmem:[#allocation5 + $0x320] sm:$0xff]
    %v191 = vld [vmem:[#allocation5 + $0x328] sm:$0xff]
    %v192 = vld [vmem:[#allocation5 + $0x330] sm:$0xff]
    %v193 = vld [vmem:[#allocation5 + $0x338] sm:$0xff]
    %v194 = vld [vmem:[#allocation5 + $0x340] sm:$0xff]
    %v195 = vld [vmem:[#allocation5 + $0x348] sm:$0xff]
    %v196 = vld [vmem:[#allocation5 + $0x350] sm:$0xff]
    %v197 = vld [vmem:[#allocation5 + $0x358] sm:$0xff]
    %v198 = vld [vmem:[#allocation5 + $0x360] sm:$0xff]
    %v199 = vld [vmem:[#allocation5 + $0x368] sm:$0xff]
    %v200 = vld [vmem:[#allocation5 + $0x370] sm:$0xff]
    %v201 = vld [vmem:[#allocation5 + $0x378] sm:$0xff]
    %v202 = vld [vmem:[#allocation5 + $0x380] sm:$0xff]
    %v203 = vld [vmem:[#allocation5 + $0x388] sm:$0xff]
    %v204 = vld [vmem:[#allocation5 + $0x390] sm:$0xff]
    %v205 = vld [vmem:[#allocation5 + $0x398] sm:$0xff]
    %v206 = vld [vmem:[#allocation5 + $0x3a0] sm:$0xff]
    %v207 = vld [vmem:[#allocation5 + $0x3a8] sm:$0xff]
    %v208 = vld [vmem:[#allocation5 + $0x3b0] sm:$0xff]
    %v209 = vld [vmem:[#allocation5 + $0x3b8] sm:$0xff]
    %v210 = vld [vmem:[#allocation5 + $0x3c0] sm:$0xff]
    %v211 = vld [vmem:[#allocation5 + $0x3c8] sm:$0xff]
    %v212 = vld [vmem:[#allocation5 + $0x3d0] sm:$0xff]
    %v213 = vld [vmem:[#allocation5 + $0x3d8] sm:$0xff]
    %v214 = vld [vmem:[#allocation5 + $0x3e0] sm:$0xff]
    %v215 = vld [vmem:[#allocation5 + $0x3e8] sm:$0xff]
    %v216 = vld [vmem:[#allocation5 + $0x3f0] sm:$0xff]
    %v217 = vld [vmem:[#allocation5 + $0x3f8] sm:$0xff]
    %v218 = vld [vmem:[#allocation5 + $0x400] sm:$0xff]
    %v219 = vld [vmem:[#allocation5 + $0x408] sm:$0xff]
    %v220 = vld [vmem:[#allocation5 + $0x410] sm:$0xff]
    %v221 = vld [vmem:[#allocation5 + $0x418] sm:$0xff]
    %v222 = vld [vmem:[#allocation5 + $0x420] sm:$0xff]
    %v223 = vld [vmem:[#allocation5 + $0x428] sm:$0xff]
    %v224 = vld [vmem:[#allocation5 + $0x430] sm:$0xff]
    %v225 = vld [vmem:[#allocation5 + $0x438] sm:$0xff]
    %v226 = vld [vmem:[#allocation5 + $0x440] sm:$0xff]
    %v227 = vld [vmem:[#allocation5 + $0x448] sm:$0xff]
    %v228 = vld [vmem:[#allocation5 + $0x450] sm:$0xff]
    %v229 = vld [vmem:[#allocation5 + $0x458] sm:$0xff]
    %v230 = vld [vmem:[#allocation5 + $0x460] sm:$0xff]
    %v231 = vld [vmem:[#allocation5 + $0x468] sm:$0xff]
    %v232 = vld [vmem:[#allocation5 + $0x470] sm:$0xff]
    %v233 = vld [vmem:[#allocation5 + $0x478] sm:$0xff]
    %v234 = vld [vmem:[#allocation5 + $0x480] sm:$0xff]
    %v235 = vld [vmem:[#allocation5 + $0x488] sm:$0xff]
    %v236 = vld [vmem:[#allocation5 + $0x490] sm:$0xff]
    %v237 = vld [vmem:[#allocation5 + $0x498] sm:$0xff]
    %v238 = vld [vmem:[#allocation5 + $0x4a0] sm:$0xff]
    %v239 = vld [vmem:[#allocation5 + $0x4a8] sm:$0xff]
    %v240 = vld [vmem:[#allocation5 + $0x4b0] sm:$0xff]
    %v241 = vld [vmem:[#allocation5 + $0x4b8] sm:$0xff]
    %v242 = vld [vmem:[#allocation5 + $0x4c0] sm:$0xff]
    %v243 = vld [vmem:[#allocation5 + $0x4c8] sm:$0xff]
    %v244 = vld [vmem:[#allocation5 + $0x4d0] sm:$0xff]
    %v245 = vld [vmem:[#allocation5 + $0x4d8] sm:$0xff]
    %v246 = vld [vmem:[#allocation5 + $0x4e0] sm:$0xff]
    %v247 = vld [vmem:[#allocation5 + $0x4e8] sm:$0xff]
    %v248 = vld [vmem:[#allocation5 + $0x4f0] sm:$0xff]
    %v249 = vld [vmem:[#allocation5 + $0x4f8] sm:$0xff]
    %v250 = vld [vmem:[#allocation5 + $0x500] sm:$0xff]
    %v251 = vld [vmem:[#allocation5 + $0x508] sm:$0xff]
    %v252 = vld [vmem:[#allocation5 + $0x510] sm:$0xff]
    %v253 = vld [vmem:[#allocation5 + $0x518] sm:$0xff]
    %v254 = vld [vmem:[#allocation5 + $0x520] sm:$0xff]
    %v255 = vld [vmem:[#allocation5 + $0x528] sm:$0xff]
    %v256 = vld [vmem:[#allocation5 + $0x530] sm:$0xff]
    %v257 = vld [vmem:[#allocation5 + $0x538] sm:$0xff]
    %v258 = vld [vmem:[#allocation5 + $0x540] sm:$0xff]
    %v259 = vld [vmem:[#allocation5 + $0x548] sm:$0xff]
    %v260 = vld [vmem:[#allocation5 + $0x550] sm:$0xff]
    %v261 = vld [vmem:[#allocation5 + $0x558] sm:$0xff]
    %v262 = vld [vmem:[#allocation5 + $0x560] sm:$0xff]
    %v263 = vld [vmem:[#allocation5 + $0x568] sm:$0xff]
    %v264 = vld [vmem:[#allocation5 + $0x570] sm:$0xff]
    %v265 = vld [vmem:[#allocation5 + $0x578] sm:$0xff]
    %v266 = vld [vmem:[#allocation5 + $0x580] sm:$0xff]
    %v267 = vld [vmem:[#allocation5 + $0x588] sm:$0xff]
    %v268 = vld [vmem:[#allocation5 + $0x590] sm:$0xff]
    %v269 = vld [vmem:[#allocation5 + $0x598] sm:$0xff]
    %v270 = vld [vmem:[#allocation5 + $0x5a0] sm:$0xff]
    %v271 = vld [vmem:[#allocation5 + $0x5a8] sm:$0xff]
    %v272 = vld [vmem:[#allocation5 + $0x5b0] sm:$0xff]
    %v273 = vld [vmem:[#allocation5 + $0x5b8] sm:$0xff]
    %v274 = vld [vmem:[#allocation5 + $0x5c0] sm:$0xff]
    %v275 = vld [vmem:[#allocation5 + $0x5c8] sm:$0xff]
    %v276 = vld [vmem:[#allocation5 + $0x5d0] sm:$0xff]
    %v277 = vld [vmem:[#allocation5 + $0x5d8] sm:$0xff]
    %v278 = vld [vmem:[#allocation5 + $0x5e0] sm:$0xff]
    %v279 = vld [vmem:[#allocation5 + $0x5e8] sm:$0xff]
    %v280 = vld [vmem:[#allocation5 + $0x5f0] sm:$0xff]
    %v281 = vld [vmem:[#allocation5 + $0x5f8] sm:$0xff]
    %v282 = vld [vmem:[#allocation5 + $0x600] sm:$0xff]
    %v283 = vld [vmem:[#allocation5 + $0x608] sm:$0xff]
    %v284 = vld [vmem:[#allocation5 + $0x610] sm:$0xff]
    %v285 = vld [vmem:[#allocation5 + $0x618] sm:$0xff]
    %v286 = vld [vmem:[#allocation5 + $0x620] sm:$0xff]
    %v287 = vld [vmem:[#allocation5 + $0x628] sm:$0xff]
    %v288 = vld [vmem:[#allocation5 + $0x630] sm:$0xff]
    %v289 = vld [vmem:[#allocation5 + $0x638] sm:$0xff]
    %v290 = vld [vmem:[#allocation5 + $0x640] sm:$0xff]
    %v291 = vld [vmem:[#allocation5 + $0x648] sm:$0xff]
    %v292 = vld [vmem:[#allocation5 + $0x650] sm:$0xff]
    %v293 = vld [vmem:[#allocation5 + $0x658] sm:$0xff]
    %v294 = vld [vmem:[#allocation5 + $0x660] sm:$0xff]
    %v295 = vld [vmem:[#allocation5 + $0x668] sm:$0xff]
    %v296 = vld [vmem:[#allocation5 + $0x670] sm:$0xff]
    %v297 = vld [vmem:[#allocation5 + $0x678] sm:$0xff]
    %v298 = vld [vmem:[#allocation5 + $0x680] sm:$0xff]
    %v299 = vld [vmem:[#allocation5 + $0x688] sm:$0xff]
    %v300 = vld [vmem:[#allocation5 + $0x690] sm:$0xff]
    %v301 = vld [vmem:[#allocation5 + $0x698] sm:$0xff]
    %v302 = vld [vmem:[#allocation5 + $0x6a0] sm:$0xff]
    %v303 = vld [vmem:[#allocation5 + $0x6a8] sm:$0xff]
    %v304 = vld [vmem:[#allocation5 + $0x6b0] sm:$0xff]
    %v305 = vld [vmem:[#allocation5 + $0x6b8] sm:$0xff]
    %v306 = vld [vmem:[#allocation5 + $0x6c0] sm:$0xff]
    %v307 = vld [vmem:[#allocation5 + $0x6c8] sm:$0xff]
    %v308 = vld [vmem:[#allocation5 + $0x6d0] sm:$0xff]
    %v309 = vld [vmem:[#allocation5 + $0x6d8] sm:$0xff]
    %v310 = vld [vmem:[#allocation5 + $0x6e0] sm:$0xff]
    %v311 = vld [vmem:[#allocation5 + $0x6e8] sm:$0xff]
    %v312 = vld [vmem:[#allocation5 + $0x6f0] sm:$0xff]
    %v313 = vld [vmem:[#allocation5 + $0x6f8] sm:$0xff]
    %v314 = vld [vmem:[#allocation5 + $0x700] sm:$0xff]
    %v315 = vld [vmem:[#allocation5 + $0x708] sm:$0xff]
    %v316 = vld [vmem:[#allocation5 + $0x710] sm:$0xff]
    %v317 = vld [vmem:[#allocation5 + $0x718] sm:$0xff]
    %v318 = vld [vmem:[#allocation5 + $0x720] sm:$0xff]
    %v319 = vld [vmem:[#allocation5 + $0x728] sm:$0xff]
    %v320 = vld [vmem:[#allocation5 + $0x730] sm:$0xff]
    %v321 = vld [vmem:[#allocation5 + $0x738] sm:$0xff]
    %v322 = vld [vmem:[#allocation5 + $0x740] sm:$0xff]
    %v323 = vld [vmem:[#allocation5 + $0x748] sm:$0xff]
    %v324 = vld [vmem:[#allocation5 + $0x750] sm:$0xff]
    %v325 = vld [vmem:[#allocation5 + $0x758] sm:$0xff]
    %v326 = vld [vmem:[#allocation5 + $0x760] sm:$0xff]
    %v327 = vld [vmem:[#allocation5 + $0x768] sm:$0xff]
    %v328 = vld [vmem:[#allocation5 + $0x770] sm:$0xff]
    %v329 = vld [vmem:[#allocation5 + $0x778] sm:$0xff]
    %v330 = vld [vmem:[#allocation5 + $0x780] sm:$0xff]
    %v331 = vld [vmem:[#allocation5 + $0x788] sm:$0xff]
    %v332 = vld [vmem:[#allocation5 + $0x790] sm:$0xff]
    %v333 = vld [vmem:[#allocation5 + $0x798] sm:$0xff]
    %v334 = vld [vmem:[#allocation5 + $0x7a0] sm:$0xff]
    %v335 = vld [vmem:[#allocation5 + $0x7a8] sm:$0xff]
    %v336 = vld [vmem:[#allocation5 + $0x7b0] sm:$0xff]
    %v337 = vld [vmem:[#allocation5 + $0x7b8] sm:$0xff]
    %v338 = vld [vmem:[#allocation5 + $0x7c0] sm:$0xff]
    %v339 = vld [vmem:[#allocation5 + $0x7c8] sm:$0xff]
    %v340 = vld [vmem:[#allocation5 + $0x7d0] sm:$0xff]
    %v341 = vld [vmem:[#allocation5 + $0x7d8] sm:$0xff]
    %v342 = vld [vmem:[#allocation5 + $0x7e0] sm:$0xff]
    %v343 = vld [vmem:[#allocation5 + $0x7e8] sm:$0xff]
    %v344 = vld [vmem:[#allocation5 + $0x7f0] sm:$0xff]
    %v345 = vld [vmem:[#allocation5 + $0x7f8] sm:$0xff]
    %v346 = vld [vmem:[#allocation5 + $0x800] sm:$0xff]
    %v347 = vld [vmem:[#allocation5 + $0x808] sm:$0xff]
    %v348 = vld [vmem:[#allocation5 + $0x810] sm:$0xff]
    %v349 = vld [vmem:[#allocation5 + $0x818] sm:$0xff]
    %v350 = vld [vmem:[#allocation5 + $0x820] sm:$0xff]
    %v351 = vld [vmem:[#allocation5 + $0x828] sm:$0xff]
    %v352 = vld [vmem:[#allocation5 + $0x830] sm:$0xff]
    %v353 = vld [vmem:[#allocation5 + $0x838] sm:$0xff]
    %v354 = vld [vmem:[#allocation5 + $0x840] sm:$0xff]
    %v355 = vld [vmem:[#allocation5 + $0x848] sm:$0xff]
    %v356 = vld [vmem:[#allocation5 + $0x850] sm:$0xff]
    %v357 = vld [vmem:[#allocation5 + $0x858] sm:$0xff]
    %v358 = vld [vmem:[#allocation5 + $0x860] sm:$0xff]
    %v359 = vld [vmem:[#allocation5 + $0x868] sm:$0xff]
    %v360 = vld [vmem:[#allocation5 + $0x870] sm:$0xff]
    %v361 = vld [vmem:[#allocation5 + $0x878] sm:$0xff]
    %v362 = vld [vmem:[#allocation5 + $0x880] sm:$0xff]
    %v363 = vld [vmem:[#allocation5 + $0x888] sm:$0xff]
    %v364 = vld [vmem:[#allocation5 + $0x890] sm:$0xff]
    %v365 = vld [vmem:[#allocation5 + $0x898] sm:$0xff]
    %v366 = vld [vmem:[#allocation5 + $0x8a0] sm:$0xff]
    %v367 = vld [vmem:[#allocation5 + $0x8a8] sm:$0xff]
    %v368 = vld [vmem:[#allocation5 + $0x8b0] sm:$0xff]
    %v369 = vld [vmem:[#allocation5 + $0x8b8] sm:$0xff]
    %v370 = vld [vmem:[#allocation5 + $0x8c0] sm:$0xff]
    %v371 = vld [vmem:[#allocation5 + $0x8c8] sm:$0xff]
    %v372 = vld [vmem:[#allocation5 + $0x8d0] sm:$0xff]
    %v373 = vld [vmem:[#allocation5 + $0x8d8] sm:$0xff]
    %v374 = vld [vmem:[#allocation5 + $0x8e0] sm:$0xff]
    %v375 = vld [vmem:[#allocation5 + $0x8e8] sm:$0xff]
    %v376 = vld [vmem:[#allocation5 + $0x8f0] sm:$0xff]
    %v377 = vld [vmem:[#allocation5 + $0x8f8] sm:$0xff]
    %v378 = vld [vmem:[#allocation5 + $0x900] sm:$0xff]
    %v379 = vld [vmem:[#allocation5 + $0x908] sm:$0xff]
    %v380 = vld [vmem:[#allocation5 + $0x910] sm:$0xff]
    %v381 = vld [vmem:[#allocation5 + $0x918] sm:$0xff]
    %v382 = vld [vmem:[#allocation5 + $0x920] sm:$0xff]
    %v383 = vld [vmem:[#allocation5 + $0x928] sm:$0xff]
    %v384 = vld [vmem:[#allocation5 + $0x930] sm:$0xff]
    %v385 = vld [vmem:[#allocation5 + $0x938] sm:$0xff]
    %v386 = vld [vmem:[#allocation5 + $0x940] sm:$0xff]
    %v387 = vld [vmem:[#allocation5 + $0x948] sm:$0xff]
    %v388 = vld [vmem:[#allocation5 + $0x950] sm:$0xff]
    %v389 = vld [vmem:[#allocation5 + $0x958] sm:$0xff]
    %v390 = vld [vmem:[#allocation5 + $0x960] sm:$0xff]
    %v391 = vld [vmem:[#allocation5 + $0x968] sm:$0xff]
    %v392 = vld [vmem:[#allocation5 + $0x970] sm:$0xff]
    %v393 = vld [vmem:[#allocation5 + $0x978] sm:$0xff]
    %v394 = vld [vmem:[#allocation5 + $0x980] sm:$0xff]
    %v395 = vld [vmem:[#allocation5 + $0x988] sm:$0xff]
    %v396 = vld [vmem:[#allocation5 + $0x990] sm:$0xff]
    %v397 = vld [vmem:[#allocation5 + $0x998] sm:$0xff]
    %v398 = vld [vmem:[#allocation5 + $0x9a0] sm:$0xff]
    %v399 = vld [vmem:[#allocation5 + $0x9a8] sm:$0xff]
    %v400 = vld [vmem:[#allocation5 + $0x9b0] sm:$0xff]
    %v401 = vld [vmem:[#allocation5 + $0x9b8] sm:$0xff]
    %v402 = vld [vmem:[#allocation5 + $0x9c0] sm:$0xff]
    %v403 = vld [vmem:[#allocation5 + $0x9c8] sm:$0xff]
    %v404 = vld [vmem:[#allocation5 + $0x9d0] sm:$0xff]
    %v405 = vld [vmem:[#allocation5 + $0x9d8] sm:$0xff]
    %v406 = vld [vmem:[#allocation5 + $0x9e0] sm:$0xff]
    %v407 = vld [vmem:[#allocation5 + $0x9e8] sm:$0xff]
    %v408 = vld [vmem:[#allocation5 + $0x9f0] sm:$0xff]
    %v409 = vld [vmem:[#allocation5 + $0x9f8] sm:$0xff]
    %v410 = vld [vmem:[#allocation5 + $0xa00] sm:$0xff]
    %v411 = vld [vmem:[#allocation5 + $0xa08] sm:$0xff]
    %v412 = vld [vmem:[#allocation5 + $0xa10] sm:$0xff]
    %v413 = vld [vmem:[#allocation5 + $0xa18] sm:$0xff]
    %v414 = vld [vmem:[#allocation5 + $0xa20] sm:$0xff]
    %v415 = vld [vmem:[#allocation5 + $0xa28] sm:$0xff]
    %v416 = vld [vmem:[#allocation5 + $0xa30] sm:$0xff]
    %v417 = vld [vmem:[#allocation5 + $0xa38] sm:$0xff]
    %v418 = vld [vmem:[#allocation5 + $0xa40] sm:$0xff]
    %v419 = vld [vmem:[#allocation5 + $0xa48] sm:$0xff]
    %v420 = vld [vmem:[#allocation5 + $0xa50] sm:$0xff]
    %v421 = vld [vmem:[#allocation5 + $0xa58] sm:$0xff]
    %v422 = vld [vmem:[#allocation5 + $0xa60] sm:$0xff]
    %v423 = vld [vmem:[#allocation5 + $0xa68] sm:$0xff]
    %v424 = vld [vmem:[#allocation5 + $0xa70] sm:$0xff]
    %v425 = vld [vmem:[#allocation5 + $0xa78] sm:$0xff]
    %v426 = vld [vmem:[#allocation5 + $0xa80] sm:$0xff]
    %v427 = vld [vmem:[#allocation5 + $0xa88] sm:$0xff]
    %v428 = vld [vmem:[#allocation5 + $0xa90] sm:$0xff]
    %v429 = vld [vmem:[#allocation5 + $0xa98] sm:$0xff]
    %v430 = vld [vmem:[#allocation5 + $0xaa0] sm:$0xff]
    %v431 = vld [vmem:[#allocation5 + $0xaa8] sm:$0xff]
    %v432 = vld [vmem:[#allocation5 + $0xab0] sm:$0xff]
    %v433 = vld [vmem:[#allocation5 + $0xab8] sm:$0xff]
    %v434 = vld [vmem:[#allocation5 + $0xac0] sm:$0xff]
    %v435 = vld [vmem:[#allocation5 + $0xac8] sm:$0xff]
    %v436 = vld [vmem:[#allocation5 + $0xad0] sm:$0xff]
    %v437 = vld [vmem:[#allocation5 + $0xad8] sm:$0xff]
    %v438 = vld [vmem:[#allocation5 + $0xae0] sm:$0xff]
    %v439 = vld [vmem:[#allocation5 + $0xae8] sm:$0xff]
    %v440 = vld [vmem:[#allocation5 + $0xaf0] sm:$0xff]
    %v441 = vld [vmem:[#allocation5 + $0xaf8] sm:$0xff]
    %v442 = vld [vmem:[#allocation5 + $0xb00] sm:$0xff]
    %v443 = vld [vmem:[#allocation5 + $0xb08] sm:$0xff]
    %v444 = vld [vmem:[#allocation5 + $0xb10] sm:$0xff]
    %v445 = vld [vmem:[#allocation5 + $0xb18] sm:$0xff]
    %v446 = vld [vmem:[#allocation5 + $0xb20] sm:$0xff]
    %v447 = vld [vmem:[#allocation5 + $0xb28] sm:$0xff]
    %v448 = vld [vmem:[#allocation5 + $0xb30] sm:$0xff]
    %v449 = vld [vmem:[#allocation5 + $0xb38] sm:$0xff]
    %v450 = vld [vmem:[#allocation5 + $0xb40] sm:$0xff]
    %v451 = vld [vmem:[#allocation5 + $0xb48] sm:$0xff]
    %v452 = vld [vmem:[#allocation5 + $0xb50] sm:$0xff]
    %v453 = vld [vmem:[#allocation5 + $0xb58] sm:$0xff]
    %v454 = vld [vmem:[#allocation5 + $0xb60] sm:$0xff]
    %v455 = vld [vmem:[#allocation5 + $0xb68] sm:$0xff]
    %v456 = vld [vmem:[#allocation5 + $0xb70] sm:$0xff]
    %v457 = vld [vmem:[#allocation5 + $0xb78] sm:$0xff]
    %v458 = vld [vmem:[#allocation5 + $0xb80] sm:$0xff]
    %v459 = vld [vmem:[#allocation5 + $0xb88] sm:$0xff]
    %v460 = vld [vmem:[#allocation5 + $0xb90] sm:$0xff]
    %v461 = vld [vmem:[#allocation5 + $0xb98] sm:$0xff]
    %v462 = vld [vmem:[#allocation5 + $0xba0] sm:$0xff]
    %v463 = vld [vmem:[#allocation5 + $0xba8] sm:$0xff]
    %v464 = vld [vmem:[#allocation5 + $0xbb0] sm:$0xff]
    %v465 = vld [vmem:[#allocation5 + $0xbb8] sm:$0xff]
    %v466 = vld [vmem:[#allocation5 + $0xbc0] sm:$0xff]
    %v467 = vld [vmem:[#allocation5 + $0xbc8] sm:$0xff]
    %v468 = vld [vmem:[#allocation5 + $0xbd0] sm:$0xff]
    %v469 = vld [vmem:[#allocation5 + $0xbd8] sm:$0xff]
    %v470 = vld [vmem:[#allocation5 + $0xbe0] sm:$0xff]
    %v471 = vld [vmem:[#allocation5 + $0xbe8] sm:$0xff]
    %v472 = vld [vmem:[#allocation5 + $0xbf0] sm:$0xff]
    %v473 = vld [vmem:[#allocation5 + $0xbf8] sm:$0xff]
    %v474 = vld [vmem:[#allocation5 + $0xc00] sm:$0xff]
    %v475 = vld [vmem:[#allocation5 + $0xc08] sm:$0xff]
    %v476 = vld [vmem:[#allocation5 + $0xc10] sm:$0xff]
    %v477 = vld [vmem:[#allocation5 + $0xc18] sm:$0xff]
    %v478 = vld [vmem:[#allocation5 + $0xc20] sm:$0xff]
    %v479 = vld [vmem:[#allocation5 + $0xc28] sm:$0xff]
    %v480 = vld [vmem:[#allocation5 + $0xc30] sm:$0xff]
    %v481 = vld [vmem:[#allocation5 + $0xc38] sm:$0xff]
    %v482 = vld [vmem:[#allocation5 + $0xc40] sm:$0xff]
    %v483 = vld [vmem:[#allocation5 + $0xc48] sm:$0xff]
    %v484 = vld [vmem:[#allocation5 + $0xc50] sm:$0xff]
    %v485 = vld [vmem:[#allocation5 + $0xc58] sm:$0xff]
    %v486 = vld [vmem:[#allocation5 + $0xc60] sm:$0xff]
    %v487 = vld [vmem:[#allocation5 + $0xc68] sm:$0xff]
    %v488 = vld [vmem:[#allocation5 + $0xc70] sm:$0xff]
    %v489 = vld [vmem:[#allocation5 + $0xc78] sm:$0xff]
    %v490 = vld [vmem:[#allocation5 + $0xc80] sm:$0xff]
    %v491 = vld [vmem:[#allocation5 + $0xc88] sm:$0xff]
    %v492 = vld [vmem:[#allocation5 + $0xc90] sm:$0xff]
    %v493 = vld [vmem:[#allocation5 + $0xc98] sm:$0xff]
    %v494 = vld [vmem:[#allocation5 + $0xca0] sm:$0xff]
    %v495 = vld [vmem:[#allocation5 + $0xca8] sm:$0xff]
    %v496 = vld [vmem:[#allocation5 + $0xcb0] sm:$0xff]
    %v497 = vld [vmem:[#allocation5 + $0xcb8] sm:$0xff]
    %v498 = vld [vmem:[#allocation5 + $0xcc0] sm:$0xff]
    %v499 = vld [vmem:[#allocation5 + $0xcc8] sm:$0xff]
    %v500 = vld [vmem:[#allocation5 + $0xcd0] sm:$0xff]
    %v501 = vld [vmem:[#allocation5 + $0xcd8] sm:$0xff]
    %v502 = vld [vmem:[#allocation5 + $0xce0] sm:$0xff]
    %v503 = vld [vmem:[#allocation5 + $0xce8] sm:$0xff]
    %v504 = vld [vmem:[#allocation5 + $0xcf0] sm:$0xff]
    %v505 = vld [vmem:[#allocation5 + $0xcf8] sm:$0xff]
    %v506 = vld [vmem:[#allocation5 + $0xd00] sm:$0xff]
    %v507 = vld [vmem:[#allocation5 + $0xd08] sm:$0xff]
    %v508 = vld [vmem:[#allocation5 + $0xd10] sm:$0xff]
    %v509 = vld [vmem:[#allocation5 + $0xd18] sm:$0xff]
    %v510 = vld [vmem:[#allocation5 + $0xd20] sm:$0xff]
    %v511 = vld [vmem:[#allocation5 + $0xd28] sm:$0xff]
    %v512 = vld [vmem:[#allocation5 + $0xd30] sm:$0xff]
    %v513 = vld [vmem:[#allocation5 + $0xd38] sm:$0xff]
    %v514 = vld [vmem:[#allocation5 + $0xd40] sm:$0xff]
    %v515 = vld [vmem:[#allocation5 + $0xd48] sm:$0xff]
    %v516 = vld [vmem:[#allocation5 + $0xd50] sm:$0xff]
    %v517 = vld [vmem:[#allocation5 + $0xd58] sm:$0xff]
    %v518 = vld [vmem:[#allocation5 + $0xd60] sm:$0xff]
    %v519 = vld [vmem:[#allocation5 + $0xd68] sm:$0xff]
    %v520 = vld [vmem:[#allocation5 + $0xd70] sm:$0xff]
    %v521 = vld [vmem:[#allocation5 + $0xd78] sm:$0xff]
    %v522 = vld [vmem:[#allocation5 + $0xd80] sm:$0xff]
    %v523 = vld [vmem:[#allocation5 + $0xd88] sm:$0xff]
    %v524 = vld [vmem:[#allocation5 + $0xd90] sm:$0xff]
    %v525 = vld [vmem:[#allocation5 + $0xd98] sm:$0xff]
    %v526 = vld [vmem:[#allocation5 + $0xda0] sm:$0xff]
    %v527 = vld [vmem:[#allocation5 + $0xda8] sm:$0xff]
    %v528 = vld [vmem:[#allocation5 + $0xdb0] sm:$0xff]
    %v529 = vld [vmem:[#allocation5 + $0xdb8] sm:$0xff]
    %v530 = vld [vmem:[#allocation5 + $0xdc0] sm:$0xff]
    %v531 = vld [vmem:[#allocation5 + $0xdc8] sm:$0xff]
    %v532 = vld [vmem:[#allocation5 + $0xdd0] sm:$0xff]
    %v533 = vld [vmem:[#allocation5 + $0xdd8] sm:$0xff]
    %v534 = vld [vmem:[#allocation5 + $0xde0] sm:$0xff]
    %v535 = vld [vmem:[#allocation5 + $0xde8] sm:$0xff]
    %v536 = vld [vmem:[#allocation5 + $0xdf0] sm:$0xff]
    %v537 = vld [vmem:[#allocation5 + $0xdf8] sm:$0xff]
    %v538 = vld [vmem:[#allocation5 + $0xe00] sm:$0xff]
    %v539 = vld [vmem:[#allocation5 + $0xe08] sm:$0xff]
    %v540 = vld [vmem:[#allocation5 + $0xe10] sm:$0xff]
    %v541 = vld [vmem:[#allocation5 + $0xe18] sm:$0xff]
    %v542 = vld [vmem:[#allocation5 + $0xe20] sm:$0xff]
    %v543 = vld [vmem:[#allocation5 + $0xe28] sm:$0xff]
    %v544 = vld [vmem:[#allocation5 + $0xe30] sm:$0xff]
    %v545 = vld [vmem:[#allocation5 + $0xe38] sm:$0xff]
    %v546 = vld [vmem:[#allocation5 + $0xe40] sm:$0xff]
    %v547 = vld [vmem:[#allocation5 + $0xe48] sm:$0xff]
    %v548 = vld [vmem:[#allocation5 + $0xe50] sm:$0xff]
    %v549 = vld [vmem:[#allocation5 + $0xe58] sm:$0xff]
    %v550 = vld [vmem:[#allocation5 + $0xe60] sm:$0xff]
    %v551 = vld [vmem:[#allocation5 + $0xe68] sm:$0xff]
    %v552 = vld [vmem:[#allocation5 + $0xe70] sm:$0xff]
    %v553 = vld [vmem:[#allocation5 + $0xe78] sm:$0xff]
    %v554 = vld [vmem:[#allocation5 + $0xe80] sm:$0xff]
    %v555 = vld [vmem:[#allocation5 + $0xe88] sm:$0xff]
    %v556 = vld [vmem:[#allocation5 + $0xe90] sm:$0xff]
    %v557 = vld [vmem:[#allocation5 + $0xe98] sm:$0xff]
    %v558 = vld [vmem:[#allocation5 + $0xea0] sm:$0xff]
    %v559 = vld [vmem:[#allocation5 + $0xea8] sm:$0xff]
    %v560 = vld [vmem:[#allocation5 + $0xeb0] sm:$0xff]
    %v561 = vld [vmem:[#allocation5 + $0xeb8] sm:$0xff]
    %v562 = vld [vmem:[#allocation5 + $0xec0] sm:$0xff]
    %v563 = vld [vmem:[#allocation5 + $0xec8] sm:$0xff]
    %v564 = vld [vmem:[#allocation5 + $0xed0] sm:$0xff]
    %v565 = vld [vmem:[#allocation5 + $0xed8] sm:$0xff]
    %v566 = vld [vmem:[#allocation5 + $0xee0] sm:$0xff]
    %v567 = vld [vmem:[#allocation5 + $0xee8] sm:$0xff]
    %v568 = vld [vmem:[#allocation5 + $0xef0] sm:$0xff]
    %v569 = vld [vmem:[#allocation5 + $0xef8] sm:$0xff]
    %v570 = vld [vmem:[#allocation5 + $0xf00] sm:$0xff]
    %v571 = vld [vmem:[#allocation5 + $0xf08] sm:$0xff]
    %v572 = vld [vmem:[#allocation5 + $0xf10] sm:$0xff]
    %v573 = vld [vmem:[#allocation5 + $0xf18] sm:$0xff]
    %v574 = vld [vmem:[#allocation5 + $0xf20] sm:$0xff]
    %v575 = vld [vmem:[#allocation5 + $0xf28] sm:$0xff]
    %v576 = vld [vmem:[#allocation5 + $0xf30] sm:$0xff]
    %v577 = vld [vmem:[#allocation5 + $0xf38] sm:$0xff]
    %v578 = vld [vmem:[#allocation5 + $0xf40] sm:$0xff]
    %v579 = vld [vmem:[#allocation5 + $0xf48] sm:$0xff]
    %v580 = vld [vmem:[#allocation5 + $0xf50] sm:$0xff]
    %v581 = vld [vmem:[#allocation5 + $0xf58] sm:$0xff]
    %v582 = vld [vmem:[#allocation5 + $0xf60] sm:$0xff]
    %v583 = vld [vmem:[#allocation5 + $0xf68] sm:$0xff]
    %v584 = vld [vmem:[#allocation5 + $0xf70] sm:$0xff]
    %v585 = vld [vmem:[#allocation5 + $0xf78] sm:$0xff]
    %v586 = vld [vmem:[#allocation5 + $0xf80] sm:$0xff]
    %v587 = vld [vmem:[#allocation5 + $0xf88] sm:$0xff]
    %v588 = vld [vmem:[#allocation5 + $0xf90] sm:$0xff]
    %v589 = vld [vmem:[#allocation5 + $0xf98] sm:$0xff]
    %v590 = vld [vmem:[#allocation5 + $0xfa0] sm:$0xff]
    %v591 = vld [vmem:[#allocation5 + $0xfa8] sm:$0xff]
    %v592 = vld [vmem:[#allocation5 + $0xfb0] sm:$0xff]
    %v593 = vld [vmem:[#allocation5 + $0xfb8] sm:$0xff]
    %v594 = vld [vmem:[#allocation5 + $0xfc0] sm:$0xff]
    %v595 = vld [vmem:[#allocation5 + $0xfc8] sm:$0xff]
    %v596 = vld [vmem:[#allocation5 + $0xfd0] sm:$0xff]
    %v597 = vld [vmem:[#allocation5 + $0xfd8] sm:$0xff]
    %v598 = vld [vmem:[#allocation5 + $0xfe0] sm:$0xff]
    %v599 = vld [vmem:[#allocation5 + $0xfe8] sm:$0xff]
    %v600 = vld [vmem:[#allocation5 + $0xff0] sm:$0xff]
    %v601 = vld [vmem:[#allocation5 + $0xff8] sm:$0xff]
    %v602 = vld [vmem:[#allocation7] sm:$0xf]
    %v604 = vperm.slane %v602, 0
    %v605 = vperm.slane %v602, 1
    %v606 = vperm.slane %v602, 2
    %v607 = vperm.slane %v602, 3
    %v620 = vunpack.c.l.b16 %v82
    %v621 = vunpack.c.h.b16 %v82
    %v622 = vunpack.c.l.b16 %v83
    %v623 = vunpack.c.h.b16 %v83
    %v624 = vunpack.c.l.b16 %v84
    %v625 = vunpack.c.h.b16 %v84
    %v626 = vunpack.c.l.b16 %v85
    %v627 = vunpack.c.h.b16 %v85
    %v628 = vunpack.c.l.b16 %v86
    %v629 = vunpack.c.h.b16 %v86
    %v630 = vunpack.c.l.b16 %v87
    %v631 = vunpack.c.h.b16 %v87
    %v632 = vunpack.c.l.b16 %v88
    %v633 = vunpack.c.h.b16 %v88
    %v634 = vunpack.c.l.b16 %v89
    %v635 = vunpack.c.h.b16 %v89
    %v636 = vpack.c.b16 %v620, %v620
    %v637 = vpack.c.b16 %v621, %v621
    %v638 = vpack.c.b16 %v622, %v622
    %v639 = vpack.c.b16 %v623, %v623
    %v640 = vpack.c.b16 %v624, %v624
    %v641 = vpack.c.b16 %v625, %v625
    %v642 = vpack.c.b16 %v626, %v626
    %v643 = vpack.c.b16 %v627, %v627
    %v644 = vpack.c.b16 %v628, %v628
    %v645 = vpack.c.b16 %v629, %v629
    %v646 = vpack.c.b16 %v630, %v630
    %v647 = vpack.c.b16 %v631, %v631
    %v648 = vpack.c.b16 %v632, %v632
    %v649 = vpack.c.b16 %v633, %v633
    %v650 = vpack.c.b16 %v634, %v634
    %v651 = vpack.c.b16 %v635, %v635
    %v1180 = vunpack.c.l.b16 %v90
    %v1181 = vunpack.c.h.b16 %v90
    %v1182 = vunpack.c.l.b16 %v91
    %v1183 = vunpack.c.h.b16 %v91
    %v1184 = vunpack.c.l.b16 %v92
    %v1185 = vunpack.c.h.b16 %v92
    %v1186 = vunpack.c.l.b16 %v93
    %v1187 = vunpack.c.h.b16 %v93
    %v1188 = vunpack.c.l.b16 %v94
    %v1189 = vunpack.c.h.b16 %v94
    %v1190 = vunpack.c.l.b16 %v95
    %v1191 = vunpack.c.h.b16 %v95
    %v1192 = vunpack.c.l.b16 %v96
    %v1193 = vunpack.c.h.b16 %v96
    %v1194 = vunpack.c.l.b16 %v97
    %v1195 = vunpack.c.h.b16 %v97
    %v1196 = vunpack.c.l.b16 %v98
    %v1197 = vunpack.c.h.b16 %v98
    %v1198 = vunpack.c.l.b16 %v99
    %v1199 = vunpack.c.h.b16 %v99
    %v1200 = vunpack.c.l.b16 %v100
    %v1201 = vunpack.c.h.b16 %v100
    %v1202 = vunpack.c.l.b16 %v101
    %v1203 = vunpack.c.h.b16 %v101
    %v1204 = vunpack.c.l.b16 %v102
    %v1205 = vunpack.c.h.b16 %v102
    %v1206 = vunpack.c.l.b16 %v103
    %v1207 = vunpack.c.h.b16 %v103
    %v1208 = vunpack.c.l.b16 %v104
    %v1209 = vunpack.c.h.b16 %v104
    %v1210 = vunpack.c.l.b16 %v105
    %v1211 = vunpack.c.h.b16 %v105
    %v1212 = vunpack.c.l.b16 %v106
    %v1213 = vunpack.c.h.b16 %v106
    %v1214 = vunpack.c.l.b16 %v107
    %v1215 = vunpack.c.h.b16 %v107
    %v1216 = vunpack.c.l.b16 %v108
    %v1217 = vunpack.c.h.b16 %v108
    %v1218 = vunpack.c.l.b16 %v109
    %v1219 = vunpack.c.h.b16 %v109
    %v1220 = vunpack.c.l.b16 %v110
    %v1221 = vunpack.c.h.b16 %v110
    %v1222 = vunpack.c.l.b16 %v111
    %v1223 = vunpack.c.h.b16 %v111
    %v1224 = vunpack.c.l.b16 %v112
    %v1225 = vunpack.c.h.b16 %v112
    %v1226 = vunpack.c.l.b16 %v113
    %v1227 = vunpack.c.h.b16 %v113
    %v1228 = vunpack.c.l.b16 %v114
    %v1229 = vunpack.c.h.b16 %v114
    %v1230 = vunpack.c.l.b16 %v115
    %v1231 = vunpack.c.h.b16 %v115
    %v1232 = vunpack.c.l.b16 %v116
    %v1233 = vunpack.c.h.b16 %v116
    %v1234 = vunpack.c.l.b16 %v117
    %v1235 = vunpack.c.h.b16 %v117
    %v1236 = vunpack.c.l.b16 %v118
    %v1237 = vunpack.c.h.b16 %v118
    %v1238 = vunpack.c.l.b16 %v119
    %v1239 = vunpack.c.h.b16 %v119
    %v1240 = vunpack.c.l.b16 %v120
    %v1241 = vunpack.c.h.b16 %v120
    %v1242 = vunpack.c.l.b16 %v121
    %v1243 = vunpack.c.h.b16 %v121
    %v1244 = vunpack.c.l.b16 %v122
    %v1245 = vunpack.c.h.b16 %v122
    %v1246 = vunpack.c.l.b16 %v123
    %v1247 = vunpack.c.h.b16 %v123
    %v1248 = vunpack.c.l.b16 %v124
    %v1249 = vunpack.c.h.b16 %v124
    %v1250 = vunpack.c.l.b16 %v125
    %v1251 = vunpack.c.h.b16 %v125
    %v1252 = vunpack.c.l.b16 %v126
    %v1253 = vunpack.c.h.b16 %v126
    %v1254 = vunpack.c.l.b16 %v127
    %v1255 = vunpack.c.h.b16 %v127
    %v1256 = vunpack.c.l.b16 %v128
    %v1257 = vunpack.c.h.b16 %v128
    %v1258 = vunpack.c.l.b16 %v129
    %v1259 = vunpack.c.h.b16 %v129
    %v1260 = vunpack.c.l.b16 %v130
    %v1261 = vunpack.c.h.b16 %v130
    %v1262 = vunpack.c.l.b16 %v131
    %v1263 = vunpack.c.h.b16 %v131
    %v1264 = vunpack.c.l.b16 %v132
    %v1265 = vunpack.c.h.b16 %v132
    %v1266 = vunpack.c.l.b16 %v133
    %v1267 = vunpack.c.h.b16 %v133
    %v1268 = vunpack.c.l.b16 %v134
    %v1269 = vunpack.c.h.b16 %v134
    %v1270 = vunpack.c.l.b16 %v135
    %v1271 = vunpack.c.h.b16 %v135
    %v1272 = vunpack.c.l.b16 %v136
    %v1273 = vunpack.c.h.b16 %v136
    %v1274 = vunpack.c.l.b16 %v137
    %v1275 = vunpack.c.h.b16 %v137
    %v1276 = vunpack.c.l.b16 %v138
    %v1277 = vunpack.c.h.b16 %v138
    %v1278 = vunpack.c.l.b16 %v139
    %v1279 = vunpack.c.h.b16 %v139
    %v1280 = vunpack.c.l.b16 %v140
    %v1281 = vunpack.c.h.b16 %v140
    %v1282 = vunpack.c.l.b16 %v141
    %v1283 = vunpack.c.h.b16 %v141
    %v1284 = vunpack.c.l.b16 %v142
    %v1285 = vunpack.c.h.b16 %v142
    %v1286 = vunpack.c.l.b16 %v143
    %v1287 = vunpack.c.h.b16 %v143
    %v1288 = vunpack.c.l.b16 %v144
    %v1289 = vunpack.c.h.b16 %v144
    %v1290 = vunpack.c.l.b16 %v145
    %v1291 = vunpack.c.h.b16 %v145
    %v1292 = vunpack.c.l.b16 %v146
    %v1293 = vunpack.c.h.b16 %v146
    %v1294 = vunpack.c.l.b16 %v147
    %v1295 = vunpack.c.h.b16 %v147
    %v1296 = vunpack.c.l.b16 %v148
    %v1297 = vunpack.c.h.b16 %v148
    %v1298 = vunpack.c.l.b16 %v149
    %v1299 = vunpack.c.h.b16 %v149
    %v1300 = vunpack.c.l.b16 %v150
    %v1301 = vunpack.c.h.b16 %v150
    %v1302 = vunpack.c.l.b16 %v151
    %v1303 = vunpack.c.h.b16 %v151
    %v1304 = vunpack.c.l.b16 %v152
    %v1305 = vunpack.c.h.b16 %v152
    %v1306 = vunpack.c.l.b16 %v153
    %v1307 = vunpack.c.h.b16 %v153
    %v1308 = vunpack.c.l.b16 %v154
    %v1309 = vunpack.c.h.b16 %v154
    %v1310 = vunpack.c.l.b16 %v155
    %v1311 = vunpack.c.h.b16 %v155
    %v1312 = vunpack.c.l.b16 %v156
    %v1313 = vunpack.c.h.b16 %v156
    %v1314 = vunpack.c.l.b16 %v157
    %v1315 = vunpack.c.h.b16 %v157
    %v1316 = vunpack.c.l.b16 %v158
    %v1317 = vunpack.c.h.b16 %v158
    %v1318 = vunpack.c.l.b16 %v159
    %v1319 = vunpack.c.h.b16 %v159
    %v1320 = vunpack.c.l.b16 %v160
    %v1321 = vunpack.c.h.b16 %v160
    %v1322 = vunpack.c.l.b16 %v161
    %v1323 = vunpack.c.h.b16 %v161
    %v1324 = vunpack.c.l.b16 %v162
    %v1325 = vunpack.c.h.b16 %v162
    %v1326 = vunpack.c.l.b16 %v163
    %v1327 = vunpack.c.h.b16 %v163
    %v1328 = vunpack.c.l.b16 %v164
    %v1329 = vunpack.c.h.b16 %v164
    %v1330 = vunpack.c.l.b16 %v165
    %v1331 = vunpack.c.h.b16 %v165
    %v1332 = vunpack.c.l.b16 %v166
    %v1333 = vunpack.c.h.b16 %v166
    %v1334 = vunpack.c.l.b16 %v167
    %v1335 = vunpack.c.h.b16 %v167
    %v1336 = vunpack.c.l.b16 %v168
    %v1337 = vunpack.c.h.b16 %v168
    %v1338 = vunpack.c.l.b16 %v169
    %v1339 = vunpack.c.h.b16 %v169
    %v1340 = vunpack.c.l.b16 %v170
    %v1341 = vunpack.c.h.b16 %v170
    %v1342 = vunpack.c.l.b16 %v171
    %v1343 = vunpack.c.h.b16 %v171
    %v1344 = vunpack.c.l.b16 %v172
    %v1345 = vunpack.c.h.b16 %v172
    %v1346 = vunpack.c.l.b16 %v173
    %v1347 = vunpack.c.h.b16 %v173
    %v1348 = vunpack.c.l.b16 %v174
    %v1349 = vunpack.c.h.b16 %v174
    %v1350 = vunpack.c.l.b16 %v175
    %v1351 = vunpack.c.h.b16 %v175
    %v1352 = vunpack.c.l.b16 %v176
    %v1353 = vunpack.c.h.b16 %v176
    %v1354 = vunpack.c.l.b16 %v177
    %v1355 = vunpack.c.h.b16 %v177
    %v1356 = vunpack.c.l.b16 %v178
    %v1357 = vunpack.c.h.b16 %v178
    %v1358 = vunpack.c.l.b16 %v179
    %v1359 = vunpack.c.h.b16 %v179
    %v1360 = vunpack.c.l.b16 %v180
    %v1361 = vunpack.c.h.b16 %v180
    %v1362 = vunpack.c.l.b16 %v181
    %v1363 = vunpack.c.h.b16 %v181
    %v1364 = vunpack.c.l.b16 %v182
    %v1365 = vunpack.c.h.b16 %v182
    %v1366 = vunpack.c.l.b16 %v183
    %v1367 = vunpack.c.h.b16 %v183
    %v1368 = vunpack.c.l.b16 %v184
    %v1369 = vunpack.c.h.b16 %v184
    %v1370 = vunpack.c.l.b16 %v185
    %v1371 = vunpack.c.h.b16 %v185
    %v1372 = vunpack.c.l.b16 %v186
    %v1373 = vunpack.c.h.b16 %v186
    %v1374 = vunpack.c.l.b16 %v187
    %v1375 = vunpack.c.h.b16 %v187
    %v1376 = vunpack.c.l.b16 %v188
    %v1377 = vunpack.c.h.b16 %v188
    %v1378 = vunpack.c.l.b16 %v189
    %v1379 = vunpack.c.h.b16 %v189
    %v1380 = vunpack.c.l.b16 %v190
    %v1381 = vunpack.c.h.b16 %v190
    %v1382 = vunpack.c.l.b16 %v191
    %v1383 = vunpack.c.h.b16 %v191
    %v1384 = vunpack.c.l.b16 %v192
    %v1385 = vunpack.c.h.b16 %v192
    %v1386 = vunpack.c.l.b16 %v193
    %v1387 = vunpack.c.h.b16 %v193
    %v1388 = vunpack.c.l.b16 %v194
    %v1389 = vunpack.c.h.b16 %v194
    %v1390 = vunpack.c.l.b16 %v195
    %v1391 = vunpack.c.h.b16 %v195
    %v1392 = vunpack.c.l.b16 %v196
    %v1393 = vunpack.c.h.b16 %v196
    %v1394 = vunpack.c.l.b16 %v197
    %v1395 = vunpack.c.h.b16 %v197
    %v1396 = vunpack.c.l.b16 %v198
    %v1397 = vunpack.c.h.b16 %v198
    %v1398 = vunpack.c.l.b16 %v199
    %v1399 = vunpack.c.h.b16 %v199
    %v1400 = vunpack.c.l.b16 %v200
    %v1401 = vunpack.c.h.b16 %v200
    %v1402 = vunpack.c.l.b16 %v201
    %v1403 = vunpack.c.h.b16 %v201
    %v1404 = vunpack.c.l.b16 %v202
    %v1405 = vunpack.c.h.b16 %v202
    %v1406 = vunpack.c.l.b16 %v203
    %v1407 = vunpack.c.h.b16 %v203
    %v1408 = vunpack.c.l.b16 %v204
    %v1409 = vunpack.c.h.b16 %v204
    %v1410 = vunpack.c.l.b16 %v205
    %v1411 = vunpack.c.h.b16 %v205
    %v1412 = vunpack.c.l.b16 %v206
    %v1413 = vunpack.c.h.b16 %v206
    %v1414 = vunpack.c.l.b16 %v207
    %v1415 = vunpack.c.h.b16 %v207
    %v1416 = vunpack.c.l.b16 %v208
    %v1417 = vunpack.c.h.b16 %v208
    %v1418 = vunpack.c.l.b16 %v209
    %v1419 = vunpack.c.h.b16 %v209
    %v1420 = vunpack.c.l.b16 %v210
    %v1421 = vunpack.c.h.b16 %v210
    %v1422 = vunpack.c.l.b16 %v211
    %v1423 = vunpack.c.h.b16 %v211
    %v1424 = vunpack.c.l.b16 %v212
    %v1425 = vunpack.c.h.b16 %v212
    %v1426 = vunpack.c.l.b16 %v213
    %v1427 = vunpack.c.h.b16 %v213
    %v1428 = vunpack.c.l.b16 %v214
    %v1429 = vunpack.c.h.b16 %v214
    %v1430 = vunpack.c.l.b16 %v215
    %v1431 = vunpack.c.h.b16 %v215
    %v1432 = vunpack.c.l.b16 %v216
    %v1433 = vunpack.c.h.b16 %v216
    %v1434 = vunpack.c.l.b16 %v217
    %v1435 = vunpack.c.h.b16 %v217
    %v1436 = vunpack.c.l.b16 %v218
    %v1437 = vunpack.c.h.b16 %v218
    %v1438 = vunpack.c.l.b16 %v219
    %v1439 = vunpack.c.h.b16 %v219
    %v1440 = vunpack.c.l.b16 %v220
    %v1441 = vunpack.c.h.b16 %v220
    %v1442 = vunpack.c.l.b16 %v221
    %v1443 = vunpack.c.h.b16 %v221
    %v1444 = vunpack.c.l.b16 %v222
    %v1445 = vunpack.c.h.b16 %v222
    %v1446 = vunpack.c.l.b16 %v223
    %v1447 = vunpack.c.h.b16 %v223
    %v1448 = vunpack.c.l.b16 %v224
    %v1449 = vunpack.c.h.b16 %v224
    %v1450 = vunpack.c.l.b16 %v225
    %v1451 = vunpack.c.h.b16 %v225
    %v1452 = vunpack.c.l.b16 %v226
    %v1453 = vunpack.c.h.b16 %v226
    %v1454 = vunpack.c.l.b16 %v227
    %v1455 = vunpack.c.h.b16 %v227
    %v1456 = vunpack.c.l.b16 %v228
    %v1457 = vunpack.c.h.b16 %v228
    %v1458 = vunpack.c.l.b16 %v229
    %v1459 = vunpack.c.h.b16 %v229
    %v1460 = vunpack.c.l.b16 %v230
    %v1461 = vunpack.c.h.b16 %v230
    %v1462 = vunpack.c.l.b16 %v231
    %v1463 = vunpack.c.h.b16 %v231
    %v1464 = vunpack.c.l.b16 %v232
    %v1465 = vunpack.c.h.b16 %v232
    %v1466 = vunpack.c.l.b16 %v233
    %v1467 = vunpack.c.h.b16 %v233
    %v1468 = vunpack.c.l.b16 %v234
    %v1469 = vunpack.c.h.b16 %v234
    %v1470 = vunpack.c.l.b16 %v235
    %v1471 = vunpack.c.h.b16 %v235
    %v1472 = vunpack.c.l.b16 %v236
    %v1473 = vunpack.c.h.b16 %v236
    %v1474 = vunpack.c.l.b16 %v237
    %v1475 = vunpack.c.h.b16 %v237
    %v1476 = vunpack.c.l.b16 %v238
    %v1477 = vunpack.c.h.b16 %v238
    %v1478 = vunpack.c.l.b16 %v239
    %v1479 = vunpack.c.h.b16 %v239
    %v1480 = vunpack.c.l.b16 %v240
    %v1481 = vunpack.c.h.b16 %v240
    %v1482 = vunpack.c.l.b16 %v241
    %v1483 = vunpack.c.h.b16 %v241
    %v1484 = vunpack.c.l.b16 %v242
    %v1485 = vunpack.c.h.b16 %v242
    %v1486 = vunpack.c.l.b16 %v243
    %v1487 = vunpack.c.h.b16 %v243
    %v1488 = vunpack.c.l.b16 %v244
    %v1489 = vunpack.c.h.b16 %v244
    %v1490 = vunpack.c.l.b16 %v245
    %v1491 = vunpack.c.h.b16 %v245
    %v1492 = vunpack.c.l.b16 %v246
    %v1493 = vunpack.c.h.b16 %v246
    %v1494 = vunpack.c.l.b16 %v247
    %v1495 = vunpack.c.h.b16 %v247
    %v1496 = vunpack.c.l.b16 %v248
    %v1497 = vunpack.c.h.b16 %v248
    %v1498 = vunpack.c.l.b16 %v249
    %v1499 = vunpack.c.h.b16 %v249
    %v1500 = vunpack.c.l.b16 %v250
    %v1501 = vunpack.c.h.b16 %v250
    %v1502 = vunpack.c.l.b16 %v251
    %v1503 = vunpack.c.h.b16 %v251
    %v1504 = vunpack.c.l.b16 %v252
    %v1505 = vunpack.c.h.b16 %v252
    %v1506 = vunpack.c.l.b16 %v253
    %v1507 = vunpack.c.h.b16 %v253
    %v1508 = vunpack.c.l.b16 %v254
    %v1509 = vunpack.c.h.b16 %v254
    %v1510 = vunpack.c.l.b16 %v255
    %v1511 = vunpack.c.h.b16 %v255
    %v1512 = vunpack.c.l.b16 %v256
    %v1513 = vunpack.c.h.b16 %v256
    %v1514 = vunpack.c.l.b16 %v257
    %v1515 = vunpack.c.h.b16 %v257
    %v1516 = vunpack.c.l.b16 %v258
    %v1517 = vunpack.c.h.b16 %v258
    %v1518 = vunpack.c.l.b16 %v259
    %v1519 = vunpack.c.h.b16 %v259
    %v1520 = vunpack.c.l.b16 %v260
    %v1521 = vunpack.c.h.b16 %v260
    %v1522 = vunpack.c.l.b16 %v261
    %v1523 = vunpack.c.h.b16 %v261
    %v1524 = vunpack.c.l.b16 %v262
    %v1525 = vunpack.c.h.b16 %v262
    %v1526 = vunpack.c.l.b16 %v263
    %v1527 = vunpack.c.h.b16 %v263
    %v1528 = vunpack.c.l.b16 %v264
    %v1529 = vunpack.c.h.b16 %v264
    %v1530 = vunpack.c.l.b16 %v265
    %v1531 = vunpack.c.h.b16 %v265
    %v1532 = vunpack.c.l.b16 %v266
    %v1533 = vunpack.c.h.b16 %v266
    %v1534 = vunpack.c.l.b16 %v267
    %v1535 = vunpack.c.h.b16 %v267
    %v1536 = vunpack.c.l.b16 %v268
    %v1537 = vunpack.c.h.b16 %v268
    %v1538 = vunpack.c.l.b16 %v269
    %v1539 = vunpack.c.h.b16 %v269
    %v1540 = vunpack.c.l.b16 %v270
    %v1541 = vunpack.c.h.b16 %v270
    %v1542 = vunpack.c.l.b16 %v271
    %v1543 = vunpack.c.h.b16 %v271
    %v1544 = vunpack.c.l.b16 %v272
    %v1545 = vunpack.c.h.b16 %v272
    %v1546 = vunpack.c.l.b16 %v273
    %v1547 = vunpack.c.h.b16 %v273
    %v1548 = vunpack.c.l.b16 %v274
    %v1549 = vunpack.c.h.b16 %v274
    %v1550 = vunpack.c.l.b16 %v275
    %v1551 = vunpack.c.h.b16 %v275
    %v1552 = vunpack.c.l.b16 %v276
    %v1553 = vunpack.c.h.b16 %v276
    %v1554 = vunpack.c.l.b16 %v277
    %v1555 = vunpack.c.h.b16 %v277
    %v1556 = vunpack.c.l.b16 %v278
    %v1557 = vunpack.c.h.b16 %v278
    %v1558 = vunpack.c.l.b16 %v279
    %v1559 = vunpack.c.h.b16 %v279
    %v1560 = vunpack.c.l.b16 %v280
    %v1561 = vunpack.c.h.b16 %v280
    %v1562 = vunpack.c.l.b16 %v281
    %v1563 = vunpack.c.h.b16 %v281
    %v1564 = vunpack.c.l.b16 %v282
    %v1565 = vunpack.c.h.b16 %v282
    %v1566 = vunpack.c.l.b16 %v283
    %v1567 = vunpack.c.h.b16 %v283
    %v1568 = vunpack.c.l.b16 %v284
    %v1569 = vunpack.c.h.b16 %v284
    %v1570 = vunpack.c.l.b16 %v285
    %v1571 = vunpack.c.h.b16 %v285
    %v1572 = vunpack.c.l.b16 %v286
    %v1573 = vunpack.c.h.b16 %v286
    %v1574 = vunpack.c.l.b16 %v287
    %v1575 = vunpack.c.h.b16 %v287
    %v1576 = vunpack.c.l.b16 %v288
    %v1577 = vunpack.c.h.b16 %v288
    %v1578 = vunpack.c.l.b16 %v289
    %v1579 = vunpack.c.h.b16 %v289
    %v1580 = vunpack.c.l.b16 %v290
    %v1581 = vunpack.c.h.b16 %v290
    %v1582 = vunpack.c.l.b16 %v291
    %v1583 = vunpack.c.h.b16 %v291
    %v1584 = vunpack.c.l.b16 %v292
    %v1585 = vunpack.c.h.b16 %v292
    %v1586 = vunpack.c.l.b16 %v293
    %v1587 = vunpack.c.h.b16 %v293
    %v1588 = vunpack.c.l.b16 %v294
    %v1589 = vunpack.c.h.b16 %v294
    %v1590 = vunpack.c.l.b16 %v295
    %v1591 = vunpack.c.h.b16 %v295
    %v1592 = vunpack.c.l.b16 %v296
    %v1593 = vunpack.c.h.b16 %v296
    %v1594 = vunpack.c.l.b16 %v297
    %v1595 = vunpack.c.h.b16 %v297
    %v1596 = vunpack.c.l.b16 %v298
    %v1597 = vunpack.c.h.b16 %v298
    %v1598 = vunpack.c.l.b16 %v299
    %v1599 = vunpack.c.h.b16 %v299
    %v1600 = vunpack.c.l.b16 %v300
    %v1601 = vunpack.c.h.b16 %v300
    %v1602 = vunpack.c.l.b16 %v301
    %v1603 = vunpack.c.h.b16 %v301
    %v1604 = vunpack.c.l.b16 %v302
    %v1605 = vunpack.c.h.b16 %v302
    %v1606 = vunpack.c.l.b16 %v303
    %v1607 = vunpack.c.h.b16 %v303
    %v1608 = vunpack.c.l.b16 %v304
    %v1609 = vunpack.c.h.b16 %v304
    %v1610 = vunpack.c.l.b16 %v305
    %v1611 = vunpack.c.h.b16 %v305
    %v1612 = vunpack.c.l.b16 %v306
    %v1613 = vunpack.c.h.b16 %v306
    %v1614 = vunpack.c.l.b16 %v307
    %v1615 = vunpack.c.h.b16 %v307
    %v1616 = vunpack.c.l.b16 %v308
    %v1617 = vunpack.c.h.b16 %v308
    %v1618 = vunpack.c.l.b16 %v309
    %v1619 = vunpack.c.h.b16 %v309
    %v1620 = vunpack.c.l.b16 %v310
    %v1621 = vunpack.c.h.b16 %v310
    %v1622 = vunpack.c.l.b16 %v311
    %v1623 = vunpack.c.h.b16 %v311
    %v1624 = vunpack.c.l.b16 %v312
    %v1625 = vunpack.c.h.b16 %v312
    %v1626 = vunpack.c.l.b16 %v313
    %v1627 = vunpack.c.h.b16 %v313
    %v1628 = vunpack.c.l.b16 %v314
    %v1629 = vunpack.c.h.b16 %v314
    %v1630 = vunpack.c.l.b16 %v315
    %v1631 = vunpack.c.h.b16 %v315
    %v1632 = vunpack.c.l.b16 %v316
    %v1633 = vunpack.c.h.b16 %v316
    %v1634 = vunpack.c.l.b16 %v317
    %v1635 = vunpack.c.h.b16 %v317
    %v1636 = vunpack.c.l.b16 %v318
    %v1637 = vunpack.c.h.b16 %v318
    %v1638 = vunpack.c.l.b16 %v319
    %v1639 = vunpack.c.h.b16 %v319
    %v1640 = vunpack.c.l.b16 %v320
    %v1641 = vunpack.c.h.b16 %v320
    %v1642 = vunpack.c.l.b16 %v321
    %v1643 = vunpack.c.h.b16 %v321
    %v1644 = vunpack.c.l.b16 %v322
    %v1645 = vunpack.c.h.b16 %v322
    %v1646 = vunpack.c.l.b16 %v323
    %v1647 = vunpack.c.h.b16 %v323
    %v1648 = vunpack.c.l.b16 %v324
    %v1649 = vunpack.c.h.b16 %v324
    %v1650 = vunpack.c.l.b16 %v325
    %v1651 = vunpack.c.h.b16 %v325
    %v1652 = vunpack.c.l.b16 %v326
    %v1653 = vunpack.c.h.b16 %v326
    %v1654 = vunpack.c.l.b16 %v327
    %v1655 = vunpack.c.h.b16 %v327
    %v1656 = vunpack.c.l.b16 %v328
    %v1657 = vunpack.c.h.b16 %v328
    %v1658 = vunpack.c.l.b16 %v329
    %v1659 = vunpack.c.h.b16 %v329
    %v1660 = vunpack.c.l.b16 %v330
    %v1661 = vunpack.c.h.b16 %v330
    %v1662 = vunpack.c.l.b16 %v331
    %v1663 = vunpack.c.h.b16 %v331
    %v1664 = vunpack.c.l.b16 %v332
    %v1665 = vunpack.c.h.b16 %v332
    %v1666 = vunpack.c.l.b16 %v333
    %v1667 = vunpack.c.h.b16 %v333
    %v1668 = vunpack.c.l.b16 %v334
    %v1669 = vunpack.c.h.b16 %v334
    %v1670 = vunpack.c.l.b16 %v335
    %v1671 = vunpack.c.h.b16 %v335
    %v1672 = vunpack.c.l.b16 %v336
    %v1673 = vunpack.c.h.b16 %v336
    %v1674 = vunpack.c.l.b16 %v337
    %v1675 = vunpack.c.h.b16 %v337
    %v1676 = vunpack.c.l.b16 %v338
    %v1677 = vunpack.c.h.b16 %v338
    %v1678 = vunpack.c.l.b16 %v339
    %v1679 = vunpack.c.h.b16 %v339
    %v1680 = vunpack.c.l.b16 %v340
    %v1681 = vunpack.c.h.b16 %v340
    %v1682 = vunpack.c.l.b16 %v341
    %v1683 = vunpack.c.h.b16 %v341
    %v1684 = vunpack.c.l.b16 %v342
    %v1685 = vunpack.c.h.b16 %v342
    %v1686 = vunpack.c.l.b16 %v343
    %v1687 = vunpack.c.h.b16 %v343
    %v1688 = vunpack.c.l.b16 %v344
    %v1689 = vunpack.c.h.b16 %v344
    %v1690 = vunpack.c.l.b16 %v345
    %v1691 = vunpack.c.h.b16 %v345
    %v1692 = vunpack.c.l.b16 %v346
    %v1693 = vunpack.c.h.b16 %v346
    %v1694 = vunpack.c.l.b16 %v347
    %v1695 = vunpack.c.h.b16 %v347
    %v1696 = vunpack.c.l.b16 %v348
    %v1697 = vunpack.c.h.b16 %v348
    %v1698 = vunpack.c.l.b16 %v349
    %v1699 = vunpack.c.h.b16 %v349
    %v1700 = vunpack.c.l.b16 %v350
    %v1701 = vunpack.c.h.b16 %v350
    %v1702 = vunpack.c.l.b16 %v351
    %v1703 = vunpack.c.h.b16 %v351
    %v1704 = vunpack.c.l.b16 %v352
    %v1705 = vunpack.c.h.b16 %v352
    %v1706 = vunpack.c.l.b16 %v353
    %v1707 = vunpack.c.h.b16 %v353
    %v1708 = vunpack.c.l.b16 %v354
    %v1709 = vunpack.c.h.b16 %v354
    %v1710 = vunpack.c.l.b16 %v355
    %v1711 = vunpack.c.h.b16 %v355
    %v1712 = vunpack.c.l.b16 %v356
    %v1713 = vunpack.c.h.b16 %v356
    %v1714 = vunpack.c.l.b16 %v357
    %v1715 = vunpack.c.h.b16 %v357
    %v1716 = vunpack.c.l.b16 %v358
    %v1717 = vunpack.c.h.b16 %v358
    %v1718 = vunpack.c.l.b16 %v359
    %v1719 = vunpack.c.h.b16 %v359
    %v1720 = vunpack.c.l.b16 %v360
    %v1721 = vunpack.c.h.b16 %v360
    %v1722 = vunpack.c.l.b16 %v361
    %v1723 = vunpack.c.h.b16 %v361
    %v1724 = vunpack.c.l.b16 %v362
    %v1725 = vunpack.c.h.b16 %v362
    %v1726 = vunpack.c.l.b16 %v363
    %v1727 = vunpack.c.h.b16 %v363
    %v1728 = vunpack.c.l.b16 %v364
    %v1729 = vunpack.c.h.b16 %v364
    %v1730 = vunpack.c.l.b16 %v365
    %v1731 = vunpack.c.h.b16 %v365
    %v1732 = vunpack.c.l.b16 %v366
    %v1733 = vunpack.c.h.b16 %v366
    %v1734 = vunpack.c.l.b16 %v367
    %v1735 = vunpack.c.h.b16 %v367
    %v1736 = vunpack.c.l.b16 %v368
    %v1737 = vunpack.c.h.b16 %v368
    %v1738 = vunpack.c.l.b16 %v369
    %v1739 = vunpack.c.h.b16 %v369
    %v1740 = vunpack.c.l.b16 %v370
    %v1741 = vunpack.c.h.b16 %v370
    %v1742 = vunpack.c.l.b16 %v371
    %v1743 = vunpack.c.h.b16 %v371
    %v1744 = vunpack.c.l.b16 %v372
    %v1745 = vunpack.c.h.b16 %v372
    %v1746 = vunpack.c.l.b16 %v373
    %v1747 = vunpack.c.h.b16 %v373
    %v1748 = vunpack.c.l.b16 %v374
    %v1749 = vunpack.c.h.b16 %v374
    %v1750 = vunpack.c.l.b16 %v375
    %v1751 = vunpack.c.h.b16 %v375
    %v1752 = vunpack.c.l.b16 %v376
    %v1753 = vunpack.c.h.b16 %v376
    %v1754 = vunpack.c.l.b16 %v377
    %v1755 = vunpack.c.h.b16 %v377
    %v1756 = vunpack.c.l.b16 %v378
    %v1757 = vunpack.c.h.b16 %v378
    %v1758 = vunpack.c.l.b16 %v379
    %v1759 = vunpack.c.h.b16 %v379
    %v1760 = vunpack.c.l.b16 %v380
    %v1761 = vunpack.c.h.b16 %v380
    %v1762 = vunpack.c.l.b16 %v381
    %v1763 = vunpack.c.h.b16 %v381
    %v1764 = vunpack.c.l.b16 %v382
    %v1765 = vunpack.c.h.b16 %v382
    %v1766 = vunpack.c.l.b16 %v383
    %v1767 = vunpack.c.h.b16 %v383
    %v1768 = vunpack.c.l.b16 %v384
    %v1769 = vunpack.c.h.b16 %v384
    %v1770 = vunpack.c.l.b16 %v385
    %v1771 = vunpack.c.h.b16 %v385
    %v1772 = vunpack.c.l.b16 %v386
    %v1773 = vunpack.c.h.b16 %v386
    %v1774 = vunpack.c.l.b16 %v387
    %v1775 = vunpack.c.h.b16 %v387
    %v1776 = vunpack.c.l.b16 %v388
    %v1777 = vunpack.c.h.b16 %v388
    %v1778 = vunpack.c.l.b16 %v389
    %v1779 = vunpack.c.h.b16 %v389
    %v1780 = vunpack.c.l.b16 %v390
    %v1781 = vunpack.c.h.b16 %v390
    %v1782 = vunpack.c.l.b16 %v391
    %v1783 = vunpack.c.h.b16 %v391
    %v1784 = vunpack.c.l.b16 %v392
    %v1785 = vunpack.c.h.b16 %v392
    %v1786 = vunpack.c.l.b16 %v393
    %v1787 = vunpack.c.h.b16 %v393
    %v1788 = vunpack.c.l.b16 %v394
    %v1789 = vunpack.c.h.b16 %v394
    %v1790 = vunpack.c.l.b16 %v395
    %v1791 = vunpack.c.h.b16 %v395
    %v1792 = vunpack.c.l.b16 %v396
    %v1793 = vunpack.c.h.b16 %v396
    %v1794 = vunpack.c.l.b16 %v397
    %v1795 = vunpack.c.h.b16 %v397
    %v1796 = vunpack.c.l.b16 %v398
    %v1797 = vunpack.c.h.b16 %v398
    %v1798 = vunpack.c.l.b16 %v399
    %v1799 = vunpack.c.h.b16 %v399
    %v1800 = vunpack.c.l.b16 %v400
    %v1801 = vunpack.c.h.b16 %v400
    %v1802 = vunpack.c.l.b16 %v401
    %v1803 = vunpack.c.h.b16 %v401
    %v1804 = vunpack.c.l.b16 %v402
    %v1805 = vunpack.c.h.b16 %v402
    %v1806 = vunpack.c.l.b16 %v403
    %v1807 = vunpack.c.h.b16 %v403
    %v1808 = vunpack.c.l.b16 %v404
    %v1809 = vunpack.c.h.b16 %v404
    %v1810 = vunpack.c.l.b16 %v405
    %v1811 = vunpack.c.h.b16 %v405
    %v1812 = vunpack.c.l.b16 %v406
    %v1813 = vunpack.c.h.b16 %v406
    %v1814 = vunpack.c.l.b16 %v407
    %v1815 = vunpack.c.h.b16 %v407
    %v1816 = vunpack.c.l.b16 %v408
    %v1817 = vunpack.c.h.b16 %v408
    %v1818 = vunpack.c.l.b16 %v409
    %v1819 = vunpack.c.h.b16 %v409
    %v1820 = vunpack.c.l.b16 %v410
    %v1821 = vunpack.c.h.b16 %v410
    %v1822 = vunpack.c.l.b16 %v411
    %v1823 = vunpack.c.h.b16 %v411
    %v1824 = vunpack.c.l.b16 %v412
    %v1825 = vunpack.c.h.b16 %v412
    %v1826 = vunpack.c.l.b16 %v413
    %v1827 = vunpack.c.h.b16 %v413
    %v1828 = vunpack.c.l.b16 %v414
    %v1829 = vunpack.c.h.b16 %v414
    %v1830 = vunpack.c.l.b16 %v415
    %v1831 = vunpack.c.h.b16 %v415
    %v1832 = vunpack.c.l.b16 %v416
    %v1833 = vunpack.c.h.b16 %v416
    %v1834 = vunpack.c.l.b16 %v417
    %v1835 = vunpack.c.h.b16 %v417
    %v1836 = vunpack.c.l.b16 %v418
    %v1837 = vunpack.c.h.b16 %v418
    %v1838 = vunpack.c.l.b16 %v419
    %v1839 = vunpack.c.h.b16 %v419
    %v1840 = vunpack.c.l.b16 %v420
    %v1841 = vunpack.c.h.b16 %v420
    %v1842 = vunpack.c.l.b16 %v421
    %v1843 = vunpack.c.h.b16 %v421
    %v1844 = vunpack.c.l.b16 %v422
    %v1845 = vunpack.c.h.b16 %v422
    %v1846 = vunpack.c.l.b16 %v423
    %v1847 = vunpack.c.h.b16 %v423
    %v1848 = vunpack.c.l.b16 %v424
    %v1849 = vunpack.c.h.b16 %v424
    %v1850 = vunpack.c.l.b16 %v425
    %v1851 = vunpack.c.h.b16 %v425
    %v1852 = vunpack.c.l.b16 %v426
    %v1853 = vunpack.c.h.b16 %v426
    %v1854 = vunpack.c.l.b16 %v427
    %v1855 = vunpack.c.h.b16 %v427
    %v1856 = vunpack.c.l.b16 %v428
    %v1857 = vunpack.c.h.b16 %v428
    %v1858 = vunpack.c.l.b16 %v429
    %v1859 = vunpack.c.h.b16 %v429
    %v1860 = vunpack.c.l.b16 %v430
    %v1861 = vunpack.c.h.b16 %v430
    %v1862 = vunpack.c.l.b16 %v431
    %v1863 = vunpack.c.h.b16 %v431
    %v1864 = vunpack.c.l.b16 %v432
    %v1865 = vunpack.c.h.b16 %v432
    %v1866 = vunpack.c.l.b16 %v433
    %v1867 = vunpack.c.h.b16 %v433
    %v1868 = vunpack.c.l.b16 %v434
    %v1869 = vunpack.c.h.b16 %v434
    %v1870 = vunpack.c.l.b16 %v435
    %v1871 = vunpack.c.h.b16 %v435
    %v1872 = vunpack.c.l.b16 %v436
    %v1873 = vunpack.c.h.b16 %v436
    %v1874 = vunpack.c.l.b16 %v437
    %v1875 = vunpack.c.h.b16 %v437
    %v1876 = vunpack.c.l.b16 %v438
    %v1877 = vunpack.c.h.b16 %v438
    %v1878 = vunpack.c.l.b16 %v439
    %v1879 = vunpack.c.h.b16 %v439
    %v1880 = vunpack.c.l.b16 %v440
    %v1881 = vunpack.c.h.b16 %v440
    %v1882 = vunpack.c.l.b16 %v441
    %v1883 = vunpack.c.h.b16 %v441
    %v1884 = vunpack.c.l.b16 %v442
    %v1885 = vunpack.c.h.b16 %v442
    %v1886 = vunpack.c.l.b16 %v443
    %v1887 = vunpack.c.h.b16 %v443
    %v1888 = vunpack.c.l.b16 %v444
    %v1889 = vunpack.c.h.b16 %v444
    %v1890 = vunpack.c.l.b16 %v445
    %v1891 = vunpack.c.h.b16 %v445
    %v1892 = vunpack.c.l.b16 %v446
    %v1893 = vunpack.c.h.b16 %v446
    %v1894 = vunpack.c.l.b16 %v447
    %v1895 = vunpack.c.h.b16 %v447
    %v1896 = vunpack.c.l.b16 %v448
    %v1897 = vunpack.c.h.b16 %v448
    %v1898 = vunpack.c.l.b16 %v449
    %v1899 = vunpack.c.h.b16 %v449
    %v1900 = vunpack.c.l.b16 %v450
    %v1901 = vunpack.c.h.b16 %v450
    %v1902 = vunpack.c.l.b16 %v451
    %v1903 = vunpack.c.h.b16 %v451
    %v1904 = vunpack.c.l.b16 %v452
    %v1905 = vunpack.c.h.b16 %v452
    %v1906 = vunpack.c.l.b16 %v453
    %v1907 = vunpack.c.h.b16 %v453
    %v1908 = vunpack.c.l.b16 %v454
    %v1909 = vunpack.c.h.b16 %v454
    %v1910 = vunpack.c.l.b16 %v455
    %v1911 = vunpack.c.h.b16 %v455
    %v1912 = vunpack.c.l.b16 %v456
    %v1913 = vunpack.c.h.b16 %v456
    %v1914 = vunpack.c.l.b16 %v457
    %v1915 = vunpack.c.h.b16 %v457
    %v1916 = vunpack.c.l.b16 %v458
    %v1917 = vunpack.c.h.b16 %v458
    %v1918 = vunpack.c.l.b16 %v459
    %v1919 = vunpack.c.h.b16 %v459
    %v1920 = vunpack.c.l.b16 %v460
    %v1921 = vunpack.c.h.b16 %v460
    %v1922 = vunpack.c.l.b16 %v461
    %v1923 = vunpack.c.h.b16 %v461
    %v1924 = vunpack.c.l.b16 %v462
    %v1925 = vunpack.c.h.b16 %v462
    %v1926 = vunpack.c.l.b16 %v463
    %v1927 = vunpack.c.h.b16 %v463
    %v1928 = vunpack.c.l.b16 %v464
    %v1929 = vunpack.c.h.b16 %v464
    %v1930 = vunpack.c.l.b16 %v465
    %v1931 = vunpack.c.h.b16 %v465
    %v1932 = vunpack.c.l.b16 %v466
    %v1933 = vunpack.c.h.b16 %v466
    %v1934 = vunpack.c.l.b16 %v467
    %v1935 = vunpack.c.h.b16 %v467
    %v1936 = vunpack.c.l.b16 %v468
    %v1937 = vunpack.c.h.b16 %v468
    %v1938 = vunpack.c.l.b16 %v469
    %v1939 = vunpack.c.h.b16 %v469
    %v1940 = vunpack.c.l.b16 %v470
    %v1941 = vunpack.c.h.b16 %v470
    %v1942 = vunpack.c.l.b16 %v471
    %v1943 = vunpack.c.h.b16 %v471
    %v1944 = vunpack.c.l.b16 %v472
    %v1945 = vunpack.c.h.b16 %v472
    %v1946 = vunpack.c.l.b16 %v473
    %v1947 = vunpack.c.h.b16 %v473
    %v1948 = vunpack.c.l.b16 %v474
    %v1949 = vunpack.c.h.b16 %v474
    %v1950 = vunpack.c.l.b16 %v475
    %v1951 = vunpack.c.h.b16 %v475
    %v1952 = vunpack.c.l.b16 %v476
    %v1953 = vunpack.c.h.b16 %v476
    %v1954 = vunpack.c.l.b16 %v477
    %v1955 = vunpack.c.h.b16 %v477
    %v1956 = vunpack.c.l.b16 %v478
    %v1957 = vunpack.c.h.b16 %v478
    %v1958 = vunpack.c.l.b16 %v479
    %v1959 = vunpack.c.h.b16 %v479
    %v1960 = vunpack.c.l.b16 %v480
    %v1961 = vunpack.c.h.b16 %v480
    %v1962 = vunpack.c.l.b16 %v481
    %v1963 = vunpack.c.h.b16 %v481
    %v1964 = vunpack.c.l.b16 %v482
    %v1965 = vunpack.c.h.b16 %v482
    %v1966 = vunpack.c.l.b16 %v483
    %v1967 = vunpack.c.h.b16 %v483
    %v1968 = vunpack.c.l.b16 %v484
    %v1969 = vunpack.c.h.b16 %v484
    %v1970 = vunpack.c.l.b16 %v485
    %v1971 = vunpack.c.h.b16 %v485
    %v1972 = vunpack.c.l.b16 %v486
    %v1973 = vunpack.c.h.b16 %v486
    %v1974 = vunpack.c.l.b16 %v487
    %v1975 = vunpack.c.h.b16 %v487
    %v1976 = vunpack.c.l.b16 %v488
    %v1977 = vunpack.c.h.b16 %v488
    %v1978 = vunpack.c.l.b16 %v489
    %v1979 = vunpack.c.h.b16 %v489
    %v1980 = vunpack.c.l.b16 %v490
    %v1981 = vunpack.c.h.b16 %v490
    %v1982 = vunpack.c.l.b16 %v491
    %v1983 = vunpack.c.h.b16 %v491
    %v1984 = vunpack.c.l.b16 %v492
    %v1985 = vunpack.c.h.b16 %v492
    %v1986 = vunpack.c.l.b16 %v493
    %v1987 = vunpack.c.h.b16 %v493
    %v1988 = vunpack.c.l.b16 %v494
    %v1989 = vunpack.c.h.b16 %v494
    %v1990 = vunpack.c.l.b16 %v495
    %v1991 = vunpack.c.h.b16 %v495
    %v1992 = vunpack.c.l.b16 %v496
    %v1993 = vunpack.c.h.b16 %v496
    %v1994 = vunpack.c.l.b16 %v497
    %v1995 = vunpack.c.h.b16 %v497
    %v1996 = vunpack.c.l.b16 %v498
    %v1997 = vunpack.c.h.b16 %v498
    %v1998 = vunpack.c.l.b16 %v499
    %v1999 = vunpack.c.h.b16 %v499
    %v2000 = vunpack.c.l.b16 %v500
    %v2001 = vunpack.c.h.b16 %v500
    %v2002 = vunpack.c.l.b16 %v501
    %v2003 = vunpack.c.h.b16 %v501
    %v2004 = vunpack.c.l.b16 %v502
    %v2005 = vunpack.c.h.b16 %v502
    %v2006 = vunpack.c.l.b16 %v503
    %v2007 = vunpack.c.h.b16 %v503
    %v2008 = vunpack.c.l.b16 %v504
    %v2009 = vunpack.c.h.b16 %v504
    %v2010 = vunpack.c.l.b16 %v505
    %v2011 = vunpack.c.h.b16 %v505
    %v2012 = vunpack.c.l.b16 %v506
    %v2013 = vunpack.c.h.b16 %v506
    %v2014 = vunpack.c.l.b16 %v507
    %v2015 = vunpack.c.h.b16 %v507
    %v2016 = vunpack.c.l.b16 %v508
    %v2017 = vunpack.c.h.b16 %v508
    %v2018 = vunpack.c.l.b16 %v509
    %v2019 = vunpack.c.h.b16 %v509
    %v2020 = vunpack.c.l.b16 %v510
    %v2021 = vunpack.c.h.b16 %v510
    %v2022 = vunpack.c.l.b16 %v511
    %v2023 = vunpack.c.h.b16 %v511
    %v2024 = vunpack.c.l.b16 %v512
    %v2025 = vunpack.c.h.b16 %v512
    %v2026 = vunpack.c.l.b16 %v513
    %v2027 = vunpack.c.h.b16 %v513
    %v2028 = vunpack.c.l.b16 %v514
    %v2029 = vunpack.c.h.b16 %v514
    %v2030 = vunpack.c.l.b16 %v515
    %v2031 = vunpack.c.h.b16 %v515
    %v2032 = vunpack.c.l.b16 %v516
    %v2033 = vunpack.c.h.b16 %v516
    %v2034 = vunpack.c.l.b16 %v517
    %v2035 = vunpack.c.h.b16 %v517
    %v2036 = vunpack.c.l.b16 %v518
    %v2037 = vunpack.c.h.b16 %v518
    %v2038 = vunpack.c.l.b16 %v519
    %v2039 = vunpack.c.h.b16 %v519
    %v2040 = vunpack.c.l.b16 %v520
    %v2041 = vunpack.c.h.b16 %v520
    %v2042 = vunpack.c.l.b16 %v521
    %v2043 = vunpack.c.h.b16 %v521
    %v2044 = vunpack.c.l.b16 %v522
    %v2045 = vunpack.c.h.b16 %v522
    %v2046 = vunpack.c.l.b16 %v523
    %v2047 = vunpack.c.h.b16 %v523
    %v2048 = vunpack.c.l.b16 %v524
    %v2049 = vunpack.c.h.b16 %v524
    %v2050 = vunpack.c.l.b16 %v525
    %v2051 = vunpack.c.h.b16 %v525
    %v2052 = vunpack.c.l.b16 %v526
    %v2053 = vunpack.c.h.b16 %v526
    %v2054 = vunpack.c.l.b16 %v527
    %v2055 = vunpack.c.h.b16 %v527
    %v2056 = vunpack.c.l.b16 %v528
    %v2057 = vunpack.c.h.b16 %v528
    %v2058 = vunpack.c.l.b16 %v529
    %v2059 = vunpack.c.h.b16 %v529
    %v2060 = vunpack.c.l.b16 %v530
    %v2061 = vunpack.c.h.b16 %v530
    %v2062 = vunpack.c.l.b16 %v531
    %v2063 = vunpack.c.h.b16 %v531
    %v2064 = vunpack.c.l.b16 %v532
    %v2065 = vunpack.c.h.b16 %v532
    %v2066 = vunpack.c.l.b16 %v533
    %v2067 = vunpack.c.h.b16 %v533
    %v2068 = vunpack.c.l.b16 %v534
    %v2069 = vunpack.c.h.b16 %v534
    %v2070 = vunpack.c.l.b16 %v535
    %v2071 = vunpack.c.h.b16 %v535
    %v2072 = vunpack.c.l.b16 %v536
    %v2073 = vunpack.c.h.b16 %v536
    %v2074 = vunpack.c.l.b16 %v537
    %v2075 = vunpack.c.h.b16 %v537
    %v2076 = vunpack.c.l.b16 %v538
    %v2077 = vunpack.c.h.b16 %v538
    %v2078 = vunpack.c.l.b16 %v539
    %v2079 = vunpack.c.h.b16 %v539
    %v2080 = vunpack.c.l.b16 %v540
    %v2081 = vunpack.c.h.b16 %v540
    %v2082 = vunpack.c.l.b16 %v541
    %v2083 = vunpack.c.h.b16 %v541
    %v2084 = vunpack.c.l.b16 %v542
    %v2085 = vunpack.c.h.b16 %v542
    %v2086 = vunpack.c.l.b16 %v543
    %v2087 = vunpack.c.h.b16 %v543
    %v2088 = vunpack.c.l.b16 %v544
    %v2089 = vunpack.c.h.b16 %v544
    %v2090 = vunpack.c.l.b16 %v545
    %v2091 = vunpack.c.h.b16 %v545
    %v2092 = vunpack.c.l.b16 %v546
    %v2093 = vunpack.c.h.b16 %v546
    %v2094 = vunpack.c.l.b16 %v547
    %v2095 = vunpack.c.h.b16 %v547
    %v2096 = vunpack.c.l.b16 %v548
    %v2097 = vunpack.c.h.b16 %v548
    %v2098 = vunpack.c.l.b16 %v549
    %v2099 = vunpack.c.h.b16 %v549
    %v2100 = vunpack.c.l.b16 %v550
    %v2101 = vunpack.c.h.b16 %v550
    %v2102 = vunpack.c.l.b16 %v551
    %v2103 = vunpack.c.h.b16 %v551
    %v2104 = vunpack.c.l.b16 %v552
    %v2105 = vunpack.c.h.b16 %v552
    %v2106 = vunpack.c.l.b16 %v553
    %v2107 = vunpack.c.h.b16 %v553
    %v2108 = vunpack.c.l.b16 %v554
    %v2109 = vunpack.c.h.b16 %v554
    %v2110 = vunpack.c.l.b16 %v555
    %v2111 = vunpack.c.h.b16 %v555
    %v2112 = vunpack.c.l.b16 %v556
    %v2113 = vunpack.c.h.b16 %v556
    %v2114 = vunpack.c.l.b16 %v557
    %v2115 = vunpack.c.h.b16 %v557
    %v2116 = vunpack.c.l.b16 %v558
    %v2117 = vunpack.c.h.b16 %v558
    %v2118 = vunpack.c.l.b16 %v559
    %v2119 = vunpack.c.h.b16 %v559
    %v2120 = vunpack.c.l.b16 %v560
    %v2121 = vunpack.c.h.b16 %v560
    %v2122 = vunpack.c.l.b16 %v561
    %v2123 = vunpack.c.h.b16 %v561
    %v2124 = vunpack.c.l.b16 %v562
    %v2125 = vunpack.c.h.b16 %v562
    %v2126 = vunpack.c.l.b16 %v563
    %v2127 = vunpack.c.h.b16 %v563
    %v2128 = vunpack.c.l.b16 %v564
    %v2129 = vunpack.c.h.b16 %v564
    %v2130 = vunpack.c.l.b16 %v565
    %v2131 = vunpack.c.h.b16 %v565
    %v2132 = vunpack.c.l.b16 %v566
    %v2133 = vunpack.c.h.b16 %v566
    %v2134 = vunpack.c.l.b16 %v567
    %v2135 = vunpack.c.h.b16 %v567
    %v2136 = vunpack.c.l.b16 %v568
    %v2137 = vunpack.c.h.b16 %v568
    %v2138 = vunpack.c.l.b16 %v569
    %v2139 = vunpack.c.h.b16 %v569
    %v2140 = vunpack.c.l.b16 %v570
    %v2141 = vunpack.c.h.b16 %v570
    %v2142 = vunpack.c.l.b16 %v571
    %v2143 = vunpack.c.h.b16 %v571
    %v2144 = vunpack.c.l.b16 %v572
    %v2145 = vunpack.c.h.b16 %v572
    %v2146 = vunpack.c.l.b16 %v573
    %v2147 = vunpack.c.h.b16 %v573
    %v2148 = vunpack.c.l.b16 %v574
    %v2149 = vunpack.c.h.b16 %v574
    %v2150 = vunpack.c.l.b16 %v575
    %v2151 = vunpack.c.h.b16 %v575
    %v2152 = vunpack.c.l.b16 %v576
    %v2153 = vunpack.c.h.b16 %v576
    %v2154 = vunpack.c.l.b16 %v577
    %v2155 = vunpack.c.h.b16 %v577
    %v2156 = vunpack.c.l.b16 %v578
    %v2157 = vunpack.c.h.b16 %v578
    %v2158 = vunpack.c.l.b16 %v579
    %v2159 = vunpack.c.h.b16 %v579
    %v2160 = vunpack.c.l.b16 %v580
    %v2161 = vunpack.c.h.b16 %v580
    %v2162 = vunpack.c.l.b16 %v581
    %v2163 = vunpack.c.h.b16 %v581
    %v2164 = vunpack.c.l.b16 %v582
    %v2165 = vunpack.c.h.b16 %v582
    %v2166 = vunpack.c.l.b16 %v583
    %v2167 = vunpack.c.h.b16 %v583
    %v2168 = vunpack.c.l.b16 %v584
    %v2169 = vunpack.c.h.b16 %v584
    %v2170 = vunpack.c.l.b16 %v585
    %v2171 = vunpack.c.h.b16 %v585
    %v2172 = vunpack.c.l.b16 %v586
    %v2173 = vunpack.c.h.b16 %v586
    %v2174 = vunpack.c.l.b16 %v587
    %v2175 = vunpack.c.h.b16 %v587
    %v2176 = vunpack.c.l.b16 %v588
    %v2177 = vunpack.c.h.b16 %v588
    %v2178 = vunpack.c.l.b16 %v589
    %v2179 = vunpack.c.h.b16 %v589
    %v2180 = vunpack.c.l.b16 %v590
    %v2181 = vunpack.c.h.b16 %v590
    %v2182 = vunpack.c.l.b16 %v591
    %v2183 = vunpack.c.h.b16 %v591
    %v2184 = vunpack.c.l.b16 %v592
    %v2185 = vunpack.c.h.b16 %v592
    %v2186 = vunpack.c.l.b16 %v593
    %v2187 = vunpack.c.h.b16 %v593
    %v2188 = vunpack.c.l.b16 %v594
    %v2189 = vunpack.c.h.b16 %v594
    %v2190 = vunpack.c.l.b16 %v595
    %v2191 = vunpack.c.h.b16 %v595
    %v2192 = vunpack.c.l.b16 %v596
    %v2193 = vunpack.c.h.b16 %v596
    %v2194 = vunpack.c.l.b16 %v597
    %v2195 = vunpack.c.h.b16 %v597
    %v2196 = vunpack.c.l.b16 %v598
    %v2197 = vunpack.c.h.b16 %v598
    %v2198 = vunpack.c.l.b16 %v599
    %v2199 = vunpack.c.h.b16 %v599
    %v2200 = vunpack.c.l.b16 %v600
    %v2201 = vunpack.c.h.b16 %v600
    %v2202 = vunpack.c.l.b16 %v601
    %v2203 = vunpack.c.h.b16 %v601
    %v2204 = vpack.c.b16 %v1184, %v1180
    %v2205 = vpack.c.b16 %v1185, %v1181
    %v2206 = vpack.c.b16 %v1186, %v1182
    %v2207 = vpack.c.b16 %v1187, %v1183
    %v2208 = vpack.c.b16 %v1192, %v1188
    %v2209 = vpack.c.b16 %v1193, %v1189
    %v2210 = vpack.c.b16 %v1194, %v1190
    %v2211 = vpack.c.b16 %v1195, %v1191
    %v2212 = vpack.c.b16 %v1200, %v1196
    %v2213 = vpack.c.b16 %v1201, %v1197
    %v2214 = vpack.c.b16 %v1202, %v1198
    %v2215 = vpack.c.b16 %v1203, %v1199
    %v2216 = vpack.c.b16 %v1208, %v1204
    %v2217 = vpack.c.b16 %v1209, %v1205
    %v2218 = vpack.c.b16 %v1210, %v1206
    %v2219 = vpack.c.b16 %v1211, %v1207
    %v2220 = vpack.c.b16 %v1216, %v1212
    %v2221 = vpack.c.b16 %v1217, %v1213
    %v2222 = vpack.c.b16 %v1218, %v1214
    %v2223 = vpack.c.b16 %v1219, %v1215
    %v2224 = vpack.c.b16 %v1224, %v1220
    %v2225 = vpack.c.b16 %v1225, %v1221
    %v2226 = vpack.c.b16 %v1226, %v1222
    %v2227 = vpack.c.b16 %v1227, %v1223
    %v2228 = vpack.c.b16 %v1232, %v1228
    %v2229 = vpack.c.b16 %v1233, %v1229
    %v2230 = vpack.c.b16 %v1234, %v1230
    %v2231 = vpack.c.b16 %v1235, %v1231
    %v2232 = vpack.c.b16 %v1240, %v1236
    %v2233 = vpack.c.b16 %v1241, %v1237
    %v2234 = vpack.c.b16 %v1242, %v1238
    %v2235 = vpack.c.b16 %v1243, %v1239
    %v2236 = vpack.c.b16 %v1248, %v1244
    %v2237 = vpack.c.b16 %v1249, %v1245
    %v2238 = vpack.c.b16 %v1250, %v1246
    %v2239 = vpack.c.b16 %v1251, %v1247
    %v2240 = vpack.c.b16 %v1256, %v1252
    %v2241 = vpack.c.b16 %v1257, %v1253
    %v2242 = vpack.c.b16 %v1258, %v1254
    %v2243 = vpack.c.b16 %v1259, %v1255
    %v2244 = vpack.c.b16 %v1264, %v1260
    %v2245 = vpack.c.b16 %v1265, %v1261
    %v2246 = vpack.c.b16 %v1266, %v1262
    %v2247 = vpack.c.b16 %v1267, %v1263
    %v2248 = vpack.c.b16 %v1272, %v1268
    %v2249 = vpack.c.b16 %v1273, %v1269
    %v2250 = vpack.c.b16 %v1274, %v1270
    %v2251 = vpack.c.b16 %v1275, %v1271
    %v2252 = vpack.c.b16 %v1280, %v1276
    %v2253 = vpack.c.b16 %v1281, %v1277
    %v2254 = vpack.c.b16 %v1282, %v1278
    %v2255 = vpack.c.b16 %v1283, %v1279
    %v2256 = vpack.c.b16 %v1288, %v1284
    %v2257 = vpack.c.b16 %v1289, %v1285
    %v2258 = vpack.c.b16 %v1290, %v1286
    %v2259 = vpack.c.b16 %v1291, %v1287
    %v2260 = vpack.c.b16 %v1296, %v1292
    %v2261 = vpack.c.b16 %v1297, %v1293
    %v2262 = vpack.c.b16 %v1298, %v1294
    %v2263 = vpack.c.b16 %v1299, %v1295
    %v2264 = vpack.c.b16 %v1304, %v1300
    %v2265 = vpack.c.b16 %v1305, %v1301
    %v2266 = vpack.c.b16 %v1306, %v1302
    %v2267 = vpack.c.b16 %v1307, %v1303
    %v2268 = vpack.c.b16 %v1312, %v1308
    %v2269 = vpack.c.b16 %v1313, %v1309
    %v2270 = vpack.c.b16 %v1314, %v1310
    %v2271 = vpack.c.b16 %v1315, %v1311
    %v2272 = vpack.c.b16 %v1320, %v1316
    %v2273 = vpack.c.b16 %v1321, %v1317
    %v2274 = vpack.c.b16 %v1322, %v1318
    %v2275 = vpack.c.b16 %v1323, %v1319
    %v2276 = vpack.c.b16 %v1328, %v1324
    %v2277 = vpack.c.b16 %v1329, %v1325
    %v2278 = vpack.c.b16 %v1330, %v1326
    %v2279 = vpack.c.b16 %v1331, %v1327
    %v2280 = vpack.c.b16 %v1336, %v1332
    %v2281 = vpack.c.b16 %v1337, %v1333
    %v2282 = vpack.c.b16 %v1338, %v1334
    %v2283 = vpack.c.b16 %v1339, %v1335
    %v2284 = vpack.c.b16 %v1344, %v1340
    %v2285 = vpack.c.b16 %v1345, %v1341
    %v2286 = vpack.c.b16 %v1346, %v1342
    %v2287 = vpack.c.b16 %v1347, %v1343
    %v2288 = vpack.c.b16 %v1352, %v1348
    %v2289 = vpack.c.b16 %v1353, %v1349
    %v2290 = vpack.c.b16 %v1354, %v1350
    %v2291 = vpack.c.b16 %v1355, %v1351
    %v2292 = vpack.c.b16 %v1360, %v1356
    %v2293 = vpack.c.b16 %v1361, %v1357
    %v2294 = vpack.c.b16 %v1362, %v1358
    %v2295 = vpack.c.b16 %v1363, %v1359
    %v2296 = vpack.c.b16 %v1368, %v1364
    %v2297 = vpack.c.b16 %v1369, %v1365
    %v2298 = vpack.c.b16 %v1370, %v1366
    %v2299 = vpack.c.b16 %v1371, %v1367
    %v2300 = vpack.c.b16 %v1376, %v1372
    %v2301 = vpack.c.b16 %v1377, %v1373
    %v2302 = vpack.c.b16 %v1378, %v1374
    %v2303 = vpack.c.b16 %v1379, %v1375
    %v2304 = vpack.c.b16 %v1384, %v1380
    %v2305 = vpack.c.b16 %v1385, %v1381
    %v2306 = vpack.c.b16 %v1386, %v1382
    %v2307 = vpack.c.b16 %v1387, %v1383
    %v2308 = vpack.c.b16 %v1392, %v1388
    %v2309 = vpack.c.b16 %v1393, %v1389
    %v2310 = vpack.c.b16 %v1394, %v1390
    %v2311 = vpack.c.b16 %v1395, %v1391
    %v2312 = vpack.c.b16 %v1400, %v1396
    %v2313 = vpack.c.b16 %v1401, %v1397
    %v2314 = vpack.c.b16 %v1402, %v1398
    %v2315 = vpack.c.b16 %v1403, %v1399
    %v2316 = vpack.c.b16 %v1408, %v1404
    %v2317 = vpack.c.b16 %v1409, %v1405
    %v2318 = vpack.c.b16 %v1410, %v1406
    %v2319 = vpack.c.b16 %v1411, %v1407
    %v2320 = vpack.c.b16 %v1416, %v1412
    %v2321 = vpack.c.b16 %v1417, %v1413
    %v2322 = vpack.c.b16 %v1418, %v1414
    %v2323 = vpack.c.b16 %v1419, %v1415
    %v2324 = vpack.c.b16 %v1424, %v1420
    %v2325 = vpack.c.b16 %v1425, %v1421
    %v2326 = vpack.c.b16 %v1426, %v1422
    %v2327 = vpack.c.b16 %v1427, %v1423
    %v2328 = vpack.c.b16 %v1432, %v1428
    %v2329 = vpack.c.b16 %v1433, %v1429
    %v2330 = vpack.c.b16 %v1434, %v1430
    %v2331 = vpack.c.b16 %v1435, %v1431
    %v2332 = vpack.c.b16 %v1440, %v1436
    %v2333 = vpack.c.b16 %v1441, %v1437
    %v2334 = vpack.c.b16 %v1442, %v1438
    %v2335 = vpack.c.b16 %v1443, %v1439
    %v2336 = vpack.c.b16 %v1448, %v1444
    %v2337 = vpack.c.b16 %v1449, %v1445
    %v2338 = vpack.c.b16 %v1450, %v1446
    %v2339 = vpack.c.b16 %v1451, %v1447
    %v2340 = vpack.c.b16 %v1456, %v1452
    %v2341 = vpack.c.b16 %v1457, %v1453
    %v2342 = vpack.c.b16 %v1458, %v1454
    %v2343 = vpack.c.b16 %v1459, %v1455
    %v2344 = vpack.c.b16 %v1464, %v1460
    %v2345 = vpack.c.b16 %v1465, %v1461
    %v2346 = vpack.c.b16 %v1466, %v1462
    %v2347 = vpack.c.b16 %v1467, %v1463
    %v2348 = vpack.c.b16 %v1472, %v1468
    %v2349 = vpack.c.b16 %v1473, %v1469
    %v2350 = vpack.c.b16 %v1474, %v1470
    %v2351 = vpack.c.b16 %v1475, %v1471
    %v2352 = vpack.c.b16 %v1480, %v1476
    %v2353 = vpack.c.b16 %v1481, %v1477
    %v2354 = vpack.c.b16 %v1482, %v1478
    %v2355 = vpack.c.b16 %v1483, %v1479
    %v2356 = vpack.c.b16 %v1488, %v1484
    %v2357 = vpack.c.b16 %v1489, %v1485
    %v2358 = vpack.c.b16 %v1490, %v1486
    %v2359 = vpack.c.b16 %v1491, %v1487
    %v2360 = vpack.c.b16 %v1496, %v1492
    %v2361 = vpack.c.b16 %v1497, %v1493
    %v2362 = vpack.c.b16 %v1498, %v1494
    %v2363 = vpack.c.b16 %v1499, %v1495
    %v2364 = vpack.c.b16 %v1504, %v1500
    %v2365 = vpack.c.b16 %v1505, %v1501
    %v2366 = vpack.c.b16 %v1506, %v1502
    %v2367 = vpack.c.b16 %v1507, %v1503
    %v2368 = vpack.c.b16 %v1512, %v1508
    %v2369 = vpack.c.b16 %v1513, %v1509
    %v2370 = vpack.c.b16 %v1514, %v1510
    %v2371 = vpack.c.b16 %v1515, %v1511
    %v2372 = vpack.c.b16 %v1520, %v1516
    %v2373 = vpack.c.b16 %v1521, %v1517
    %v2374 = vpack.c.b16 %v1522, %v1518
    %v2375 = vpack.c.b16 %v1523, %v1519
    %v2376 = vpack.c.b16 %v1528, %v1524
    %v2377 = vpack.c.b16 %v1529, %v1525
    %v2378 = vpack.c.b16 %v1530, %v1526
    %v2379 = vpack.c.b16 %v1531, %v1527
    %v2380 = vpack.c.b16 %v1536, %v1532
    %v2381 = vpack.c.b16 %v1537, %v1533
    %v2382 = vpack.c.b16 %v1538, %v1534
    %v2383 = vpack.c.b16 %v1539, %v1535
    %v2384 = vpack.c.b16 %v1544, %v1540
    %v2385 = vpack.c.b16 %v1545, %v1541
    %v2386 = vpack.c.b16 %v1546, %v1542
    %v2387 = vpack.c.b16 %v1547, %v1543
    %v2388 = vpack.c.b16 %v1552, %v1548
    %v2389 = vpack.c.b16 %v1553, %v1549
    %v2390 = vpack.c.b16 %v1554, %v1550
    %v2391 = vpack.c.b16 %v1555, %v1551
    %v2392 = vpack.c.b16 %v1560, %v1556
    %v2393 = vpack.c.b16 %v1561, %v1557
    %v2394 = vpack.c.b16 %v1562, %v1558
    %v2395 = vpack.c.b16 %v1563, %v1559
    %v2396 = vpack.c.b16 %v1568, %v1564
    %v2397 = vpack.c.b16 %v1569, %v1565
    %v2398 = vpack.c.b16 %v1570, %v1566
    %v2399 = vpack.c.b16 %v1571, %v1567
    %v2400 = vpack.c.b16 %v1576, %v1572
    %v2401 = vpack.c.b16 %v1577, %v1573
    %v2402 = vpack.c.b16 %v1578, %v1574
    %v2403 = vpack.c.b16 %v1579, %v1575
    %v2404 = vpack.c.b16 %v1584, %v1580
    %v2405 = vpack.c.b16 %v1585, %v1581
    %v2406 = vpack.c.b16 %v1586, %v1582
    %v2407 = vpack.c.b16 %v1587, %v1583
    %v2408 = vpack.c.b16 %v1592, %v1588
    %v2409 = vpack.c.b16 %v1593, %v1589
    %v2410 = vpack.c.b16 %v1594, %v1590
    %v2411 = vpack.c.b16 %v1595, %v1591
    %v2412 = vpack.c.b16 %v1600, %v1596
    %v2413 = vpack.c.b16 %v1601, %v1597
    %v2414 = vpack.c.b16 %v1602, %v1598
    %v2415 = vpack.c.b16 %v1603, %v1599
    %v2416 = vpack.c.b16 %v1608, %v1604
    %v2417 = vpack.c.b16 %v1609, %v1605
    %v2418 = vpack.c.b16 %v1610, %v1606
    %v2419 = vpack.c.b16 %v1611, %v1607
    %v2420 = vpack.c.b16 %v1616, %v1612
    %v2421 = vpack.c.b16 %v1617, %v1613
    %v2422 = vpack.c.b16 %v1618, %v1614
    %v2423 = vpack.c.b16 %v1619, %v1615
    %v2424 = vpack.c.b16 %v1624, %v1620
    %v2425 = vpack.c.b16 %v1625, %v1621
    %v2426 = vpack.c.b16 %v1626, %v1622
    %v2427 = vpack.c.b16 %v1627, %v1623
    %v2428 = vpack.c.b16 %v1632, %v1628
    %v2429 = vpack.c.b16 %v1633, %v1629
    %v2430 = vpack.c.b16 %v1634, %v1630
    %v2431 = vpack.c.b16 %v1635, %v1631
    %v2432 = vpack.c.b16 %v1640, %v1636
    %v2433 = vpack.c.b16 %v1641, %v1637
    %v2434 = vpack.c.b16 %v1642, %v1638
    %v2435 = vpack.c.b16 %v1643, %v1639
    %v2436 = vpack.c.b16 %v1648, %v1644
    %v2437 = vpack.c.b16 %v1649, %v1645
    %v2438 = vpack.c.b16 %v1650, %v1646
    %v2439 = vpack.c.b16 %v1651, %v1647
    %v2440 = vpack.c.b16 %v1656, %v1652
    %v2441 = vpack.c.b16 %v1657, %v1653
    %v2442 = vpack.c.b16 %v1658, %v1654
    %v2443 = vpack.c.b16 %v1659, %v1655
    %v2444 = vpack.c.b16 %v1664, %v1660
    %v2445 = vpack.c.b16 %v1665, %v1661
    %v2446 = vpack.c.b16 %v1666, %v1662
    %v2447 = vpack.c.b16 %v1667, %v1663
    %v2448 = vpack.c.b16 %v1672, %v1668
    %v2449 = vpack.c.b16 %v1673, %v1669
    %v2450 = vpack.c.b16 %v1674, %v1670
    %v2451 = vpack.c.b16 %v1675, %v1671
    %v2452 = vpack.c.b16 %v1680, %v1676
    %v2453 = vpack.c.b16 %v1681, %v1677
    %v2454 = vpack.c.b16 %v1682, %v1678
    %v2455 = vpack.c.b16 %v1683, %v1679
    %v2456 = vpack.c.b16 %v1688, %v1684
    %v2457 = vpack.c.b16 %v1689, %v1685
    %v2458 = vpack.c.b16 %v1690, %v1686
    %v2459 = vpack.c.b16 %v1691, %v1687
    %v2460 = vpack.c.b16 %v1696, %v1692
    %v2461 = vpack.c.b16 %v1697, %v1693
    %v2462 = vpack.c.b16 %v1698, %v1694
    %v2463 = vpack.c.b16 %v1699, %v1695
    %v2464 = vpack.c.b16 %v1704, %v1700
    %v2465 = vpack.c.b16 %v1705, %v1701
    %v2466 = vpack.c.b16 %v1706, %v1702
    %v2467 = vpack.c.b16 %v1707, %v1703
    %v2468 = vpack.c.b16 %v1712, %v1708
    %v2469 = vpack.c.b16 %v1713, %v1709
    %v2470 = vpack.c.b16 %v1714, %v1710
    %v2471 = vpack.c.b16 %v1715, %v1711
    %v2472 = vpack.c.b16 %v1720, %v1716
    %v2473 = vpack.c.b16 %v1721, %v1717
    %v2474 = vpack.c.b16 %v1722, %v1718
    %v2475 = vpack.c.b16 %v1723, %v1719
    %v2476 = vpack.c.b16 %v1728, %v1724
    %v2477 = vpack.c.b16 %v1729, %v1725
    %v2478 = vpack.c.b16 %v1730, %v1726
    %v2479 = vpack.c.b16 %v1731, %v1727
    %v2480 = vpack.c.b16 %v1736, %v1732
    %v2481 = vpack.c.b16 %v1737, %v1733
    %v2482 = vpack.c.b16 %v1738, %v1734
    %v2483 = vpack.c.b16 %v1739, %v1735
    %v2484 = vpack.c.b16 %v1744, %v1740
    %v2485 = vpack.c.b16 %v1745, %v1741
    %v2486 = vpack.c.b16 %v1746, %v1742
    %v2487 = vpack.c.b16 %v1747, %v1743
    %v2488 = vpack.c.b16 %v1752, %v1748
    %v2489 = vpack.c.b16 %v1753, %v1749
    %v2490 = vpack.c.b16 %v1754, %v1750
    %v2491 = vpack.c.b16 %v1755, %v1751
    %v2492 = vpack.c.b16 %v1760, %v1756
    %v2493 = vpack.c.b16 %v1761, %v1757
    %v2494 = vpack.c.b16 %v1762, %v1758
    %v2495 = vpack.c.b16 %v1763, %v1759
    %v2496 = vpack.c.b16 %v1768, %v1764
    %v2497 = vpack.c.b16 %v1769, %v1765
    %v2498 = vpack.c.b16 %v1770, %v1766
    %v2499 = vpack.c.b16 %v1771, %v1767
    %v2500 = vpack.c.b16 %v1776, %v1772
    %v2501 = vpack.c.b16 %v1777, %v1773
    %v2502 = vpack.c.b16 %v1778, %v1774
    %v2503 = vpack.c.b16 %v1779, %v1775
    %v2504 = vpack.c.b16 %v1784, %v1780
    %v2505 = vpack.c.b16 %v1785, %v1781
    %v2506 = vpack.c.b16 %v1786, %v1782
    %v2507 = vpack.c.b16 %v1787, %v1783
    %v2508 = vpack.c.b16 %v1792, %v1788
    %v2509 = vpack.c.b16 %v1793, %v1789
    %v2510 = vpack.c.b16 %v1794, %v1790
    %v2511 = vpack.c.b16 %v1795, %v1791
    %v2512 = vpack.c.b16 %v1800, %v1796
    %v2513 = vpack.c.b16 %v1801, %v1797
    %v2514 = vpack.c.b16 %v1802, %v1798
    %v2515 = vpack.c.b16 %v1803, %v1799
    %v2516 = vpack.c.b16 %v1808, %v1804
    %v2517 = vpack.c.b16 %v1809, %v1805
    %v2518 = vpack.c.b16 %v1810, %v1806
    %v2519 = vpack.c.b16 %v1811, %v1807
    %v2520 = vpack.c.b16 %v1816, %v1812
    %v2521 = vpack.c.b16 %v1817, %v1813
    %v2522 = vpack.c.b16 %v1818, %v1814
    %v2523 = vpack.c.b16 %v1819, %v1815
    %v2524 = vpack.c.b16 %v1824, %v1820
    %v2525 = vpack.c.b16 %v1825, %v1821
    %v2526 = vpack.c.b16 %v1826, %v1822
    %v2527 = vpack.c.b16 %v1827, %v1823
    %v2528 = vpack.c.b16 %v1832, %v1828
    %v2529 = vpack.c.b16 %v1833, %v1829
    %v2530 = vpack.c.b16 %v1834, %v1830
    %v2531 = vpack.c.b16 %v1835, %v1831
    %v2532 = vpack.c.b16 %v1840, %v1836
    %v2533 = vpack.c.b16 %v1841, %v1837
    %v2534 = vpack.c.b16 %v1842, %v1838
    %v2535 = vpack.c.b16 %v1843, %v1839
    %v2536 = vpack.c.b16 %v1848, %v1844
    %v2537 = vpack.c.b16 %v1849, %v1845
    %v2538 = vpack.c.b16 %v1850, %v1846
    %v2539 = vpack.c.b16 %v1851, %v1847
    %v2540 = vpack.c.b16 %v1856, %v1852
    %v2541 = vpack.c.b16 %v1857, %v1853
    %v2542 = vpack.c.b16 %v1858, %v1854
    %v2543 = vpack.c.b16 %v1859, %v1855
    %v2544 = vpack.c.b16 %v1864, %v1860
    %v2545 = vpack.c.b16 %v1865, %v1861
    %v2546 = vpack.c.b16 %v1866, %v1862
    %v2547 = vpack.c.b16 %v1867, %v1863
    %v2548 = vpack.c.b16 %v1872, %v1868
    %v2549 = vpack.c.b16 %v1873, %v1869
    %v2550 = vpack.c.b16 %v1874, %v1870
    %v2551 = vpack.c.b16 %v1875, %v1871
    %v2552 = vpack.c.b16 %v1880, %v1876
    %v2553 = vpack.c.b16 %v1881, %v1877
    %v2554 = vpack.c.b16 %v1882, %v1878
    %v2555 = vpack.c.b16 %v1883, %v1879
    %v2556 = vpack.c.b16 %v1888, %v1884
    %v2557 = vpack.c.b16 %v1889, %v1885
    %v2558 = vpack.c.b16 %v1890, %v1886
    %v2559 = vpack.c.b16 %v1891, %v1887
    %v2560 = vpack.c.b16 %v1896, %v1892
    %v2561 = vpack.c.b16 %v1897, %v1893
    %v2562 = vpack.c.b16 %v1898, %v1894
    %v2563 = vpack.c.b16 %v1899, %v1895
    %v2564 = vpack.c.b16 %v1904, %v1900
    %v2565 = vpack.c.b16 %v1905, %v1901
    %v2566 = vpack.c.b16 %v1906, %v1902
    %v2567 = vpack.c.b16 %v1907, %v1903
    %v2568 = vpack.c.b16 %v1912, %v1908
    %v2569 = vpack.c.b16 %v1913, %v1909
    %v2570 = vpack.c.b16 %v1914, %v1910
    %v2571 = vpack.c.b16 %v1915, %v1911
    %v2572 = vpack.c.b16 %v1920, %v1916
    %v2573 = vpack.c.b16 %v1921, %v1917
    %v2574 = vpack.c.b16 %v1922, %v1918
    %v2575 = vpack.c.b16 %v1923, %v1919
    %v2576 = vpack.c.b16 %v1928, %v1924
    %v2577 = vpack.c.b16 %v1929, %v1925
    %v2578 = vpack.c.b16 %v1930, %v1926
    %v2579 = vpack.c.b16 %v1931, %v1927
    %v2580 = vpack.c.b16 %v1936, %v1932
    %v2581 = vpack.c.b16 %v1937, %v1933
    %v2582 = vpack.c.b16 %v1938, %v1934
    %v2583 = vpack.c.b16 %v1939, %v1935
    %v2584 = vpack.c.b16 %v1944, %v1940
    %v2585 = vpack.c.b16 %v1945, %v1941
    %v2586 = vpack.c.b16 %v1946, %v1942
    %v2587 = vpack.c.b16 %v1947, %v1943
    %v2588 = vpack.c.b16 %v1952, %v1948
    %v2589 = vpack.c.b16 %v1953, %v1949
    %v2590 = vpack.c.b16 %v1954, %v1950
    %v2591 = vpack.c.b16 %v1955, %v1951
    %v2592 = vpack.c.b16 %v1960, %v1956
    %v2593 = vpack.c.b16 %v1961, %v1957
    %v2594 = vpack.c.b16 %v1962, %v1958
    %v2595 = vpack.c.b16 %v1963, %v1959
    %v2596 = vpack.c.b16 %v1968, %v1964
    %v2597 = vpack.c.b16 %v1969, %v1965
    %v2598 = vpack.c.b16 %v1970, %v1966
    %v2599 = vpack.c.b16 %v1971, %v1967
    %v2600 = vpack.c.b16 %v1976, %v1972
    %v2601 = vpack.c.b16 %v1977, %v1973
    %v2602 = vpack.c.b16 %v1978, %v1974
    %v2603 = vpack.c.b16 %v1979, %v1975
    %v2604 = vpack.c.b16 %v1984, %v1980
    %v2605 = vpack.c.b16 %v1985, %v1981
    %v2606 = vpack.c.b16 %v1986, %v1982
    %v2607 = vpack.c.b16 %v1987, %v1983
    %v2608 = vpack.c.b16 %v1992, %v1988
    %v2609 = vpack.c.b16 %v1993, %v1989
    %v2610 = vpack.c.b16 %v1994, %v1990
    %v2611 = vpack.c.b16 %v1995, %v1991
    %v2612 = vpack.c.b16 %v2000, %v1996
    %v2613 = vpack.c.b16 %v2001, %v1997
    %v2614 = vpack.c.b16 %v2002, %v1998
    %v2615 = vpack.c.b16 %v2003, %v1999
    %v2616 = vpack.c.b16 %v2008, %v2004
    %v2617 = vpack.c.b16 %v2009, %v2005
    %v2618 = vpack.c.b16 %v2010, %v2006
    %v2619 = vpack.c.b16 %v2011, %v2007
    %v2620 = vpack.c.b16 %v2016, %v2012
    %v2621 = vpack.c.b16 %v2017, %v2013
    %v2622 = vpack.c.b16 %v2018, %v2014
    %v2623 = vpack.c.b16 %v2019, %v2015
    %v2624 = vpack.c.b16 %v2024, %v2020
    %v2625 = vpack.c.b16 %v2025, %v2021
    %v2626 = vpack.c.b16 %v2026, %v2022
    %v2627 = vpack.c.b16 %v2027, %v2023
    %v2628 = vpack.c.b16 %v2032, %v2028
    %v2629 = vpack.c.b16 %v2033, %v2029
    %v2630 = vpack.c.b16 %v2034, %v2030
    %v2631 = vpack.c.b16 %v2035, %v2031
    %v2632 = vpack.c.b16 %v2040, %v2036
    %v2633 = vpack.c.b16 %v2041, %v2037
    %v2634 = vpack.c.b16 %v2042, %v2038
    %v2635 = vpack.c.b16 %v2043, %v2039
    %v2636 = vpack.c.b16 %v2048, %v2044
    %v2637 = vpack.c.b16 %v2049, %v2045
    %v2638 = vpack.c.b16 %v2050, %v2046
    %v2639 = vpack.c.b16 %v2051, %v2047
    %v2640 = vpack.c.b16 %v2056, %v2052
    %v2641 = vpack.c.b16 %v2057, %v2053
    %v2642 = vpack.c.b16 %v2058, %v2054
    %v2643 = vpack.c.b16 %v2059, %v2055
    %v2644 = vpack.c.b16 %v2064, %v2060
    %v2645 = vpack.c.b16 %v2065, %v2061
    %v2646 = vpack.c.b16 %v2066, %v2062
    %v2647 = vpack.c.b16 %v2067, %v2063
    %v2648 = vpack.c.b16 %v2072, %v2068
    %v2649 = vpack.c.b16 %v2073, %v2069
    %v2650 = vpack.c.b16 %v2074, %v2070
    %v2651 = vpack.c.b16 %v2075, %v2071
    %v2652 = vpack.c.b16 %v2080, %v2076
    %v2653 = vpack.c.b16 %v2081, %v2077
    %v2654 = vpack.c.b16 %v2082, %v2078
    %v2655 = vpack.c.b16 %v2083, %v2079
    %v2656 = vpack.c.b16 %v2088, %v2084
    %v2657 = vpack.c.b16 %v2089, %v2085
    %v2658 = vpack.c.b16 %v2090, %v2086
    %v2659 = vpack.c.b16 %v2091, %v2087
    %v2660 = vpack.c.b16 %v2096, %v2092
    %v2661 = vpack.c.b16 %v2097, %v2093
    %v2662 = vpack.c.b16 %v2098, %v2094
    %v2663 = vpack.c.b16 %v2099, %v2095
    %v2664 = vpack.c.b16 %v2104, %v2100
    %v2665 = vpack.c.b16 %v2105, %v2101
    %v2666 = vpack.c.b16 %v2106, %v2102
    %v2667 = vpack.c.b16 %v2107, %v2103
    %v2668 = vpack.c.b16 %v2112, %v2108
    %v2669 = vpack.c.b16 %v2113, %v2109
    %v2670 = vpack.c.b16 %v2114, %v2110
    %v2671 = vpack.c.b16 %v2115, %v2111
    %v2672 = vpack.c.b16 %v2120, %v2116
    %v2673 = vpack.c.b16 %v2121, %v2117
    %v2674 = vpack.c.b16 %v2122, %v2118
    %v2675 = vpack.c.b16 %v2123, %v2119
    %v2676 = vpack.c.b16 %v2128, %v2124
    %v2677 = vpack.c.b16 %v2129, %v2125
    %v2678 = vpack.c.b16 %v2130, %v2126
    %v2679 = vpack.c.b16 %v2131, %v2127
    %v2680 = vpack.c.b16 %v2136, %v2132
    %v2681 = vpack.c.b16 %v2137, %v2133
    %v2682 = vpack.c.b16 %v2138, %v2134
    %v2683 = vpack.c.b16 %v2139, %v2135
    %v2684 = vpack.c.b16 %v2144, %v2140
    %v2685 = vpack.c.b16 %v2145, %v2141
    %v2686 = vpack.c.b16 %v2146, %v2142
    %v2687 = vpack.c.b16 %v2147, %v2143
    %v2688 = vpack.c.b16 %v2152, %v2148
    %v2689 = vpack.c.b16 %v2153, %v2149
    %v2690 = vpack.c.b16 %v2154, %v2150
    %v2691 = vpack.c.b16 %v2155, %v2151
    %v2692 = vpack.c.b16 %v2160, %v2156
    %v2693 = vpack.c.b16 %v2161, %v2157
    %v2694 = vpack.c.b16 %v2162, %v2158
    %v2695 = vpack.c.b16 %v2163, %v2159
    %v2696 = vpack.c.b16 %v2168, %v2164
    %v2697 = vpack.c.b16 %v2169, %v2165
    %v2698 = vpack.c.b16 %v2170, %v2166
    %v2699 = vpack.c.b16 %v2171, %v2167
    %v2700 = vpack.c.b16 %v2176, %v2172
    %v2701 = vpack.c.b16 %v2177, %v2173
    %v2702 = vpack.c.b16 %v2178, %v2174
    %v2703 = vpack.c.b16 %v2179, %v2175
    %v2704 = vpack.c.b16 %v2184, %v2180
    %v2705 = vpack.c.b16 %v2185, %v2181
    %v2706 = vpack.c.b16 %v2186, %v2182
    %v2707 = vpack.c.b16 %v2187, %v2183
    %v2708 = vpack.c.b16 %v2192, %v2188
    %v2709 = vpack.c.b16 %v2193, %v2189
    %v2710 = vpack.c.b16 %v2194, %v2190
    %v2711 = vpack.c.b16 %v2195, %v2191
    %v2712 = vpack.c.b16 %v2200, %v2196
    %v2713 = vpack.c.b16 %v2201, %v2197
    %v2714 = vpack.c.b16 %v2202, %v2198
    %v2715 = vpack.c.b16 %v2203, %v2199
    %3228 = vmatpush.bf16.msra.mxu0 %v2232
    %3229 = vmatpush.bf16.msra.mxu0 %v2228
    %3230 = vmatpush.bf16.msra.mxu0 %v2224
    %3231 = vmatpush.bf16.msra.mxu0 %v2220
    %3232 = vmatpush.bf16.msra.mxu0 %v2216
    %3233 = vmatpush.bf16.msra.mxu0 %v2212
    %3234 = vmatpush.bf16.msra.mxu0 %v2208
    %3235 = vmatpush.bf16.msra.mxu0 %v2204
    %3236 = vmatmul.bf16.gmra.mxu0 %v636
    %v3237 = vpop.f32.mrf.mxu0
    %v3238 = vadd.f32 %v604, %v3237
    %v3239 = vpop.f32.mrf.mxu0
    %3240 = vdwg.mxu0
    %3241 = vmatpush.bf16.msra.mxu0 %v2264
    %3242 = vmatpush.bf16.msra.mxu0 %v2260
    %3243 = vmatpush.bf16.msra.mxu0 %v2256
    %3244 = vmatpush.bf16.msra.mxu0 %v2252
    %3245 = vmatpush.bf16.msra.mxu0 %v2248
    %3246 = vmatpush.bf16.msra.mxu0 %v2244
    %3247 = vmatpush.bf16.msra.mxu0 %v2240
    %3248 = vmatpush.bf16.msra.mxu0 %v2236
    %3249 = vmatmul.bf16.gmra.mxu0 %v637
    %v3250 = vpop.f32.mrf.mxu0
    %v3251 = vadd.f32 %v3238, %v3250
    %v3252 = vpop.f32.mrf.mxu0
    %3253 = vdwg.mxu0
    %3254 = vmatpush.bf16.msra.mxu0 %v2296
    %3255 = vmatpush.bf16.msra.mxu0 %v2292
    %3256 = vmatpush.bf16.msra.mxu0 %v2288
    %3257 = vmatpush.bf16.msra.mxu0 %v2284
    %3258 = vmatpush.bf16.msra.mxu0 %v2280
    %3259 = vmatpush.bf16.msra.mxu0 %v2276
    %3260 = vmatpush.bf16.msra.mxu0 %v2272
    %3261 = vmatpush.bf16.msra.mxu0 %v2268
    %3262 = vmatmul.bf16.gmra.mxu0 %v638
    %v3263 = vpop.f32.mrf.mxu0
    %v3264 = vadd.f32 %v3251, %v3263
    %v3265 = vpop.f32.mrf.mxu0
    %3266 = vdwg.mxu0
    %3267 = vmatpush.bf16.msra.mxu0 %v2328
    %3268 = vmatpush.bf16.msra.mxu0 %v2324
    %3269 = vmatpush.bf16.msra.mxu0 %v2320
    %3270 = vmatpush.bf16.msra.mxu0 %v2316
    %3271 = vmatpush.bf16.msra.mxu0 %v2312
    %3272 = vmatpush.bf16.msra.mxu0 %v2308
    %3273 = vmatpush.bf16.msra.mxu0 %v2304
    %3274 = vmatpush.bf16.msra.mxu0 %v2300
    %3275 = vmatmul.bf16.gmra.mxu0 %v639
    %v3276 = vpop.f32.mrf.mxu0
    %v3277 = vadd.f32 %v3264, %v3276
    %v3278 = vpop.f32.mrf.mxu0
    %3279 = vdwg.mxu0
    %3280 = vmatpush.bf16.msra.mxu0 %v2360
    %3281 = vmatpush.bf16.msra.mxu0 %v2356
    %3282 = vmatpush.bf16.msra.mxu0 %v2352
    %3283 = vmatpush.bf16.msra.mxu0 %v2348
    %3284 = vmatpush.bf16.msra.mxu0 %v2344
    %3285 = vmatpush.bf16.msra.mxu0 %v2340
    %3286 = vmatpush.bf16.msra.mxu0 %v2336
    %3287 = vmatpush.bf16.msra.mxu0 %v2332
    %3288 = vmatmul.bf16.gmra.mxu0 %v640
    %v3289 = vpop.f32.mrf.mxu0
    %v3290 = vadd.f32 %v3277, %v3289
    %v3291 = vpop.f32.mrf.mxu0
    %3292 = vdwg.mxu0
    %3293 = vmatpush.bf16.msra.mxu0 %v2392
    %3294 = vmatpush.bf16.msra.mxu0 %v2388
    %3295 = vmatpush.bf16.msra.mxu0 %v2384
    %3296 = vmatpush.bf16.msra.mxu0 %v2380
    %3297 = vmatpush.bf16.msra.mxu0 %v2376
    %3298 = vmatpush.bf16.msra.mxu0 %v2372
    %3299 = vmatpush.bf16.msra.mxu0 %v2368
    %3300 = vmatpush.bf16.msra.mxu0 %v2364
    %3301 = vmatmul.bf16.gmra.mxu0 %v641
    %v3302 = vpop.f32.mrf.mxu0
    %v3303 = vadd.f32 %v3290, %v3302
    %v3304 = vpop.f32.mrf.mxu0
    %3305 = vdwg.mxu0
    %3306 = vmatpush.bf16.msra.mxu0 %v2424
    %3307 = vmatpush.bf16.msra.mxu0 %v2420
    %3308 = vmatpush.bf16.msra.mxu0 %v2416
    %3309 = vmatpush.bf16.msra.mxu0 %v2412
    %3310 = vmatpush.bf16.msra.mxu0 %v2408
    %3311 = vmatpush.bf16.msra.mxu0 %v2404
    %3312 = vmatpush.bf16.msra.mxu0 %v2400
    %3313 = vmatpush.bf16.msra.mxu0 %v2396
    %3314 = vmatmul.bf16.gmra.mxu0 %v642
    %v3315 = vpop.f32.mrf.mxu0
    %v3316 = vadd.f32 %v3303, %v3315
    %v3317 = vpop.f32.mrf.mxu0
    %3318 = vdwg.mxu0
    %3319 = vmatpush.bf16.msra.mxu0 %v2456
    %3320 = vmatpush.bf16.msra.mxu0 %v2452
    %3321 = vmatpush.bf16.msra.mxu0 %v2448
    %3322 = vmatpush.bf16.msra.mxu0 %v2444
    %3323 = vmatpush.bf16.msra.mxu0 %v2440
    %3324 = vmatpush.bf16.msra.mxu0 %v2436
    %3325 = vmatpush.bf16.msra.mxu0 %v2432
    %3326 = vmatpush.bf16.msra.mxu0 %v2428
    %3327 = vmatmul.bf16.gmra.mxu0 %v643
    %v3328 = vpop.f32.mrf.mxu0
    %v3329 = vadd.f32 %v3316, %v3328
    %v3330 = vpop.f32.mrf.mxu0
    %3331 = vdwg.mxu0
    %3332 = vmatpush.bf16.msra.mxu0 %v2488
    %3333 = vmatpush.bf16.msra.mxu0 %v2484
    %3334 = vmatpush.bf16.msra.mxu0 %v2480
    %3335 = vmatpush.bf16.msra.mxu0 %v2476
    %3336 = vmatpush.bf16.msra.mxu0 %v2472
    %3337 = vmatpush.bf16.msra.mxu0 %v2468
    %3338 = vmatpush.bf16.msra.mxu0 %v2464
    %3339 = vmatpush.bf16.msra.mxu0 %v2460
    %3340 = vmatmul.bf16.gmra.mxu0 %v644
    %v3341 = vpop.f32.mrf.mxu0
    %v3342 = vadd.f32 %v3329, %v3341
    %v3343 = vpop.f32.mrf.mxu0
    %3344 = vdwg.mxu0
    %3345 = vmatpush.bf16.msra.mxu0 %v2520
    %3346 = vmatpush.bf16.msra.mxu0 %v2516
    %3347 = vmatpush.bf16.msra.mxu0 %v2512
    %3348 = vmatpush.bf16.msra.mxu0 %v2508
    %3349 = vmatpush.bf16.msra.mxu0 %v2504
    %3350 = vmatpush.bf16.msra.mxu0 %v2500
    %3351 = vmatpush.bf16.msra.mxu0 %v2496
    %3352 = vmatpush.bf16.msra.mxu0 %v2492
    %3353 = vmatmul.bf16.gmra.mxu0 %v645
    %v3354 = vpop.f32.mrf.mxu0
    %v3355 = vadd.f32 %v3342, %v3354
    %v3356 = vpop.f32.mrf.mxu0
    %3357 = vdwg.mxu0
    %3358 = vmatpush.bf16.msra.mxu0 %v2552
    %3359 = vmatpush.bf16.msra.mxu0 %v2548
    %3360 = vmatpush.bf16.msra.mxu0 %v2544
    %3361 = vmatpush.bf16.msra.mxu0 %v2540
    %3362 = vmatpush.bf16.msra.mxu0 %v2536
    %3363 = vmatpush.bf16.msra.mxu0 %v2532
    %3364 = vmatpush.bf16.msra.mxu0 %v2528
    %3365 = vmatpush.bf16.msra.mxu0 %v2524
    %3366 = vmatmul.bf16.gmra.mxu0 %v646
    %v3367 = vpop.f32.mrf.mxu0
    %v3368 = vadd.f32 %v3355, %v3367
    %v3369 = vpop.f32.mrf.mxu0
    %3370 = vdwg.mxu0
    %3371 = vmatpush.bf16.msra.mxu0 %v2584
    %3372 = vmatpush.bf16.msra.mxu0 %v2580
    %3373 = vmatpush.bf16.msra.mxu0 %v2576
    %3374 = vmatpush.bf16.msra.mxu0 %v2572
    %3375 = vmatpush.bf16.msra.mxu0 %v2568
    %3376 = vmatpush.bf16.msra.mxu0 %v2564
    %3377 = vmatpush.bf16.msra.mxu0 %v2560
    %3378 = vmatpush.bf16.msra.mxu0 %v2556
    %3379 = vmatmul.bf16.gmra.mxu0 %v647
    %v3380 = vpop.f32.mrf.mxu0
    %v3381 = vadd.f32 %v3368, %v3380
    %v3382 = vpop.f32.mrf.mxu0
    %3383 = vdwg.mxu0
    %3384 = vmatpush.bf16.msra.mxu0 %v2616
    %3385 = vmatpush.bf16.msra.mxu0 %v2612
    %3386 = vmatpush.bf16.msra.mxu0 %v2608
    %3387 = vmatpush.bf16.msra.mxu0 %v2604
    %3388 = vmatpush.bf16.msra.mxu0 %v2600
    %3389 = vmatpush.bf16.msra.mxu0 %v2596
    %3390 = vmatpush.bf16.msra.mxu0 %v2592
    %3391 = vmatpush.bf16.msra.mxu0 %v2588
    %3392 = vmatmul.bf16.gmra.mxu0 %v648
    %v3393 = vpop.f32.mrf.mxu0
    %v3394 = vadd.f32 %v3381, %v3393
    %v3395 = vpop.f32.mrf.mxu0
    %3396 = vdwg.mxu0
    %3397 = vmatpush.bf16.msra.mxu0 %v2648
    %3398 = vmatpush.bf16.msra.mxu0 %v2644
    %3399 = vmatpush.bf16.msra.mxu0 %v2640
    %3400 = vmatpush.bf16.msra.mxu0 %v2636
    %3401 = vmatpush.bf16.msra.mxu0 %v2632
    %3402 = vmatpush.bf16.msra.mxu0 %v2628
    %3403 = vmatpush.bf16.msra.mxu0 %v2624
    %3404 = vmatpush.bf16.msra.mxu0 %v2620
    %3405 = vmatmul.bf16.gmra.mxu0 %v649
    %v3406 = vpop.f32.mrf.mxu0
    %v3407 = vadd.f32 %v3394, %v3406
    %v3408 = vpop.f32.mrf.mxu0
    %3409 = vdwg.mxu0
    %3410 = vmatpush.bf16.msra.mxu0 %v2680
    %3411 = vmatpush.bf16.msra.mxu0 %v2676
    %3412 = vmatpush.bf16.msra.mxu0 %v2672
    %3413 = vmatpush.bf16.msra.mxu0 %v2668
    %3414 = vmatpush.bf16.msra.mxu0 %v2664
    %3415 = vmatpush.bf16.msra.mxu0 %v2660
    %3416 = vmatpush.bf16.msra.mxu0 %v2656
    %3417 = vmatpush.bf16.msra.mxu0 %v2652
    %3418 = vmatmul.bf16.gmra.mxu0 %v650
    %v3419 = vpop.f32.mrf.mxu0
    %v3420 = vadd.f32 %v3407, %v3419
    %v3421 = vpop.f32.mrf.mxu0
    %3422 = vdwg.mxu0
    %3423 = vmatpush.bf16.msra.mxu0 %v2712
    %3424 = vmatpush.bf16.msra.mxu0 %v2708
    %3425 = vmatpush.bf16.msra.mxu0 %v2704
    %3426 = vmatpush.bf16.msra.mxu0 %v2700
    %3427 = vmatpush.bf16.msra.mxu0 %v2696
    %3428 = vmatpush.bf16.msra.mxu0 %v2692
    %3429 = vmatpush.bf16.msra.mxu0 %v2688
    %3430 = vmatpush.bf16.msra.mxu0 %v2684
    %3431 = vmatmul.bf16.gmra.mxu0 %v651
    %v3432 = vpop.f32.mrf.mxu0
    %v3433 = vadd.f32 %v3420, %v3432
    %v3434 = vpop.f32.mrf.mxu0
    %3435 = vdwg.mxu0
    %3436 = vmatpush.bf16.msra.mxu0 %v2233
    %3437 = vmatpush.bf16.msra.mxu0 %v2229
    %3438 = vmatpush.bf16.msra.mxu0 %v2225
    %3439 = vmatpush.bf16.msra.mxu0 %v2221
    %3440 = vmatpush.bf16.msra.mxu0 %v2217
    %3441 = vmatpush.bf16.msra.mxu0 %v2213
    %3442 = vmatpush.bf16.msra.mxu0 %v2209
    %3443 = vmatpush.bf16.msra.mxu0 %v2205
    %3444 = vmatmul.bf16.gmra.mxu0 %v636
    %v3445 = vpop.f32.mrf.mxu0
    %v3446 = vadd.f32 %v605, %v3445
    %v3447 = vpop.f32.mrf.mxu0
    %3448 = vdwg.mxu0
    %3449 = vmatpush.bf16.msra.mxu0 %v2265
    %3450 = vmatpush.bf16.msra.mxu0 %v2261
    %3451 = vmatpush.bf16.msra.mxu0 %v2257
    %3452 = vmatpush.bf16.msra.mxu0 %v2253
    %3453 = vmatpush.bf16.msra.mxu0 %v2249
    %3454 = vmatpush.bf16.msra.mxu0 %v2245
    %3455 = vmatpush.bf16.msra.mxu0 %v2241
    %3456 = vmatpush.bf16.msra.mxu0 %v2237
    %3457 = vmatmul.bf16.gmra.mxu0 %v637
    %v3458 = vpop.f32.mrf.mxu0
    %v3459 = vadd.f32 %v3446, %v3458
    %v3460 = vpop.f32.mrf.mxu0
    %3461 = vdwg.mxu0
    %3462 = vmatpush.bf16.msra.mxu0 %v2297
    %3463 = vmatpush.bf16.msra.mxu0 %v2293
    %3464 = vmatpush.bf16.msra.mxu0 %v2289
    %3465 = vmatpush.bf16.msra.mxu0 %v2285
    %3466 = vmatpush.bf16.msra.mxu0 %v2281
    %3467 = vmatpush.bf16.msra.mxu0 %v2277
    %3468 = vmatpush.bf16.msra.mxu0 %v2273
    %3469 = vmatpush.bf16.msra.mxu0 %v2269
    %3470 = vmatmul.bf16.gmra.mxu0 %v638
    %v3471 = vpop.f32.mrf.mxu0
    %v3472 = vadd.f32 %v3459, %v3471
    %v3473 = vpop.f32.mrf.mxu0
    %3474 = vdwg.mxu0
    %3475 = vmatpush.bf16.msra.mxu0 %v2329
    %3476 = vmatpush.bf16.msra.mxu0 %v2325
    %3477 = vmatpush.bf16.msra.mxu0 %v2321
    %3478 = vmatpush.bf16.msra.mxu0 %v2317
    %3479 = vmatpush.bf16.msra.mxu0 %v2313
    %3480 = vmatpush.bf16.msra.mxu0 %v2309
    %3481 = vmatpush.bf16.msra.mxu0 %v2305
    %3482 = vmatpush.bf16.msra.mxu0 %v2301
    %3483 = vmatmul.bf16.gmra.mxu0 %v639
    %v3484 = vpop.f32.mrf.mxu0
    %v3485 = vadd.f32 %v3472, %v3484
    %v3486 = vpop.f32.mrf.mxu0
    %3487 = vdwg.mxu0
    %3488 = vmatpush.bf16.msra.mxu0 %v2361
    %3489 = vmatpush.bf16.msra.mxu0 %v2357
    %3490 = vmatpush.bf16.msra.mxu0 %v2353
    %3491 = vmatpush.bf16.msra.mxu0 %v2349
    %3492 = vmatpush.bf16.msra.mxu0 %v2345
    %3493 = vmatpush.bf16.msra.mxu0 %v2341
    %3494 = vmatpush.bf16.msra.mxu0 %v2337
    %3495 = vmatpush.bf16.msra.mxu0 %v2333
    %3496 = vmatmul.bf16.gmra.mxu0 %v640
    %v3497 = vpop.f32.mrf.mxu0
    %v3498 = vadd.f32 %v3485, %v3497
    %v3499 = vpop.f32.mrf.mxu0
    %3500 = vdwg.mxu0
    %3501 = vmatpush.bf16.msra.mxu0 %v2393
    %3502 = vmatpush.bf16.msra.mxu0 %v2389
    %3503 = vmatpush.bf16.msra.mxu0 %v2385
    %3504 = vmatpush.bf16.msra.mxu0 %v2381
    %3505 = vmatpush.bf16.msra.mxu0 %v2377
    %3506 = vmatpush.bf16.msra.mxu0 %v2373
    %3507 = vmatpush.bf16.msra.mxu0 %v2369
    %3508 = vmatpush.bf16.msra.mxu0 %v2365
    %3509 = vmatmul.bf16.gmra.mxu0 %v641
    %v3510 = vpop.f32.mrf.mxu0
    %v3511 = vadd.f32 %v3498, %v3510
    %v3512 = vpop.f32.mrf.mxu0
    %3513 = vdwg.mxu0
    %3514 = vmatpush.bf16.msra.mxu0 %v2425
    %3515 = vmatpush.bf16.msra.mxu0 %v2421
    %3516 = vmatpush.bf16.msra.mxu0 %v2417
    %3517 = vmatpush.bf16.msra.mxu0 %v2413
    %3518 = vmatpush.bf16.msra.mxu0 %v2409
    %3519 = vmatpush.bf16.msra.mxu0 %v2405
    %3520 = vmatpush.bf16.msra.mxu0 %v2401
    %3521 = vmatpush.bf16.msra.mxu0 %v2397
    %3522 = vmatmul.bf16.gmra.mxu0 %v642
    %v3523 = vpop.f32.mrf.mxu0
    %v3524 = vadd.f32 %v3511, %v3523
    %v3525 = vpop.f32.mrf.mxu0
    %3526 = vdwg.mxu0
    %3527 = vmatpush.bf16.msra.mxu0 %v2457
    %3528 = vmatpush.bf16.msra.mxu0 %v2453
    %3529 = vmatpush.bf16.msra.mxu0 %v2449
    %3530 = vmatpush.bf16.msra.mxu0 %v2445
    %3531 = vmatpush.bf16.msra.mxu0 %v2441
    %3532 = vmatpush.bf16.msra.mxu0 %v2437
    %3533 = vmatpush.bf16.msra.mxu0 %v2433
    %3534 = vmatpush.bf16.msra.mxu0 %v2429
    %3535 = vmatmul.bf16.gmra.mxu0 %v643
    %v3536 = vpop.f32.mrf.mxu0
    %v3537 = vadd.f32 %v3524, %v3536
    %v3538 = vpop.f32.mrf.mxu0
    %3539 = vdwg.mxu0
    %3540 = vmatpush.bf16.msra.mxu0 %v2489
    %3541 = vmatpush.bf16.msra.mxu0 %v2485
    %3542 = vmatpush.bf16.msra.mxu0 %v2481
    %3543 = vmatpush.bf16.msra.mxu0 %v2477
    %3544 = vmatpush.bf16.msra.mxu0 %v2473
    %3545 = vmatpush.bf16.msra.mxu0 %v2469
    %3546 = vmatpush.bf16.msra.mxu0 %v2465
    %3547 = vmatpush.bf16.msra.mxu0 %v2461
    %3548 = vmatmul.bf16.gmra.mxu0 %v644
    %v3549 = vpop.f32.mrf.mxu0
    %v3550 = vadd.f32 %v3537, %v3549
    %v3551 = vpop.f32.mrf.mxu0
    %3552 = vdwg.mxu0
    %3553 = vmatpush.bf16.msra.mxu0 %v2521
    %3554 = vmatpush.bf16.msra.mxu0 %v2517
    %3555 = vmatpush.bf16.msra.mxu0 %v2513
    %3556 = vmatpush.bf16.msra.mxu0 %v2509
    %3557 = vmatpush.bf16.msra.mxu0 %v2505
    %3558 = vmatpush.bf16.msra.mxu0 %v2501
    %3559 = vmatpush.bf16.msra.mxu0 %v2497
    %3560 = vmatpush.bf16.msra.mxu0 %v2493
    %3561 = vmatmul.bf16.gmra.mxu0 %v645
    %v3562 = vpop.f32.mrf.mxu0
    %v3563 = vadd.f32 %v3550, %v3562
    %v3564 = vpop.f32.mrf.mxu0
    %3565 = vdwg.mxu0
    %3566 = vmatpush.bf16.msra.mxu0 %v2553
    %3567 = vmatpush.bf16.msra.mxu0 %v2549
    %3568 = vmatpush.bf16.msra.mxu0 %v2545
    %3569 = vmatpush.bf16.msra.mxu0 %v2541
    %3570 = vmatpush.bf16.msra.mxu0 %v2537
    %3571 = vmatpush.bf16.msra.mxu0 %v2533
    %3572 = vmatpush.bf16.msra.mxu0 %v2529
    %3573 = vmatpush.bf16.msra.mxu0 %v2525
    %3574 = vmatmul.bf16.gmra.mxu0 %v646
    %v3575 = vpop.f32.mrf.mxu0
    %v3576 = vadd.f32 %v3563, %v3575
    %v3577 = vpop.f32.mrf.mxu0
    %3578 = vdwg.mxu0
    %3579 = vmatpush.bf16.msra.mxu0 %v2585
    %3580 = vmatpush.bf16.msra.mxu0 %v2581
    %3581 = vmatpush.bf16.msra.mxu0 %v2577
    %3582 = vmatpush.bf16.msra.mxu0 %v2573
    %3583 = vmatpush.bf16.msra.mxu0 %v2569
    %3584 = vmatpush.bf16.msra.mxu0 %v2565
    %3585 = vmatpush.bf16.msra.mxu0 %v2561
    %3586 = vmatpush.bf16.msra.mxu0 %v2557
    %3587 = vmatmul.bf16.gmra.mxu0 %v647
    %v3588 = vpop.f32.mrf.mxu0
    %v3589 = vadd.f32 %v3576, %v3588
    %v3590 = vpop.f32.mrf.mxu0
    %3591 = vdwg.mxu0
    %3592 = vmatpush.bf16.msra.mxu0 %v2617
    %3593 = vmatpush.bf16.msra.mxu0 %v2613
    %3594 = vmatpush.bf16.msra.mxu0 %v2609
    %3595 = vmatpush.bf16.msra.mxu0 %v2605
    %3596 = vmatpush.bf16.msra.mxu0 %v2601
    %3597 = vmatpush.bf16.msra.mxu0 %v2597
    %3598 = vmatpush.bf16.msra.mxu0 %v2593
    %3599 = vmatpush.bf16.msra.mxu0 %v2589
    %3600 = vmatmul.bf16.gmra.mxu0 %v648
    %v3601 = vpop.f32.mrf.mxu0
    %v3602 = vadd.f32 %v3589, %v3601
    %v3603 = vpop.f32.mrf.mxu0
    %3604 = vdwg.mxu0
    %3605 = vmatpush.bf16.msra.mxu0 %v2649
    %3606 = vmatpush.bf16.msra.mxu0 %v2645
    %3607 = vmatpush.bf16.msra.mxu0 %v2641
    %3608 = vmatpush.bf16.msra.mxu0 %v2637
    %3609 = vmatpush.bf16.msra.mxu0 %v2633
    %3610 = vmatpush.bf16.msra.mxu0 %v2629
    %3611 = vmatpush.bf16.msra.mxu0 %v2625
    %3612 = vmatpush.bf16.msra.mxu0 %v2621
    %3613 = vmatmul.bf16.gmra.mxu0 %v649
    %v3614 = vpop.f32.mrf.mxu0
    %v3615 = vadd.f32 %v3602, %v3614
    %v3616 = vpop.f32.mrf.mxu0
    %3617 = vdwg.mxu0
    %3618 = vmatpush.bf16.msra.mxu0 %v2681
    %3619 = vmatpush.bf16.msra.mxu0 %v2677
    %3620 = vmatpush.bf16.msra.mxu0 %v2673
    %3621 = vmatpush.bf16.msra.mxu0 %v2669
    %3622 = vmatpush.bf16.msra.mxu0 %v2665
    %3623 = vmatpush.bf16.msra.mxu0 %v2661
    %3624 = vmatpush.bf16.msra.mxu0 %v2657
    %3625 = vmatpush.bf16.msra.mxu0 %v2653
    %3626 = vmatmul.bf16.gmra.mxu0 %v650
    %v3627 = vpop.f32.mrf.mxu0
    %v3628 = vadd.f32 %v3615, %v3627
    %v3629 = vpop.f32.mrf.mxu0
    %3630 = vdwg.mxu0
    %3631 = vmatpush.bf16.msra.mxu0 %v2713
    %3632 = vmatpush.bf16.msra.mxu0 %v2709
    %3633 = vmatpush.bf16.msra.mxu0 %v2705
    %3634 = vmatpush.bf16.msra.mxu0 %v2701
    %3635 = vmatpush.bf16.msra.mxu0 %v2697
    %3636 = vmatpush.bf16.msra.mxu0 %v2693
    %3637 = vmatpush.bf16.msra.mxu0 %v2689
    %3638 = vmatpush.bf16.msra.mxu0 %v2685
    %3639 = vmatmul.bf16.gmra.mxu0 %v651
    %v3640 = vpop.f32.mrf.mxu0
    %v3641 = vadd.f32 %v3628, %v3640
    %v3642 = vpop.f32.mrf.mxu0
    %3643 = vdwg.mxu0
    %3644 = vmatpush.bf16.msra.mxu0 %v2234
    %3645 = vmatpush.bf16.msra.mxu0 %v2230
    %3646 = vmatpush.bf16.msra.mxu0 %v2226
    %3647 = vmatpush.bf16.msra.mxu0 %v2222
    %3648 = vmatpush.bf16.msra.mxu0 %v2218
    %3649 = vmatpush.bf16.msra.mxu0 %v2214
    %3650 = vmatpush.bf16.msra.mxu0 %v2210
    %3651 = vmatpush.bf16.msra.mxu0 %v2206
    %3652 = vmatmul.bf16.gmra.mxu0 %v636
    %v3653 = vpop.f32.mrf.mxu0
    %v3654 = vadd.f32 %v606, %v3653
    %v3655 = vpop.f32.mrf.mxu0
    %3656 = vdwg.mxu0
    %3657 = vmatpush.bf16.msra.mxu0 %v2266
    %3658 = vmatpush.bf16.msra.mxu0 %v2262
    %3659 = vmatpush.bf16.msra.mxu0 %v2258
    %3660 = vmatpush.bf16.msra.mxu0 %v2254
    %3661 = vmatpush.bf16.msra.mxu0 %v2250
    %3662 = vmatpush.bf16.msra.mxu0 %v2246
    %3663 = vmatpush.bf16.msra.mxu0 %v2242
    %3664 = vmatpush.bf16.msra.mxu0 %v2238
    %3665 = vmatmul.bf16.gmra.mxu0 %v637
    %v3666 = vpop.f32.mrf.mxu0
    %v3667 = vadd.f32 %v3654, %v3666
    %v3668 = vpop.f32.mrf.mxu0
    %3669 = vdwg.mxu0
    %3670 = vmatpush.bf16.msra.mxu0 %v2298
    %3671 = vmatpush.bf16.msra.mxu0 %v2294
    %3672 = vmatpush.bf16.msra.mxu0 %v2290
    %3673 = vmatpush.bf16.msra.mxu0 %v2286
    %3674 = vmatpush.bf16.msra.mxu0 %v2282
    %3675 = vmatpush.bf16.msra.mxu0 %v2278
    %3676 = vmatpush.bf16.msra.mxu0 %v2274
    %3677 = vmatpush.bf16.msra.mxu0 %v2270
    %3678 = vmatmul.bf16.gmra.mxu0 %v638
    %v3679 = vpop.f32.mrf.mxu0
    %v3680 = vadd.f32 %v3667, %v3679
    %v3681 = vpop.f32.mrf.mxu0
    %3682 = vdwg.mxu0
    %3683 = vmatpush.bf16.msra.mxu0 %v2330
    %3684 = vmatpush.bf16.msra.mxu0 %v2326
    %3685 = vmatpush.bf16.msra.mxu0 %v2322
    %3686 = vmatpush.bf16.msra.mxu0 %v2318
    %3687 = vmatpush.bf16.msra.mxu0 %v2314
    %3688 = vmatpush.bf16.msra.mxu0 %v2310
    %3689 = vmatpush.bf16.msra.mxu0 %v2306
    %3690 = vmatpush.bf16.msra.mxu0 %v2302
    %3691 = vmatmul.bf16.gmra.mxu0 %v639
    %v3692 = vpop.f32.mrf.mxu0
    %v3693 = vadd.f32 %v3680, %v3692
    %v3694 = vpop.f32.mrf.mxu0
    %3695 = vdwg.mxu0
    %3696 = vmatpush.bf16.msra.mxu0 %v2362
    %3697 = vmatpush.bf16.msra.mxu0 %v2358
    %3698 = vmatpush.bf16.msra.mxu0 %v2354
    %3699 = vmatpush.bf16.msra.mxu0 %v2350
    %3700 = vmatpush.bf16.msra.mxu0 %v2346
    %3701 = vmatpush.bf16.msra.mxu0 %v2342
    %3702 = vmatpush.bf16.msra.mxu0 %v2338
    %3703 = vmatpush.bf16.msra.mxu0 %v2334
    %3704 = vmatmul.bf16.gmra.mxu0 %v640
    %v3705 = vpop.f32.mrf.mxu0
    %v3706 = vadd.f32 %v3693, %v3705
    %v3707 = vpop.f32.mrf.mxu0
    %3708 = vdwg.mxu0
    %3709 = vmatpush.bf16.msra.mxu0 %v2394
    %3710 = vmatpush.bf16.msra.mxu0 %v2390
    %3711 = vmatpush.bf16.msra.mxu0 %v2386
    %3712 = vmatpush.bf16.msra.mxu0 %v2382
    %3713 = vmatpush.bf16.msra.mxu0 %v2378
    %3714 = vmatpush.bf16.msra.mxu0 %v2374
    %3715 = vmatpush.bf16.msra.mxu0 %v2370
    %3716 = vmatpush.bf16.msra.mxu0 %v2366
    %3717 = vmatmul.bf16.gmra.mxu0 %v641
    %v3718 = vpop.f32.mrf.mxu0
    %v3719 = vadd.f32 %v3706, %v3718
    %v3720 = vpop.f32.mrf.mxu0
    %3721 = vdwg.mxu0
    %3722 = vmatpush.bf16.msra.mxu0 %v2426
    %3723 = vmatpush.bf16.msra.mxu0 %v2422
    %3724 = vmatpush.bf16.msra.mxu0 %v2418
    %3725 = vmatpush.bf16.msra.mxu0 %v2414
    %3726 = vmatpush.bf16.msra.mxu0 %v2410
    %3727 = vmatpush.bf16.msra.mxu0 %v2406
    %3728 = vmatpush.bf16.msra.mxu0 %v2402
    %3729 = vmatpush.bf16.msra.mxu0 %v2398
    %3730 = vmatmul.bf16.gmra.mxu0 %v642
    %v3731 = vpop.f32.mrf.mxu0
    %v3732 = vadd.f32 %v3719, %v3731
    %v3733 = vpop.f32.mrf.mxu0
    %3734 = vdwg.mxu0
    %3735 = vmatpush.bf16.msra.mxu0 %v2458
    %3736 = vmatpush.bf16.msra.mxu0 %v2454
    %3737 = vmatpush.bf16.msra.mxu0 %v2450
    %3738 = vmatpush.bf16.msra.mxu0 %v2446
    %3739 = vmatpush.bf16.msra.mxu0 %v2442
    %3740 = vmatpush.bf16.msra.mxu0 %v2438
    %3741 = vmatpush.bf16.msra.mxu0 %v2434
    %3742 = vmatpush.bf16.msra.mxu0 %v2430
    %3743 = vmatmul.bf16.gmra.mxu0 %v643
    %v3744 = vpop.f32.mrf.mxu0
    %v3745 = vadd.f32 %v3732, %v3744
    %v3746 = vpop.f32.mrf.mxu0
    %3747 = vdwg.mxu0
    %3748 = vmatpush.bf16.msra.mxu0 %v2490
    %3749 = vmatpush.bf16.msra.mxu0 %v2486
    %3750 = vmatpush.bf16.msra.mxu0 %v2482
    %3751 = vmatpush.bf16.msra.mxu0 %v2478
    %3752 = vmatpush.bf16.msra.mxu0 %v2474
    %3753 = vmatpush.bf16.msra.mxu0 %v2470
    %3754 = vmatpush.bf16.msra.mxu0 %v2466
    %3755 = vmatpush.bf16.msra.mxu0 %v2462
    %3756 = vmatmul.bf16.gmra.mxu0 %v644
    %v3757 = vpop.f32.mrf.mxu0
    %v3758 = vadd.f32 %v3745, %v3757
    %v3759 = vpop.f32.mrf.mxu0
    %3760 = vdwg.mxu0
    %3761 = vmatpush.bf16.msra.mxu0 %v2522
    %3762 = vmatpush.bf16.msra.mxu0 %v2518
    %3763 = vmatpush.bf16.msra.mxu0 %v2514
    %3764 = vmatpush.bf16.msra.mxu0 %v2510
    %3765 = vmatpush.bf16.msra.mxu0 %v2506
    %3766 = vmatpush.bf16.msra.mxu0 %v2502
    %3767 = vmatpush.bf16.msra.mxu0 %v2498
    %3768 = vmatpush.bf16.msra.mxu0 %v2494
    %3769 = vmatmul.bf16.gmra.mxu0 %v645
    %v3770 = vpop.f32.mrf.mxu0
    %v3771 = vadd.f32 %v3758, %v3770
    %v3772 = vpop.f32.mrf.mxu0
    %3773 = vdwg.mxu0
    %3774 = vmatpush.bf16.msra.mxu0 %v2554
    %3775 = vmatpush.bf16.msra.mxu0 %v2550
    %3776 = vmatpush.bf16.msra.mxu0 %v2546
    %3777 = vmatpush.bf16.msra.mxu0 %v2542
    %3778 = vmatpush.bf16.msra.mxu0 %v2538
    %3779 = vmatpush.bf16.msra.mxu0 %v2534
    %3780 = vmatpush.bf16.msra.mxu0 %v2530
    %3781 = vmatpush.bf16.msra.mxu0 %v2526
    %3782 = vmatmul.bf16.gmra.mxu0 %v646
    %v3783 = vpop.f32.mrf.mxu0
    %v3784 = vadd.f32 %v3771, %v3783
    %v3785 = vpop.f32.mrf.mxu0
    %3786 = vdwg.mxu0
    %3787 = vmatpush.bf16.msra.mxu0 %v2586
    %3788 = vmatpush.bf16.msra.mxu0 %v2582
    %3789 = vmatpush.bf16.msra.mxu0 %v2578
    %3790 = vmatpush.bf16.msra.mxu0 %v2574
    %3791 = vmatpush.bf16.msra.mxu0 %v2570
    %3792 = vmatpush.bf16.msra.mxu0 %v2566
    %3793 = vmatpush.bf16.msra.mxu0 %v2562
    %3794 = vmatpush.bf16.msra.mxu0 %v2558
    %3795 = vmatmul.bf16.gmra.mxu0 %v647
    %v3796 = vpop.f32.mrf.mxu0
    %v3797 = vadd.f32 %v3784, %v3796
    %v3798 = vpop.f32.mrf.mxu0
    %3799 = vdwg.mxu0
    %3800 = vmatpush.bf16.msra.mxu0 %v2618
    %3801 = vmatpush.bf16.msra.mxu0 %v2614
    %3802 = vmatpush.bf16.msra.mxu0 %v2610
    %3803 = vmatpush.bf16.msra.mxu0 %v2606
    %3804 = vmatpush.bf16.msra.mxu0 %v2602
    %3805 = vmatpush.bf16.msra.mxu0 %v2598
    %3806 = vmatpush.bf16.msra.mxu0 %v2594
    %3807 = vmatpush.bf16.msra.mxu0 %v2590
    %3808 = vmatmul.bf16.gmra.mxu0 %v648
    %v3809 = vpop.f32.mrf.mxu0
    %v3810 = vadd.f32 %v3797, %v3809
    %v3811 = vpop.f32.mrf.mxu0
    %3812 = vdwg.mxu0
    %3813 = vmatpush.bf16.msra.mxu0 %v2650
    %3814 = vmatpush.bf16.msra.mxu0 %v2646
    %3815 = vmatpush.bf16.msra.mxu0 %v2642
    %3816 = vmatpush.bf16.msra.mxu0 %v2638
    %3817 = vmatpush.bf16.msra.mxu0 %v2634
    %3818 = vmatpush.bf16.msra.mxu0 %v2630
    %3819 = vmatpush.bf16.msra.mxu0 %v2626
    %3820 = vmatpush.bf16.msra.mxu0 %v2622
    %3821 = vmatmul.bf16.gmra.mxu0 %v649
    %v3822 = vpop.f32.mrf.mxu0
    %v3823 = vadd.f32 %v3810, %v3822
    %v3824 = vpop.f32.mrf.mxu0
    %3825 = vdwg.mxu0
    %3826 = vmatpush.bf16.msra.mxu0 %v2682
    %3827 = vmatpush.bf16.msra.mxu0 %v2678
    %3828 = vmatpush.bf16.msra.mxu0 %v2674
    %3829 = vmatpush.bf16.msra.mxu0 %v2670
    %3830 = vmatpush.bf16.msra.mxu0 %v2666
    %3831 = vmatpush.bf16.msra.mxu0 %v2662
    %3832 = vmatpush.bf16.msra.mxu0 %v2658
    %3833 = vmatpush.bf16.msra.mxu0 %v2654
    %3834 = vmatmul.bf16.gmra.mxu0 %v650
    %v3835 = vpop.f32.mrf.mxu0
    %v3836 = vadd.f32 %v3823, %v3835
    %v3837 = vpop.f32.mrf.mxu0
    %3838 = vdwg.mxu0
    %3839 = vmatpush.bf16.msra.mxu0 %v2714
    %3840 = vmatpush.bf16.msra.mxu0 %v2710
    %3841 = vmatpush.bf16.msra.mxu0 %v2706
    %3842 = vmatpush.bf16.msra.mxu0 %v2702
    %3843 = vmatpush.bf16.msra.mxu0 %v2698
    %3844 = vmatpush.bf16.msra.mxu0 %v2694
    %3845 = vmatpush.bf16.msra.mxu0 %v2690
    %3846 = vmatpush.bf16.msra.mxu0 %v2686
    %3847 = vmatmul.bf16.gmra.mxu0 %v651
    %v3848 = vpop.f32.mrf.mxu0
    %v3849 = vadd.f32 %v3836, %v3848
    %v3850 = vpop.f32.mrf.mxu0
    %3851 = vdwg.mxu0
    %3852 = vmatpush.bf16.msra.mxu0 %v2235
    %3853 = vmatpush.bf16.msra.mxu0 %v2231
    %3854 = vmatpush.bf16.msra.mxu0 %v2227
    %3855 = vmatpush.bf16.msra.mxu0 %v2223
    %3856 = vmatpush.bf16.msra.mxu0 %v2219
    %3857 = vmatpush.bf16.msra.mxu0 %v2215
    %3858 = vmatpush.bf16.msra.mxu0 %v2211
    %3859 = vmatpush.bf16.msra.mxu0 %v2207
    %3860 = vmatmul.bf16.gmra.mxu0 %v636
    %v3861 = vpop.f32.mrf.mxu0
    %v3862 = vadd.f32 %v607, %v3861
    %v3863 = vpop.f32.mrf.mxu0
    %3864 = vdwg.mxu0
    %3865 = vmatpush.bf16.msra.mxu0 %v2267
    %3866 = vmatpush.bf16.msra.mxu0 %v2263
    %3867 = vmatpush.bf16.msra.mxu0 %v2259
    %3868 = vmatpush.bf16.msra.mxu0 %v2255
    %3869 = vmatpush.bf16.msra.mxu0 %v2251
    %3870 = vmatpush.bf16.msra.mxu0 %v2247
    %3871 = vmatpush.bf16.msra.mxu0 %v2243
    %3872 = vmatpush.bf16.msra.mxu0 %v2239
    %3873 = vmatmul.bf16.gmra.mxu0 %v637
    %v3874 = vpop.f32.mrf.mxu0
    %v3875 = vadd.f32 %v3862, %v3874
    %v3876 = vpop.f32.mrf.mxu0
    %3877 = vdwg.mxu0
    %3878 = vmatpush.bf16.msra.mxu0 %v2299
    %3879 = vmatpush.bf16.msra.mxu0 %v2295
    %3880 = vmatpush.bf16.msra.mxu0 %v2291
    %3881 = vmatpush.bf16.msra.mxu0 %v2287
    %3882 = vmatpush.bf16.msra.mxu0 %v2283
    %3883 = vmatpush.bf16.msra.mxu0 %v2279
    %3884 = vmatpush.bf16.msra.mxu0 %v2275
    %3885 = vmatpush.bf16.msra.mxu0 %v2271
    %3886 = vmatmul.bf16.gmra.mxu0 %v638
    %v3887 = vpop.f32.mrf.mxu0
    %v3888 = vadd.f32 %v3875, %v3887
    %v3889 = vpop.f32.mrf.mxu0
    %3890 = vdwg.mxu0
    %3891 = vmatpush.bf16.msra.mxu0 %v2331
    %3892 = vmatpush.bf16.msra.mxu0 %v2327
    %3893 = vmatpush.bf16.msra.mxu0 %v2323
    %3894 = vmatpush.bf16.msra.mxu0 %v2319
    %3895 = vmatpush.bf16.msra.mxu0 %v2315
    %3896 = vmatpush.bf16.msra.mxu0 %v2311
    %3897 = vmatpush.bf16.msra.mxu0 %v2307
    %3898 = vmatpush.bf16.msra.mxu0 %v2303
    %3899 = vmatmul.bf16.gmra.mxu0 %v639
    %v3900 = vpop.f32.mrf.mxu0
    %v3901 = vadd.f32 %v3888, %v3900
    %v3902 = vpop.f32.mrf.mxu0
    %3903 = vdwg.mxu0
    %3904 = vmatpush.bf16.msra.mxu0 %v2363
    %3905 = vmatpush.bf16.msra.mxu0 %v2359
    %3906 = vmatpush.bf16.msra.mxu0 %v2355
    %3907 = vmatpush.bf16.msra.mxu0 %v2351
    %3908 = vmatpush.bf16.msra.mxu0 %v2347
    %3909 = vmatpush.bf16.msra.mxu0 %v2343
    %3910 = vmatpush.bf16.msra.mxu0 %v2339
    %3911 = vmatpush.bf16.msra.mxu0 %v2335
    %3912 = vmatmul.bf16.gmra.mxu0 %v640
    %v3913 = vpop.f32.mrf.mxu0
    %v3914 = vadd.f32 %v3901, %v3913
    %v3915 = vpop.f32.mrf.mxu0
    %3916 = vdwg.mxu0
    %3917 = vmatpush.bf16.msra.mxu0 %v2395
    %3918 = vmatpush.bf16.msra.mxu0 %v2391
    %3919 = vmatpush.bf16.msra.mxu0 %v2387
    %3920 = vmatpush.bf16.msra.mxu0 %v2383
    %3921 = vmatpush.bf16.msra.mxu0 %v2379
    %3922 = vmatpush.bf16.msra.mxu0 %v2375
    %3923 = vmatpush.bf16.msra.mxu0 %v2371
    %3924 = vmatpush.bf16.msra.mxu0 %v2367
    %3925 = vmatmul.bf16.gmra.mxu0 %v641
    %v3926 = vpop.f32.mrf.mxu0
    %v3927 = vadd.f32 %v3914, %v3926
    %v3928 = vpop.f32.mrf.mxu0
    %3929 = vdwg.mxu0
    %3930 = vmatpush.bf16.msra.mxu0 %v2427
    %3931 = vmatpush.bf16.msra.mxu0 %v2423
    %3932 = vmatpush.bf16.msra.mxu0 %v2419
    %3933 = vmatpush.bf16.msra.mxu0 %v2415
    %3934 = vmatpush.bf16.msra.mxu0 %v2411
    %3935 = vmatpush.bf16.msra.mxu0 %v2407
    %3936 = vmatpush.bf16.msra.mxu0 %v2403
    %3937 = vmatpush.bf16.msra.mxu0 %v2399
    %3938 = vmatmul.bf16.gmra.mxu0 %v642
    %v3939 = vpop.f32.mrf.mxu0
    %v3940 = vadd.f32 %v3927, %v3939
    %v3941 = vpop.f32.mrf.mxu0
    %3942 = vdwg.mxu0
    %3943 = vmatpush.bf16.msra.mxu0 %v2459
    %3944 = vmatpush.bf16.msra.mxu0 %v2455
    %3945 = vmatpush.bf16.msra.mxu0 %v2451
    %3946 = vmatpush.bf16.msra.mxu0 %v2447
    %3947 = vmatpush.bf16.msra.mxu0 %v2443
    %3948 = vmatpush.bf16.msra.mxu0 %v2439
    %3949 = vmatpush.bf16.msra.mxu0 %v2435
    %3950 = vmatpush.bf16.msra.mxu0 %v2431
    %3951 = vmatmul.bf16.gmra.mxu0 %v643
    %v3952 = vpop.f32.mrf.mxu0
    %v3953 = vadd.f32 %v3940, %v3952
    %v3954 = vpop.f32.mrf.mxu0
    %3955 = vdwg.mxu0
    %3956 = vmatpush.bf16.msra.mxu0 %v2491
    %3957 = vmatpush.bf16.msra.mxu0 %v2487
    %3958 = vmatpush.bf16.msra.mxu0 %v2483
    %3959 = vmatpush.bf16.msra.mxu0 %v2479
    %3960 = vmatpush.bf16.msra.mxu0 %v2475
    %3961 = vmatpush.bf16.msra.mxu0 %v2471
    %3962 = vmatpush.bf16.msra.mxu0 %v2467
    %3963 = vmatpush.bf16.msra.mxu0 %v2463
    %3964 = vmatmul.bf16.gmra.mxu0 %v644
    %v3965 = vpop.f32.mrf.mxu0
    %v3966 = vadd.f32 %v3953, %v3965
    %v3967 = vpop.f32.mrf.mxu0
    %3968 = vdwg.mxu0
    %3969 = vmatpush.bf16.msra.mxu0 %v2523
    %3970 = vmatpush.bf16.msra.mxu0 %v2519
    %3971 = vmatpush.bf16.msra.mxu0 %v2515
    %3972 = vmatpush.bf16.msra.mxu0 %v2511
    %3973 = vmatpush.bf16.msra.mxu0 %v2507
    %3974 = vmatpush.bf16.msra.mxu0 %v2503
    %3975 = vmatpush.bf16.msra.mxu0 %v2499
    %3976 = vmatpush.bf16.msra.mxu0 %v2495
    %3977 = vmatmul.bf16.gmra.mxu0 %v645
    %v3978 = vpop.f32.mrf.mxu0
    %v3979 = vadd.f32 %v3966, %v3978
    %v3980 = vpop.f32.mrf.mxu0
    %3981 = vdwg.mxu0
    %3982 = vmatpush.bf16.msra.mxu0 %v2555
    %3983 = vmatpush.bf16.msra.mxu0 %v2551
    %3984 = vmatpush.bf16.msra.mxu0 %v2547
    %3985 = vmatpush.bf16.msra.mxu0 %v2543
    %3986 = vmatpush.bf16.msra.mxu0 %v2539
    %3987 = vmatpush.bf16.msra.mxu0 %v2535
    %3988 = vmatpush.bf16.msra.mxu0 %v2531
    %3989 = vmatpush.bf16.msra.mxu0 %v2527
    %3990 = vmatmul.bf16.gmra.mxu0 %v646
    %v3991 = vpop.f32.mrf.mxu0
    %v3992 = vadd.f32 %v3979, %v3991
    %v3993 = vpop.f32.mrf.mxu0
    %3994 = vdwg.mxu0
    %3995 = vmatpush.bf16.msra.mxu0 %v2587
    %3996 = vmatpush.bf16.msra.mxu0 %v2583
    %3997 = vmatpush.bf16.msra.mxu0 %v2579
    %3998 = vmatpush.bf16.msra.mxu0 %v2575
    %3999 = vmatpush.bf16.msra.mxu0 %v2571
    %4000 = vmatpush.bf16.msra.mxu0 %v2567
    %4001 = vmatpush.bf16.msra.mxu0 %v2563
    %4002 = vmatpush.bf16.msra.mxu0 %v2559
    %4003 = vmatmul.bf16.gmra.mxu0 %v647
    %v4004 = vpop.f32.mrf.mxu0
    %v4005 = vadd.f32 %v3992, %v4004
    %v4006 = vpop.f32.mrf.mxu0
    %4007 = vdwg.mxu0
    %4008 = vmatpush.bf16.msra.mxu0 %v2619
    %4009 = vmatpush.bf16.msra.mxu0 %v2615
    %4010 = vmatpush.bf16.msra.mxu0 %v2611
    %4011 = vmatpush.bf16.msra.mxu0 %v2607
    %4012 = vmatpush.bf16.msra.mxu0 %v2603
    %4013 = vmatpush.bf16.msra.mxu0 %v2599
    %4014 = vmatpush.bf16.msra.mxu0 %v2595
    %4015 = vmatpush.bf16.msra.mxu0 %v2591
    %4016 = vmatmul.bf16.gmra.mxu0 %v648
    %v4017 = vpop.f32.mrf.mxu0
    %v4018 = vadd.f32 %v4005, %v4017
    %v4019 = vpop.f32.mrf.mxu0
    %4020 = vdwg.mxu0
    %4021 = vmatpush.bf16.msra.mxu0 %v2651
    %4022 = vmatpush.bf16.msra.mxu0 %v2647
    %4023 = vmatpush.bf16.msra.mxu0 %v2643
    %4024 = vmatpush.bf16.msra.mxu0 %v2639
    %4025 = vmatpush.bf16.msra.mxu0 %v2635
    %4026 = vmatpush.bf16.msra.mxu0 %v2631
    %4027 = vmatpush.bf16.msra.mxu0 %v2627
    %4028 = vmatpush.bf16.msra.mxu0 %v2623
    %4029 = vmatmul.bf16.gmra.mxu0 %v649
    %v4030 = vpop.f32.mrf.mxu0
    %v4031 = vadd.f32 %v4018, %v4030
    %v4032 = vpop.f32.mrf.mxu0
    %4033 = vdwg.mxu0
    %4034 = vmatpush.bf16.msra.mxu0 %v2683
    %4035 = vmatpush.bf16.msra.mxu0 %v2679
    %4036 = vmatpush.bf16.msra.mxu0 %v2675
    %4037 = vmatpush.bf16.msra.mxu0 %v2671
    %4038 = vmatpush.bf16.msra.mxu0 %v2667
    %4039 = vmatpush.bf16.msra.mxu0 %v2663
    %4040 = vmatpush.bf16.msra.mxu0 %v2659
    %4041 = vmatpush.bf16.msra.mxu0 %v2655
    %4042 = vmatmul.bf16.gmra.mxu0 %v650
    %v4043 = vpop.f32.mrf.mxu0
    %v4044 = vadd.f32 %v4031, %v4043
    %v4045 = vpop.f32.mrf.mxu0
    %4046 = vdwg.mxu0
    %4047 = vmatpush.bf16.msra.mxu0 %v2715
    %4048 = vmatpush.bf16.msra.mxu0 %v2711
    %4049 = vmatpush.bf16.msra.mxu0 %v2707
    %4050 = vmatpush.bf16.msra.mxu0 %v2703
    %4051 = vmatpush.bf16.msra.mxu0 %v2699
    %4052 = vmatpush.bf16.msra.mxu0 %v2695
    %4053 = vmatpush.bf16.msra.mxu0 %v2691
    %4054 = vmatpush.bf16.msra.mxu0 %v2687
    %4055 = vmatmul.bf16.gmra.mxu0 %v651
    %v4056 = vpop.f32.mrf.mxu0
    %v4057 = vadd.f32 %v4044, %v4056
    %v4058 = vpop.f32.mrf.mxu0
    %4059 = vdwg.mxu0
    %v4060 = vmax.f32 %v3433, 0.0
    %v4061 = vmax.f32 %v3641, 0.0
    %v4062 = vmax.f32 %v3849, 0.0
    %v4063 = vmax.f32 %v4057, 0.0
    %v4064 = vld [vmem:[%s3] sm:$0xff]
    %v4065 = vld [vmem:[%s3 + $0x8] sm:$0xff]
    %v4066 = vld [vmem:[%s3 + $0x10] sm:$0xff]
    %v4067 = vld [vmem:[%s3 + $0x18] sm:$0xff]
    %v4068 = vld [vmem:[%s3 + $0x20] sm:$0xff]
    %v4069 = vld [vmem:[%s3 + $0x28] sm:$0xff]
    %v4070 = vld [vmem:[%s3 + $0x30] sm:$0xff]
    %v4071 = vld [vmem:[%s3 + $0x38] sm:$0xff]
    %v4072 = vld [vmem:[%s3 + $0x40] sm:$0xff]
    %v4073 = vld [vmem:[%s3 + $0x48] sm:$0xff]
    %v4074 = vld [vmem:[%s3 + $0x50] sm:$0xff]
    %v4075 = vld [vmem:[%s3 + $0x58] sm:$0xff]
    %v4076 = vld [vmem:[%s3 + $0x60] sm:$0xff]
    %v4077 = vld [vmem:[%s3 + $0x68] sm:$0xff]
    %v4078 = vld [vmem:[%s3 + $0x70] sm:$0xff]
    %v4079 = vld [vmem:[%s3 + $0x78] sm:$0xff]
    %v4080 = vld [vmem:[%s3 + $0x80] sm:$0xff]
    %v4081 = vld [vmem:[%s3 + $0x88] sm:$0xff]
    %v4082 = vld [vmem:[%s3 + $0x90] sm:$0xff]
    %v4083 = vld [vmem:[%s3 + $0x98] sm:$0xff]
    %v4084 = vld [vmem:[%s3 + $0xa0] sm:$0xff]
    %v4085 = vld [vmem:[%s3 + $0xa8] sm:$0xff]
    %v4086 = vld [vmem:[%s3 + $0xb0] sm:$0xff]
    %v4087 = vld [vmem:[%s3 + $0xb8] sm:$0xff]
    %v4088 = vld [vmem:[%s3 + $0xc0] sm:$0xff]
    %v4089 = vld [vmem:[%s3 + $0xc8] sm:$0xff]
    %v4090 = vld [vmem:[%s3 + $0xd0] sm:$0xff]
    %v4091 = vld [vmem:[%s3 + $0xd8] sm:$0xff]
    %v4092 = vld [vmem:[%s3 + $0xe0] sm:$0xff]
    %v4093 = vld [vmem:[%s3 + $0xe8] sm:$0xff]
    %v4094 = vld [vmem:[%s3 + $0xf0] sm:$0xff]
    %v4095 = vld [vmem:[%s3 + $0xf8] sm:$0xff]
    %v4096 = vld [vmem:[%s3 + $0x100] sm:$0xff]
    %v4097 = vld [vmem:[%s3 + $0x108] sm:$0xff]
    %v4098 = vld [vmem:[%s3 + $0x110] sm:$0xff]
    %v4099 = vld [vmem:[%s3 + $0x118] sm:$0xff]
    %v4100 = vld [vmem:[%s3 + $0x120] sm:$0xff]
    %v4101 = vld [vmem:[%s3 + $0x128] sm:$0xff]
    %v4102 = vld [vmem:[%s3 + $0x130] sm:$0xff]
    %v4103 = vld [vmem:[%s3 + $0x138] sm:$0xff]
    %v4104 = vld [vmem:[%s3 + $0x140] sm:$0xff]
    %v4105 = vld [vmem:[%s3 + $0x148] sm:$0xff]
    %v4106 = vld [vmem:[%s3 + $0x150] sm:$0xff]
    %v4107 = vld [vmem:[%s3 + $0x158] sm:$0xff]
    %v4108 = vld [vmem:[%s3 + $0x160] sm:$0xff]
    %v4109 = vld [vmem:[%s3 + $0x168] sm:$0xff]
    %v4110 = vld [vmem:[%s3 + $0x170] sm:$0xff]
    %v4111 = vld [vmem:[%s3 + $0x178] sm:$0xff]
    %v4112 = vld [vmem:[%s3 + $0x180] sm:$0xff]
    %v4113 = vld [vmem:[%s3 + $0x188] sm:$0xff]
    %v4114 = vld [vmem:[%s3 + $0x190] sm:$0xff]
    %v4115 = vld [vmem:[%s3 + $0x198] sm:$0xff]
    %v4116 = vld [vmem:[%s3 + $0x1a0] sm:$0xff]
    %v4117 = vld [vmem:[%s3 + $0x1a8] sm:$0xff]
    %v4118 = vld [vmem:[%s3 + $0x1b0] sm:$0xff]
    %v4119 = vld [vmem:[%s3 + $0x1b8] sm:$0xff]
    %v4120 = vld [vmem:[%s3 + $0x1c0] sm:$0xff]
    %v4121 = vld [vmem:[%s3 + $0x1c8] sm:$0xff]
    %v4122 = vld [vmem:[%s3 + $0x1d0] sm:$0xff]
    %v4123 = vld [vmem:[%s3 + $0x1d8] sm:$0xff]
    %v4124 = vld [vmem:[%s3 + $0x1e0] sm:$0xff]
    %v4125 = vld [vmem:[%s3 + $0x1e8] sm:$0xff]
    %v4126 = vld [vmem:[%s3 + $0x1f0] sm:$0xff]
    %v4127 = vld [vmem:[%s3 + $0x1f8] sm:$0xff]
    %v4128 = vld [vmem:[#allocation8] sm:$0x1]
    %v4130 = vperm.slane %v4128, 0
    %4132 = vmatpush.msra.mxu0 %v4079
    %4133 = vmatpush.msra.mxu0 %v4078
    %4134 = vmatpush.msra.mxu0 %v4077
    %4135 = vmatpush.msra.mxu0 %v4076
    %4136 = vmatpush.msra.mxu0 %v4075
    %4137 = vmatpush.msra.mxu0 %v4074
    %4138 = vmatpush.msra.mxu0 %v4073
    %4139 = vmatpush.msra.mxu0 %v4072
    %4140 = vmatpush.msra.mxu0 %v4071
    %4141 = vmatpush.msra.mxu0 %v4070
    %4142 = vmatpush.msra.mxu0 %v4069
    %4143 = vmatpush.msra.mxu0 %v4068
    %4144 = vmatpush.msra.mxu0 %v4067
    %4145 = vmatpush.msra.mxu0 %v4066
    %4146 = vmatpush.msra.mxu0 %v4065
    %4147 = vmatpush.msra.mxu0 %v4064
    %4148 = vmatmul.f32.gmra.mxu0 %v4060
    %v4149 = vpop.f32.mrf.mxu0
    %v4150 = vadd.f32 %v4130, %v4149
    %4151 = vdwg.mxu0
    %4152 = vmatpush.msra.mxu0 %v4095
    %4153 = vmatpush.msra.mxu0 %v4094
    %4154 = vmatpush.msra.mxu0 %v4093
    %4155 = vmatpush.msra.mxu0 %v4092
    %4156 = vmatpush.msra.mxu0 %v4091
    %4157 = vmatpush.msra.mxu0 %v4090
    %4158 = vmatpush.msra.mxu0 %v4089
    %4159 = vmatpush.msra.mxu0 %v4088
    %4160 = vmatpush.msra.mxu0 %v4087
    %4161 = vmatpush.msra.mxu0 %v4086
    %4162 = vmatpush.msra.mxu0 %v4085
    %4163 = vmatpush.msra.mxu0 %v4084
    %4164 = vmatpush.msra.mxu0 %v4083
    %4165 = vmatpush.msra.mxu0 %v4082
    %4166 = vmatpush.msra.mxu0 %v4081
    %4167 = vmatpush.msra.mxu0 %v4080
    %4168 = vmatmul.f32.gmra.mxu0 %v4061
    %v4169 = vpop.f32.mrf.mxu0
    %v4170 = vadd.f32 %v4150, %v4169
    %4171 = vdwg.mxu0
    %4172 = vmatpush.msra.mxu0 %v4111
    %4173 = vmatpush.msra.mxu0 %v4110
    %4174 = vmatpush.msra.mxu0 %v4109
    %4175 = vmatpush.msra.mxu0 %v4108
    %4176 = vmatpush.msra.mxu0 %v4107
    %4177 = vmatpush.msra.mxu0 %v4106
    %4178 = vmatpush.msra.mxu0 %v4105
    %4179 = vmatpush.msra.mxu0 %v4104
    %4180 = vmatpush.msra.mxu0 %v4103
    %4181 = vmatpush.msra.mxu0 %v4102
    %4182 = vmatpush.msra.mxu0 %v4101
    %4183 = vmatpush.msra.mxu0 %v4100
    %4184 = vmatpush.msra.mxu0 %v4099
    %4185 = vmatpush.msra.mxu0 %v4098
    %4186 = vmatpush.msra.mxu0 %v4097
    %4187 = vmatpush.msra.mxu0 %v4096
    %4188 = vmatmul.f32.gmra.mxu0 %v4062
    %v4189 = vpop.f32.mrf.mxu0
    %v4190 = vadd.f32 %v4170, %v4189
    %4191 = vdwg.mxu0
    %4192 = vmatpush.msra.mxu0 %v4127
    %4193 = vmatpush.msra.mxu0 %v4126
    %4194 = vmatpush.msra.mxu0 %v4125
    %4195 = vmatpush.msra.mxu0 %v4124
    %4196 = vmatpush.msra.mxu0 %v4123
    %4197 = vmatpush.msra.mxu0 %v4122
    %4198 = vmatpush.msra.mxu0 %v4121
    %4199 = vmatpush.msra.mxu0 %v4120
    %4200 = vmatpush.msra.mxu0 %v4119
    %4201 = vmatpush.msra.mxu0 %v4118
    %4202 = vmatpush.msra.mxu0 %v4117
    %4203 = vmatpush.msra.mxu0 %v4116
    %4204 = vmatpush.msra.mxu0 %v4115
    %4205 = vmatpush.msra.mxu0 %v4114
    %4206 = vmatpush.msra.mxu0 %v4113
    %4207 = vmatpush.msra.mxu0 %v4112
    %4208 = vmatmul.f32.gmra.mxu0 %v4063
    %v4209 = vpop.f32.mrf.mxu0
    %v4210 = vadd.f32 %v4190, %v4209
    %4211 = vdwg.mxu0
    %vm4212 = vcmask 15360
    %v4213 = vsel %vm4212, %v4210, -inf
    %4214 = vmax.xlane.f32.xlu0 %v4213
    %v4215 = vpop.xlane.xlu0 %4214
    %v4216 = vsub.f32 %v4210, %v4215
    %v4217 = vmul.f32 %v4216, 1.442695
    %v4218 = vpow.pop %v4217
    %v4219 = vsel %vm4212, %v4218, 0.0
    %4220 = vadd.xlane.f32.xlu0 %v4219
    %v4221 = vpop.xlane.xlu0 %4220
    %v4222 = vrcp.pop %v4221
    %v4223 = vmul.f32 %v4221, %v4222
    %v4224 = vsub.f32 1.0, %v4223
    %v4225 = vmul.f32 %v4222, %v4224
    %v4226 = vadd.f32 %v4222, %v4225
    %vm4227 = vweird.f32 %v4221
    %vm4228 = vweird.f32 %v4222
    %vm4229 = vmor %vm4227, %vm4228
    %v4230 = vsel %vm4229, %v4222, %v4226
    %v4231 = vand.u32 2147483647, %v4221
    %vm4232 = vcmp.eq.f32.partialorder %v4231, 8.507059e+37
    %v4233 = vand.u32 %v4221, 2147483648
    %v4234 = vor.u32 1.1754944e-38, %v4233
    %v4235 = vsel %vm4232, %v4234, %v4230
    %v4236 = vmul.f32 %v4218, %v4235
    %v4237 = vlaneseq
    %v4238 = vshrl.u32 %v4237, 7
    %vm4239 = vcmask 15368
    %v4240 = vsel %vm4239, %v4236, -inf
    %v4241 = vrot.slane %v4240, 4
    %v4242 = vmax.f32 %v4240, %v4241
    %v4243 = vrot.slane %v4242, 2
    %v4244 = vmax.f32 %v4242, %v4243
    %v4245 = vrot.slane %v4244, 1
    %v4246 = vmax.f32 %v4244, %v4245
    %vm4247 = vcmp.ge.f32.partialorder %v4236, %v4246
    %v4248 = vsel %vm4247, %v4238, 8
    %v4249 = vsel %vm4239, %v4248, 2147483647
    %v4250 = vrot.slane %v4249, 4
    %vm4251 = vcmp.lt.s32.totalorder %v4249, %v4250
    %v4252 = vsel %vm4251, %v4249, %v4250
    %v4253 = vrot.slane %v4252, 2
    %vm4254 = vcmp.lt.s32.totalorder %v4252, %v4253
    %v4255 = vsel %vm4254, %v4252, %v4253
    %v4256 = vrot.slane %v4255, 1
    %vm4257 = vcmp.lt.s32.totalorder %v4255, %v4256
    %v4258 = vsel %vm4257, %v4255, %v4256
    %vm4259 = vcmp.eq.s32.totalorder %v4238, %v4258
    %v4260 = vsel %vm4259, 1, 0
    %v4261 = vcvt.s32.f32 %v4260
    %4263 = vset.pattern.permute.xlu0 1
    %4264 = vperm.xlu0 %4263, %v4261
    %v4265 = vpop.permute.xlu0 %4264
    %v4267 = vmul.f32 %v4265, %v4210
    %v4268 = vsel %vm4212, %v4267, 0.0
    %v4269 = vrot.slane %v4268, 4
    %v4270 = vadd.f32 %v4268, %v4269
    %v4271 = vrot.slane %v4270, 2
    %v4272 = vadd.f32 %v4270, %v4271
    %v4273 = vrot.slane %v4272, 1
    %v4274 = vadd.f32 %v4272, %v4273
    %vm4275 = vcmask 8192
    %4276 = vst.msk [vmem:[#allocation10] sm:$0x1] %vm4275, %v4274
    %v4277 = vsel %vm4212, %v4274, -inf
    %4278 = vmax.xlane.f32.xlu0 %v4277
    %v4279 = vpop.xlane.xlu0 %4278
    %v4280 = vsub.f32 %v4274, %v4279
    %v4281 = vmul.f32 %v4280, 1.442695
    %v4282 = vpow.pop %v4281
    %v4283 = vsel %vm4212, %v4282, 0.0
    %4284 = vadd.xlane.f32.xlu0 %v4283
    %v4285 = vpop.xlane.xlu0 %4284
    %v4286 = vrcp.pop %v4285
    %v4287 = vmul.f32 %v4285, %v4286
    %v4288 = vsub.f32 1.0, %v4287
    %v4289 = vmul.f32 %v4286, %v4288
    %v4290 = vadd.f32 %v4286, %v4289
    %vm4291 = vweird.f32 %v4285
    %vm4292 = vweird.f32 %v4286
    %vm4293 = vmor %vm4291, %vm4292
    %v4294 = vsel %vm4293, %v4286, %v4290
    %v4295 = vand.u32 2147483647, %v4285
    %vm4296 = vcmp.eq.f32.partialorder %v4295, 8.507059e+37
    %v4297 = vand.u32 %v4285, 2147483648
    %v4298 = vor.u32 1.1754944e-38, %v4297
    %v4299 = vsel %vm4296, %v4298, %v4294
    %v4300 = vmul.f32 %v4282, %v4299
    %4301 = vst.msk [vmem:[#allocation11] sm:$0x1] %vm4275, %v4300
    %v4302 = vsub.f32 %v4236, %v4246
    %v4303 = vmul.f32 %v4302, 1.442695
    %v4304 = vpow.pop %v4303
    %v4305 = vsel %vm4239, %v4304, 0.0
    %v4306 = vrot.slane %v4305, 4
    %v4307 = vadd.f32 %v4305, %v4306
    %v4308 = vrot.slane %v4307, 2
    %v4309 = vadd.f32 %v4307, %v4308
    %v4310 = vrot.slane %v4309, 1
    %v4311 = vadd.f32 %v4309, %v4310
    %v4312 = vrcp.pop %v4311
    %v4313 = vmul.f32 %v4311, %v4312
    %v4314 = vsub.f32 1.0, %v4313
    %v4315 = vmul.f32 %v4312, %v4314
    %v4316 = vadd.f32 %v4312, %v4315
    %vm4317 = vweird.f32 %v4311
    %vm4318 = vweird.f32 %v4312
    %vm4319 = vmor %vm4317, %vm4318
    %v4320 = vsel %vm4319, %v4312, %v4316
    %v4321 = vand.u32 2147483647, %v4311
    %vm4322 = vcmp.eq.f32.partialorder %v4321, 8.507059e+37
    %v4323 = vand.u32 %v4311, 2147483648
    %v4324 = vor.u32 1.1754944e-38, %v4323
    %v4325 = vsel %vm4322, %v4324, %v4320
    %v4326 = vmul.f32 %v4304, %v4325
    %4328 = vrot.lane.b32.xlu0 %v4326, 127
    %v4329 = vpop.permute.xlu0 %4328
    %vm4331 = vcmask 7168
    %4332 = vst.msk [vmem:[%s7] sm:$0xff] %vm4331, %v4329
    // Predicated region
    $region38: #{tpu_custom_call.1} parent=1 // pred_check
      _
    $region39: #{tpu_custom_call.1} parent=1 // pred_check_branch
      %4334 = sbr.rel (0) target = $region41
    $region40: #{tpu_custom_call.1} parent=1 // pred_region
      %4336 = vsyncadd [#allocation4], 0
      %s4338 = sshll.u32 [#allocation10], 4
      %s4339 = int_to_ptr.vmem [resolvable:$true] %s4338
      %s4340 = sshll.u32 %s5, 4
      %s4341 = int_to_ptr.hbm [resolvable:$true] %s4340
      %4343 = dma.vmem_to_hbm [thread:$0]  %s4339, 16, %s4341, [#allocation4]
    $region41: #{tpu_custom_call.1} parent=1 // pred_fallthru
      _
    // Predicated region
    $region42: #{tpu_custom_call.1} parent=1 // pred_check
      _
    $region43: #{tpu_custom_call.1} parent=1 // pred_check_branch
      %4345 = sbr.rel (0) target = $region45
    $region44: #{tpu_custom_call.1} parent=1 // pred_region
      %4347 = vsyncadd [#allocation12], 0
      %s4349 = sshll.u32 [#allocation11], 4
      %s4350 = int_to_ptr.vmem [resolvable:$true] %s4349
      %s4351 = sshll.u32 %s6, 4
      %s4352 = int_to_ptr.hbm [resolvable:$true] %s4351
      %4354 = dma.vmem_to_hbm [thread:$0]  %s4350, 16, %s4352, [#allocation12]
    $region45: #{tpu_custom_call.1} parent=1 // pred_fallthru
      _
    // Predicated region
    $region46: #{tpu_custom_call.1} parent=1 // pred_check
      _
    $region47: #{tpu_custom_call.1} parent=1 // pred_check_branch
      %4356 = sbr.rel (0) target = $region49
    $region48: #{tpu_custom_call.1} parent=1 // pred_region
      _
    $region49: #{tpu_custom_call.1} parent=1 // pred_fallthru
      _
    // Predicated region
    $region50: #{tpu_custom_call.1} parent=1 // pred_check
      _
    $region51: #{tpu_custom_call.1} parent=1 // pred_check_branch
      %4358 = sbr.rel (0) target = $region53
    $region52: #{tpu_custom_call.1} parent=1 // pred_region
      %4360 = dma.done [#allocation4], 16
    $region53: #{tpu_custom_call.1} parent=1 // pred_fallthru
      _
    // Predicated region
    $region54: #{tpu_custom_call.1} parent=1 // pred_check
      _
    $region55: #{tpu_custom_call.1} parent=1 // pred_check_branch
      %4362 = sbr.rel (0) target = $region57
    $region56: #{tpu_custom_call.1} parent=1 // pred_region
      %4364 = dma.done [#allocation12], 16
    $region57: #{tpu_custom_call.1} parent=1 // pred_fallthru
      _
    // Predicated region
    $region58: #{tpu_custom_call.1} parent=1 // pred_check
      _
    $region59: #{tpu_custom_call.1} parent=1 // pred_check_branch
      %4366 = sbr.rel (0) target = $region61
    $region60: #{tpu_custom_call.1} parent=1 // pred_region
      _
    $region61: #{tpu_custom_call.1} parent=1 // pred_fallthru
      _
    %4367 = vsyncpa [#allocation3], 1
    %4368 = vsyncpa [#allocation6], 1
    %4369 = vsyncpa [#allocation9], 1
    %4370 = vsyncpa [#allocation4], 1
    %4371 = vsyncpa [#allocation12], 1

</llo_original>
